<compile_context>
chip_gen: v7x
topology: tpu7x:2x2x1
jax: 0.10.0
libtpu: 0.0.40
codegen_flags: <defaults>
</compile_context>

<pallas_src>
import functools

import jax
import jax.numpy as jnp
import numpy as np
from jax import lax
from jax.experimental import pallas as pl
from jax.experimental.pallas import tpu as pltpu

F32 = jnp.float32
BF16 = jnp.bfloat16

_SQRT_HALF = 0.7071067811865476


def _gelu(y):
    # exact (erf) GELU, matching torch.nn.GELU default
    return 0.5 * y * (1.0 + lax.erf(y * _SQRT_HALF))


def _largest_divisor_tile(m, candidates):
    for c in candidates:
        if m % c == 0:
            return c
    return None


# ----------------------------------------------------------------------------
# Fused Linear kernel:  y = act(x @ W + b)
# ----------------------------------------------------------------------------

def _linear_kernel(x_ref, w_ref, b_ref, o_ref, *, act):
    # x: (tm, K) f32, w: (K, tn) bf16, b: (1, tn) f32, o: (tm, tn) f32
    x = x_ref[...].astype(BF16)                       # bf16 in, f32 accumulate
    acc = jnp.dot(x, w_ref[...], preferred_element_type=jnp.float32)
    y = acc + b_ref[...]
    if act == "gelu":
        y = _gelu(y)
    o_ref[...] = y


def fused_linear(x2d, w_kn_bf16, bias_n, act="none"):
    """act(x @ W + b); W stored (K, N) bf16, f32 accumulation, fused epilogue."""
    M, K = x2d.shape
    K2, N = w_kn_bf16.shape
    assert K == K2

    # Row tile: largest candidate dividing M (no pad/copy in the common case);
    # 512-class tiles keep >=2 grid steps on the parallel axis for megacore.
    cands = (512, 256, 128, 64, 32, 16, 8)
    tm = _largest_divisor_tile(M, cands)
    M_out = M
    if tm is None:                       # ragged M: pad up to a multiple of 8
        Mp = ((M + 7) // 8) * 8
        x2d = jnp.pad(x2d, ((0, Mp - M), (0, 0)))
        M = Mp
        tm = _largest_divisor_tile(M, cands)

    # Column tile: whole N resident when small (lane-dense output), else 256.
    if N <= 512:
        tn = N
    else:
        assert N % 256 == 0
        tn = 256

    cost = pl.CostEstimate(
        flops=2 * M * N * K,
        transcendentals=M * N if act == "gelu" else 0,
        bytes_accessed=M * K * 4 + K * N * 2 + N * 4 + M * N * 4)

    out = pl.pallas_call(
        functools.partial(_linear_kernel, act=act),
        out_shape=jax.ShapeDtypeStruct((M, N), F32),
        grid_spec=pltpu.PrefetchScalarGridSpec(
            num_scalar_prefetch=0,
            grid=(M // tm, N // tn),
            in_specs=[pl.BlockSpec((tm, K), lambda i, j: (i, 0)),
                      pl.BlockSpec((K, tn), lambda i, j: (0, j)),
                      pl.BlockSpec((1, tn), lambda i, j: (0, j))],
            out_specs=pl.BlockSpec((tm, tn), lambda i, j: (i, j))),
        compiler_params=pltpu.CompilerParams(
            dimension_semantics=("parallel", "parallel")),
        cost_estimate=cost,
    )(x2d.astype(F32), w_kn_bf16, bias_n.reshape(1, N).astype(F32))
    return out[:M_out]


# ----------------------------------------------------------------------------
# Fused depthwise 3x3x3 conv + residual + bias + GELU
# ----------------------------------------------------------------------------

def _dwconv_res_gelu_kernel(x_ref, w_ref, b_ref, o_ref, *, H, W, D):
    # x_ref: (1, H+2, W+2, D+2, C) halo-padded fc1 activations (f32)
    # w_ref: (27, C) depthwise taps, index = kh*9 + kw*3 + kd
    # b_ref: (1, C)
    # o_ref: (1, H, W, D, C) = GELU(x + dwconv(x) + b)
    bias = b_ref[0, :]

    @pl.loop(0, H)   # one output H-row per step: bounds live vregs to a slab
    def _(h):
        acc = jnp.zeros((W, D, C := o_ref.shape[-1]) and o_ref.shape[2:],
                        jnp.float32)                     # (W, D, C)
        for kh in range(3):
            for kw in range(3):
                for kd in range(3):
                    tap = w_ref[kh * 9 + kw * 3 + kd, :]          # (C,)
                    acc = acc + x_ref[0, h + kh,
                                      kw:kw + W, kd:kd + D, :] * tap
        center = x_ref[0, h + 1, 1:1 + W, 1:1 + D, :]
        y = center + acc + bias
        o_ref[0, h, :, :, :] = _gelu(y)


def dwconv_residual_gelu(h_vol, w_27c, bias_c):
    """GELU(x + depthwise3x3x3(x) + b) on a channel-last (B, H, W, D, C) volume."""
    B, H, W, D, C = h_vol.shape
    # TODO(synk): for large volumes, add an H-tiled grid axis with 1-voxel halo
    # blocks instead of the per-batch full-volume block used here.
    x_pad = jnp.pad(h_vol.astype(F32), ((0, 0), (1, 1), (1, 1), (1, 1), (0, 0)))
    cost = pl.CostEstimate(
        flops=2 * 27 * B * H * W * D * C + 3 * B * H * W * D * C,
        transcendentals=B * H * W * D * C,
        bytes_accessed=(x_pad.size + h_vol.size + w_27c.size + C) * 4)
    out = pl.pallas_call(
        functools.partial(_dwconv_res_gelu_kernel, H=H, W=W, D=D),
        out_shape=jax.ShapeDtypeStruct((B, H, W, D, C), F32),
        grid_spec=pltpu.PrefetchScalarGridSpec(
            num_scalar_prefetch=0,
            grid=(B,),
            in_specs=[pl.BlockSpec((1, H + 2, W + 2, D + 2, C),
                                   lambda b: (b, 0, 0, 0, 0)),
                      pl.BlockSpec((27, C), lambda b: (0, 0)),
                      pl.BlockSpec((1, C), lambda b: (0, 0))],
            out_specs=pl.BlockSpec((1, H, W, D, C),
                                   lambda b: (b, 0, 0, 0, 0))),
        compiler_params=pltpu.CompilerParams(dimension_semantics=("parallel",)),
        cost_estimate=cost,
    )(x_pad, w_27c.astype(F32), bias_c.reshape(1, C).astype(F32))
    return out


# ----------------------------------------------------------------------------
# Mlp forward (matches torch: fc1 -> GELU(x + DWConv(x)) -> fc2; dropout p=0)
# ----------------------------------------------------------------------------

def mlp_forward(params, x, H, W, D):
    B, N, C = x.shape
    assert N == H * W * D
    x2d = x.reshape(B * N, C)
    h = fused_linear(x2d, params["fc1_w"], params["fc1_b"], act="none")
    hid = h.shape[-1]
    a = dwconv_residual_gelu(h.reshape(B, H, W, D, hid),
                             params["dw_w"], params["dw_b"])
    out = fused_linear(a.reshape(B * N, hid),
                       params["fc2_w"], params["fc2_b"], act="none")
    # Dropout(p=0.0) is the identity -> omitted.
    return out.reshape(B, N, -1)


def mlp_reference(params, x, H, W, D):
    """Pure-JAX reference (same bf16 weights upcast to f32)."""
    B, N, C = x.shape
    w1 = params["fc1_w"].astype(F32)
    w2 = params["fc2_w"].astype(F32)
    h = x.reshape(B * N, C) @ w1 + params["fc1_b"]
    hid = h.shape[-1]
    hv = h.reshape(B, H, W, D, hid)
    hp = jnp.pad(hv, ((0, 0), (1, 1), (1, 1), (1, 1), (0, 0)))
    dw = jnp.zeros_like(hv)
    for kh in range(3):
        for kw in range(3):
            for kd in range(3):
                tap = params["dw_w"][kh * 9 + kw * 3 + kd]
                dw = dw + hp[:, kh:kh + H, kw:kw + W, kd:kd + D, :] * tap
    a = hv + dw + params["dw_b"]
    a = _gelu(a)
    out = a.reshape(B * N, hid) @ w2 + params["fc2_b"]
    return out.reshape(B, N, -1)


def init_mlp_params(key, in_features, hidden_features, out_features):
    k1, k2, k3, k4, k5, k6 = jax.random.split(key, 6)
    std = 0.02
    fc1_w = std * jax.random.normal(k1, (in_features, hidden_features), F32)
    fc2_w = std * jax.random.normal(k2, (hidden_features, out_features), F32)
    dw_w = std * jax.random.normal(k3, (27, hidden_features), F32)
    return {
        "fc1_w": fc1_w.astype(BF16),                                # (K, N) bf16
        "fc1_b": 0.01 * jax.random.normal(k4, (hidden_features,), F32),
        "fc2_w": fc2_w.astype(BF16),
        "fc2_b": 0.01 * jax.random.normal(k5, (out_features,), F32),
        "dw_w": dw_w,                                               # f32 (VPU)
        "dw_b": 0.01 * jax.random.normal(k6, (hidden_features,), F32),
    }


if __name__ == "__main__":
    key = jax.random.PRNGKey(0)
    pkey, xkey = jax.random.split(key)

    B, H, W, D = 2, 8, 8, 8
    in_features, hidden_features, out_features = 64, 256, 64
    N = H * W * D

    params = init_mlp_params(pkey, in_features, hidden_features, out_features)
    x = jax.random.normal(xkey, (B, N, in_features), dtype=F32)

    fwd = jax.jit(functools.partial(mlp_forward, H=H, W=W, D=D))
    out = fwd(params, x)
    jax.block_until_ready(out)

    assert out.shape == (B, N, out_features)
    assert bool(jnp.all(jnp.isfinite(out)))

    ref = mlp_reference(params, x, H, W, D)
    np.testing.assert_allclose(np.asarray(out), np.asarray(ref),
                               rtol=2e-2, atol=2e-2)
    print("KERNEL_OK")
</pallas_src>

<mosaic_0001>
module attributes {stable_mosaic.version = 11 : i64} {
  func.func @_dwconv_res_gelu_kernel(%arg0: i32, %arg1: memref<1x10x10x10x256xf32, #tpu.memory_space<vmem>>, %arg2: memref<27x256xf32, #tpu.memory_space<vmem>>, %arg3: memref<1x256xf32, #tpu.memory_space<vmem>>, %arg4: memref<1x8x8x8x256xf32, #tpu.memory_space<vmem>>) attributes {dimension_semantics = [#tpu.dimension_semantics<parallel>], iteration_bounds = array<i64: 2>, scalar_prefetch = 0 : i64, scratch_operands = 0 : i64, tpu.core_type = #tpu.core_type<tc>, window_params = [{transform_indices = @transform_0, window_bounds = array<i64: 1, 10, 10, 10, 256>}, {pipeline_mode = #tpu.pipeline_mode<synchronous>, transform_indices = @transform_1, window_bounds = array<i64: 27, 256>}, {pipeline_mode = #tpu.pipeline_mode<synchronous>, transform_indices = @transform_2, window_bounds = array<i64: 1, 256>}, {transform_indices = @transform_3, window_bounds = array<i64: 1, 8, 8, 8, 256>}]} {
    %c0 = arith.constant 0 : index
    %c0_0 = arith.constant 0 : index
    %0 = vector.load %arg3[%c0, %c0_0] : memref<1x256xf32, #tpu.memory_space<vmem>>, vector<1x256xf32>
    %1 = vector.shape_cast %0 : vector<1x256xf32> to vector<256xf32>
    %c0_i32 = arith.constant 0 : i32
    %c8_i32 = arith.constant 8 : i32
    %2 = arith.addi %c0_i32, %c8_i32 : i32
    %c1_i32 = arith.constant 1 : i32
    scf.for %arg5 = %c0_i32 to %2 step %c1_i32  : i32 {
      %c1_i32_2 = arith.constant 1 : i32
      %3 = arith.muli %arg5, %c1_i32_2 : i32
      %c0_i32_3 = arith.constant 0 : i32
      %4 = arith.addi %c0_i32_3, %3 : i32
      %cst = arith.constant 0.000000e+00 : f32
      %5 = vector.broadcast %cst : f32 to vector<8x8x256xf32>
      %c0_4 = arith.constant 0 : index
      %c0_5 = arith.constant 0 : index
      %6 = vector.load %arg2[%c0_4, %c0_5] : memref<27x256xf32, #tpu.memory_space<vmem>>, vector<1x256xf32>
      %7 = vector.shape_cast %6 : vector<1x256xf32> to vector<256xf32>
      %c0_i32_6 = arith.constant 0 : i32
      %8 = arith.addi %4, %c0_i32_6 : i32
      %c0_7 = arith.constant 0 : index
      %9 = arith.index_cast %8 : i32 to index
      %c0_8 = arith.constant 0 : index
      %c0_9 = arith.constant 0 : index
      %c0_10 = arith.constant 0 : index
      %10 = vector.load %arg1[%c0_7, %9, %c0_8, %c0_9, %c0_10] : memref<1x10x10x10x256xf32, #tpu.memory_space<vmem>>, vector<1x1x8x8x256xf32>
      %11 = vector.shape_cast %10 : vector<1x1x8x8x256xf32> to vector<8x8x256xf32>
      %12 = vector.shape_cast %7 : vector<256xf32> to vector<1x1x256xf32>
      %13 = vector.broadcast %12 : vector<1x1x256xf32> to vector<8x8x256xf32>
      %14 = arith.mulf %11, %13 : vector<8x8x256xf32>
      %15 = arith.addf %5, %14 : vector<8x8x256xf32>
      %c1 = arith.constant 1 : index
      %c0_11 = arith.constant 0 : index
      %16 = vector.load %arg2[%c1, %c0_11] : memref<27x256xf32, #tpu.memory_space<vmem>>, vector<1x256xf32>
      %17 = vector.shape_cast %16 : vector<1x256xf32> to vector<256xf32>
      %c0_i32_12 = arith.constant 0 : i32
      %18 = arith.addi %4, %c0_i32_12 : i32
      %c0_13 = arith.constant 0 : index
      %19 = arith.index_cast %18 : i32 to index
      %c0_14 = arith.constant 0 : index
      %c1_15 = arith.constant 1 : index
      %c0_16 = arith.constant 0 : index
      %20 = vector.load %arg1[%c0_13, %19, %c0_14, %c1_15, %c0_16] : memref<1x10x10x10x256xf32, #tpu.memory_space<vmem>>, vector<1x1x8x8x256xf32>
      %21 = vector.shape_cast %20 : vector<1x1x8x8x256xf32> to vector<8x8x256xf32>
      %22 = vector.shape_cast %17 : vector<256xf32> to vector<1x1x256xf32>
      %23 = vector.broadcast %22 : vector<1x1x256xf32> to vector<8x8x256xf32>
      %24 = arith.mulf %21, %23 : vector<8x8x256xf32>
      %25 = arith.addf %15, %24 : vector<8x8x256xf32>
      %c2 = arith.constant 2 : index
      %c0_17 = arith.constant 0 : index
      %26 = vector.load %arg2[%c2, %c0_17] : memref<27x256xf32, #tpu.memory_space<vmem>>, vector<1x256xf32>
      %27 = vector.shape_cast %26 : vector<1x256xf32> to vector<256xf32>
      %c0_i32_18 = arith.constant 0 : i32
      %28 = arith.addi %4, %c0_i32_18 : i32
      %c0_19 = arith.constant 0 : index
      %29 = arith.index_cast %28 : i32 to index
      %c0_20 = arith.constant 0 : index
      %c2_21 = arith.constant 2 : index
      %c0_22 = arith.constant 0 : index
      %30 = vector.load %arg1[%c0_19, %29, %c0_20, %c2_21, %c0_22] : memref<1x10x10x10x256xf32, #tpu.memory_space<vmem>>, vector<1x1x8x8x256xf32>
      %31 = vector.shape_cast %30 : vector<1x1x8x8x256xf32> to vector<8x8x256xf32>
      %32 = vector.shape_cast %27 : vector<256xf32> to vector<1x1x256xf32>
      %33 = vector.broadcast %32 : vector<1x1x256xf32> to vector<8x8x256xf32>
      %34 = arith.mulf %31, %33 : vector<8x8x256xf32>
      %35 = arith.addf %25, %34 : vector<8x8x256xf32>
      %c3 = arith.constant 3 : index
      %c0_23 = arith.constant 0 : index
      %36 = vector.load %arg2[%c3, %c0_23] : memref<27x256xf32, #tpu.memory_space<vmem>>, vector<1x256xf32>
      %37 = vector.shape_cast %36 : vector<1x256xf32> to vector<256xf32>
      %c0_i32_24 = arith.constant 0 : i32
      %38 = arith.addi %4, %c0_i32_24 : i32
      %c0_25 = arith.constant 0 : index
      %39 = arith.index_cast %38 : i32 to index
      %c1_26 = arith.constant 1 : index
      %c0_27 = arith.constant 0 : index
      %c0_28 = arith.constant 0 : index
      %40 = vector.load %arg1[%c0_25, %39, %c1_26, %c0_27, %c0_28] : memref<1x10x10x10x256xf32, #tpu.memory_space<vmem>>, vector<1x1x8x8x256xf32>
      %41 = vector.shape_cast %40 : vector<1x1x8x8x256xf32> to vector<8x8x256xf32>
      %42 = vector.shape_cast %37 : vector<256xf32> to vector<1x1x256xf32>
      %43 = vector.broadcast %42 : vector<1x1x256xf32> to vector<8x8x256xf32>
      %44 = arith.mulf %41, %43 : vector<8x8x256xf32>
      %45 = arith.addf %35, %44 : vector<8x8x256xf32>
      %c4 = arith.constant 4 : index
      %c0_29 = arith.constant 0 : index
      %46 = vector.load %arg2[%c4, %c0_29] : memref<27x256xf32, #tpu.memory_space<vmem>>, vector<1x256xf32>
      %47 = vector.shape_cast %46 : vector<1x256xf32> to vector<256xf32>
      %c0_i32_30 = arith.constant 0 : i32
      %48 = arith.addi %4, %c0_i32_30 : i32
      %c0_31 = arith.constant 0 : index
      %49 = arith.index_cast %48 : i32 to index
      %c1_32 = arith.constant 1 : index
      %c1_33 = arith.constant 1 : index
      %c0_34 = arith.constant 0 : index
      %50 = vector.load %arg1[%c0_31, %49, %c1_32, %c1_33, %c0_34] : memref<1x10x10x10x256xf32, #tpu.memory_space<vmem>>, vector<1x1x8x8x256xf32>
      %51 = vector.shape_cast %50 : vector<1x1x8x8x256xf32> to vector<8x8x256xf32>
      %52 = vector.shape_cast %47 : vector<256xf32> to vector<1x1x256xf32>
      %53 = vector.broadcast %52 : vector<1x1x256xf32> to vector<8x8x256xf32>
      %54 = arith.mulf %51, %53 : vector<8x8x256xf32>
      %55 = arith.addf %45, %54 : vector<8x8x256xf32>
      %c5 = arith.constant 5 : index
      %c0_35 = arith.constant 0 : index
      %56 = vector.load %arg2[%c5, %c0_35] : memref<27x256xf32, #tpu.memory_space<vmem>>, vector<1x256xf32>
      %57 = vector.shape_cast %56 : vector<1x256xf32> to vector<256xf32>
      %c0_i32_36 = arith.constant 0 : i32
      %58 = arith.addi %4, %c0_i32_36 : i32
      %c0_37 = arith.constant 0 : index
      %59 = arith.index_cast %58 : i32 to index
      %c1_38 = arith.constant 1 : index
      %c2_39 = arith.constant 2 : index
      %c0_40 = arith.constant 0 : index
      %60 = vector.load %arg1[%c0_37, %59, %c1_38, %c2_39, %c0_40] : memref<1x10x10x10x256xf32, #tpu.memory_space<vmem>>, vector<1x1x8x8x256xf32>
      %61 = vector.shape_cast %60 : vector<1x1x8x8x256xf32> to vector<8x8x256xf32>
      %62 = vector.shape_cast %57 : vector<256xf32> to vector<1x1x256xf32>
      %63 = vector.broadcast %62 : vector<1x1x256xf32> to vector<8x8x256xf32>
      %64 = arith.mulf %61, %63 : vector<8x8x256xf32>
      %65 = arith.addf %55, %64 : vector<8x8x256xf32>
      %c6 = arith.constant 6 : index
      %c0_41 = arith.constant 0 : index
      %66 = vector.load %arg2[%c6, %c0_41] : memref<27x256xf32, #tpu.memory_space<vmem>>, vector<1x256xf32>
      %67 = vector.shape_cast %66 : vector<1x256xf32> to vector<256xf32>
      %c0_i32_42 = arith.constant 0 : i32
      %68 = arith.addi %4, %c0_i32_42 : i32
      %c0_43 = arith.constant 0 : index
      %69 = arith.index_cast %68 : i32 to index
      %c2_44 = arith.constant 2 : index
      %c0_45 = arith.constant 0 : index
      %c0_46 = arith.constant 0 : index
      %70 = vector.load %arg1[%c0_43, %69, %c2_44, %c0_45, %c0_46] : memref<1x10x10x10x256xf32, #tpu.memory_space<vmem>>, vector<1x1x8x8x256xf32>
      %71 = vector.shape_cast %70 : vector<1x1x8x8x256xf32> to vector<8x8x256xf32>
      %72 = vector.shape_cast %67 : vector<256xf32> to vector<1x1x256xf32>
      %73 = vector.broadcast %72 : vector<1x1x256xf32> to vector<8x8x256xf32>
      %74 = arith.mulf %71, %73 : vector<8x8x256xf32>
      %75 = arith.addf %65, %74 : vector<8x8x256xf32>
      %c7 = arith.constant 7 : index
      %c0_47 = arith.constant 0 : index
      %76 = vector.load %arg2[%c7, %c0_47] : memref<27x256xf32, #tpu.memory_space<vmem>>, vector<1x256xf32>
      %77 = vector.shape_cast %76 : vector<1x256xf32> to vector<256xf32>
      %c0_i32_48 = arith.constant 0 : i32
      %78 = arith.addi %4, %c0_i32_48 : i32
      %c0_49 = arith.constant 0 : index
      %79 = arith.index_cast %78 : i32 to index
      %c2_50 = arith.constant 2 : index
      %c1_51 = arith.constant 1 : index
      %c0_52 = arith.constant 0 : index
      %80 = vector.load %arg1[%c0_49, %79, %c2_50, %c1_51, %c0_52] : memref<1x10x10x10x256xf32, #tpu.memory_space<vmem>>, vector<1x1x8x8x256xf32>
      %81 = vector.shape_cast %80 : vector<1x1x8x8x256xf32> to vector<8x8x256xf32>
      %82 = vector.shape_cast %77 : vector<256xf32> to vector<1x1x256xf32>
      %83 = vector.broadcast %82 : vector<1x1x256xf32> to vector<8x8x256xf32>
      %84 = arith.mulf %81, %83 : vector<8x8x256xf32>
      %85 = arith.addf %75, %84 : vector<8x8x256xf32>
      %c8 = arith.constant 8 : index
      %c0_53 = arith.constant 0 : index
      %86 = vector.load %arg2[%c8, %c0_53] : memref<27x256xf32, #tpu.memory_space<vmem>>, vector<1x256xf32>
      %87 = vector.shape_cast %86 : vector<1x256xf32> to vector<256xf32>
      %c0_i32_54 = arith.constant 0 : i32
      %88 = arith.addi %4, %c0_i32_54 : i32
      %c0_55 = arith.constant 0 : index
      %89 = arith.index_cast %88 : i32 to index
      %c2_56 = arith.constant 2 : index
      %c2_57 = arith.constant 2 : index
      %c0_58 = arith.constant 0 : index
      %90 = vector.load %arg1[%c0_55, %89, %c2_56, %c2_57, %c0_58] : memref<1x10x10x10x256xf32, #tpu.memory_space<vmem>>, vector<1x1x8x8x256xf32>
      %91 = vector.shape_cast %90 : vector<1x1x8x8x256xf32> to vector<8x8x256xf32>
      %92 = vector.shape_cast %87 : vector<256xf32> to vector<1x1x256xf32>
      %93 = vector.broadcast %92 : vector<1x1x256xf32> to vector<8x8x256xf32>
      %94 = arith.mulf %91, %93 : vector<8x8x256xf32>
      %95 = arith.addf %85, %94 : vector<8x8x256xf32>
      %c9 = arith.constant 9 : index
      %c0_59 = arith.constant 0 : index
      %96 = vector.load %arg2[%c9, %c0_59] : memref<27x256xf32, #tpu.memory_space<vmem>>, vector<1x256xf32>
      %97 = vector.shape_cast %96 : vector<1x256xf32> to vector<256xf32>
      %c1_i32_60 = arith.constant 1 : i32
      %98 = arith.addi %4, %c1_i32_60 : i32
      %c0_61 = arith.constant 0 : index
      %99 = arith.index_cast %98 : i32 to index
      %c0_62 = arith.constant 0 : index
      %c0_63 = arith.constant 0 : index
      %c0_64 = arith.constant 0 : index
      %100 = vector.load %arg1[%c0_61, %99, %c0_62, %c0_63, %c0_64] : memref<1x10x10x10x256xf32, #tpu.memory_space<vmem>>, vector<1x1x8x8x256xf32>
      %101 = vector.shape_cast %100 : vector<1x1x8x8x256xf32> to vector<8x8x256xf32>
      %102 = vector.shape_cast %97 : vector<256xf32> to vector<1x1x256xf32>
      %103 = vector.broadcast %102 : vector<1x1x256xf32> to vector<8x8x256xf32>
      %104 = arith.mulf %101, %103 : vector<8x8x256xf32>
      %105 = arith.addf %95, %104 : vector<8x8x256xf32>
      %c10 = arith.constant 10 : index
      %c0_65 = arith.constant 0 : index
      %106 = vector.load %arg2[%c10, %c0_65] : memref<27x256xf32, #tpu.memory_space<vmem>>, vector<1x256xf32>
      %107 = vector.shape_cast %106 : vector<1x256xf32> to vector<256xf32>
      %c1_i32_66 = arith.constant 1 : i32
      %108 = arith.addi %4, %c1_i32_66 : i32
      %c0_67 = arith.constant 0 : index
      %109 = arith.index_cast %108 : i32 to index
      %c0_68 = arith.constant 0 : index
      %c1_69 = arith.constant 1 : index
      %c0_70 = arith.constant 0 : index
      %110 = vector.load %arg1[%c0_67, %109, %c0_68, %c1_69, %c0_70] : memref<1x10x10x10x256xf32, #tpu.memory_space<vmem>>, vector<1x1x8x8x256xf32>
      %111 = vector.shape_cast %110 : vector<1x1x8x8x256xf32> to vector<8x8x256xf32>
      %112 = vector.shape_cast %107 : vector<256xf32> to vector<1x1x256xf32>
      %113 = vector.broadcast %112 : vector<1x1x256xf32> to vector<8x8x256xf32>
      %114 = arith.mulf %111, %113 : vector<8x8x256xf32>
      %115 = arith.addf %105, %114 : vector<8x8x256xf32>
      %c11 = arith.constant 11 : index
      %c0_71 = arith.constant 0 : index
      %116 = vector.load %arg2[%c11, %c0_71] : memref<27x256xf32, #tpu.memory_space<vmem>>, vector<1x256xf32>
      %117 = vector.shape_cast %116 : vector<1x256xf32> to vector<256xf32>
      %c1_i32_72 = arith.constant 1 : i32
      %118 = arith.addi %4, %c1_i32_72 : i32
      %c0_73 = arith.constant 0 : index
      %119 = arith.index_cast %118 : i32 to index
      %c0_74 = arith.constant 0 : index
      %c2_75 = arith.constant 2 : index
      %c0_76 = arith.constant 0 : index
      %120 = vector.load %arg1[%c0_73, %119, %c0_74, %c2_75, %c0_76] : memref<1x10x10x10x256xf32, #tpu.memory_space<vmem>>, vector<1x1x8x8x256xf32>
      %121 = vector.shape_cast %120 : vector<1x1x8x8x256xf32> to vector<8x8x256xf32>
      %122 = vector.shape_cast %117 : vector<256xf32> to vector<1x1x256xf32>
      %123 = vector.broadcast %122 : vector<1x1x256xf32> to vector<8x8x256xf32>
      %124 = arith.mulf %121, %123 : vector<8x8x256xf32>
      %125 = arith.addf %115, %124 : vector<8x8x256xf32>
      %c12 = arith.constant 12 : index
      %c0_77 = arith.constant 0 : index
      %126 = vector.load %arg2[%c12, %c0_77] : memref<27x256xf32, #tpu.memory_space<vmem>>, vector<1x256xf32>
      %127 = vector.shape_cast %126 : vector<1x256xf32> to vector<256xf32>
      %c1_i32_78 = arith.constant 1 : i32
      %128 = arith.addi %4, %c1_i32_78 : i32
      %c0_79 = arith.constant 0 : index
      %129 = arith.index_cast %128 : i32 to index
      %c1_80 = arith.constant 1 : index
      %c0_81 = arith.constant 0 : index
      %c0_82 = arith.constant 0 : index
      %130 = vector.load %arg1[%c0_79, %129, %c1_80, %c0_81, %c0_82] : memref<1x10x10x10x256xf32, #tpu.memory_space<vmem>>, vector<1x1x8x8x256xf32>
      %131 = vector.shape_cast %130 : vector<1x1x8x8x256xf32> to vector<8x8x256xf32>
      %132 = vector.shape_cast %127 : vector<256xf32> to vector<1x1x256xf32>
      %133 = vector.broadcast %132 : vector<1x1x256xf32> to vector<8x8x256xf32>
      %134 = arith.mulf %131, %133 : vector<8x8x256xf32>
      %135 = arith.addf %125, %134 : vector<8x8x256xf32>
      %c13 = arith.constant 13 : index
      %c0_83 = arith.constant 0 : index
      %136 = vector.load %arg2[%c13, %c0_83] : memref<27x256xf32, #tpu.memory_space<vmem>>, vector<1x256xf32>
      %137 = vector.shape_cast %136 : vector<1x256xf32> to vector<256xf32>
      %c1_i32_84 = arith.constant 1 : i32
      %138 = arith.addi %4, %c1_i32_84 : i32
      %c0_85 = arith.constant 0 : index
      %139 = arith.index_cast %138 : i32 to index
      %c1_86 = arith.constant 1 : index
      %c1_87 = arith.constant 1 : index
      %c0_88 = arith.constant 0 : index
      %140 = vector.load %arg1[%c0_85, %139, %c1_86, %c1_87, %c0_88] : memref<1x10x10x10x256xf32, #tpu.memory_space<vmem>>, vector<1x1x8x8x256xf32>
      %141 = vector.shape_cast %140 : vector<1x1x8x8x256xf32> to vector<8x8x256xf32>
      %142 = vector.shape_cast %137 : vector<256xf32> to vector<1x1x256xf32>
      %143 = vector.broadcast %142 : vector<1x1x256xf32> to vector<8x8x256xf32>
      %144 = arith.mulf %141, %143 : vector<8x8x256xf32>
      %145 = arith.addf %135, %144 : vector<8x8x256xf32>
      %c14 = arith.constant 14 : index
      %c0_89 = arith.constant 0 : index
      %146 = vector.load %arg2[%c14, %c0_89] : memref<27x256xf32, #tpu.memory_space<vmem>>, vector<1x256xf32>
      %147 = vector.shape_cast %146 : vector<1x256xf32> to vector<256xf32>
      %c1_i32_90 = arith.constant 1 : i32
      %148 = arith.addi %4, %c1_i32_90 : i32
      %c0_91 = arith.constant 0 : index
      %149 = arith.index_cast %148 : i32 to index
      %c1_92 = arith.constant 1 : index
      %c2_93 = arith.constant 2 : index
      %c0_94 = arith.constant 0 : index
      %150 = vector.load %arg1[%c0_91, %149, %c1_92, %c2_93, %c0_94] : memref<1x10x10x10x256xf32, #tpu.memory_space<vmem>>, vector<1x1x8x8x256xf32>
      %151 = vector.shape_cast %150 : vector<1x1x8x8x256xf32> to vector<8x8x256xf32>
      %152 = vector.shape_cast %147 : vector<256xf32> to vector<1x1x256xf32>
      %153 = vector.broadcast %152 : vector<1x1x256xf32> to vector<8x8x256xf32>
      %154 = arith.mulf %151, %153 : vector<8x8x256xf32>
      %155 = arith.addf %145, %154 : vector<8x8x256xf32>
      %c15 = arith.constant 15 : index
      %c0_95 = arith.constant 0 : index
      %156 = vector.load %arg2[%c15, %c0_95] : memref<27x256xf32, #tpu.memory_space<vmem>>, vector<1x256xf32>
      %157 = vector.shape_cast %156 : vector<1x256xf32> to vector<256xf32>
      %c1_i32_96 = arith.constant 1 : i32
      %158 = arith.addi %4, %c1_i32_96 : i32
      %c0_97 = arith.constant 0 : index
      %159 = arith.index_cast %158 : i32 to index
      %c2_98 = arith.constant 2 : index
      %c0_99 = arith.constant 0 : index
      %c0_100 = arith.constant 0 : index
      %160 = vector.load %arg1[%c0_97, %159, %c2_98, %c0_99, %c0_100] : memref<1x10x10x10x256xf32, #tpu.memory_space<vmem>>, vector<1x1x8x8x256xf32>
      %161 = vector.shape_cast %160 : vector<1x1x8x8x256xf32> to vector<8x8x256xf32>
      %162 = vector.shape_cast %157 : vector<256xf32> to vector<1x1x256xf32>
      %163 = vector.broadcast %162 : vector<1x1x256xf32> to vector<8x8x256xf32>
      %164 = arith.mulf %161, %163 : vector<8x8x256xf32>
      %165 = arith.addf %155, %164 : vector<8x8x256xf32>
      %c16 = arith.constant 16 : index
      %c0_101 = arith.constant 0 : index
      %166 = vector.load %arg2[%c16, %c0_101] : memref<27x256xf32, #tpu.memory_space<vmem>>, vector<1x256xf32>
      %167 = vector.shape_cast %166 : vector<1x256xf32> to vector<256xf32>
      %c1_i32_102 = arith.constant 1 : i32
      %168 = arith.addi %4, %c1_i32_102 : i32
      %c0_103 = arith.constant 0 : index
      %169 = arith.index_cast %168 : i32 to index
      %c2_104 = arith.constant 2 : index
      %c1_105 = arith.constant 1 : index
      %c0_106 = arith.constant 0 : index
      %170 = vector.load %arg1[%c0_103, %169, %c2_104, %c1_105, %c0_106] : memref<1x10x10x10x256xf32, #tpu.memory_space<vmem>>, vector<1x1x8x8x256xf32>
      %171 = vector.shape_cast %170 : vector<1x1x8x8x256xf32> to vector<8x8x256xf32>
      %172 = vector.shape_cast %167 : vector<256xf32> to vector<1x1x256xf32>
      %173 = vector.broadcast %172 : vector<1x1x256xf32> to vector<8x8x256xf32>
      %174 = arith.mulf %171, %173 : vector<8x8x256xf32>
      %175 = arith.addf %165, %174 : vector<8x8x256xf32>
      %c17 = arith.constant 17 : index
      %c0_107 = arith.constant 0 : index
      %176 = vector.load %arg2[%c17, %c0_107] : memref<27x256xf32, #tpu.memory_space<vmem>>, vector<1x256xf32>
      %177 = vector.shape_cast %176 : vector<1x256xf32> to vector<256xf32>
      %c1_i32_108 = arith.constant 1 : i32
      %178 = arith.addi %4, %c1_i32_108 : i32
      %c0_109 = arith.constant 0 : index
      %179 = arith.index_cast %178 : i32 to index
      %c2_110 = arith.constant 2 : index
      %c2_111 = arith.constant 2 : index
      %c0_112 = arith.constant 0 : index
      %180 = vector.load %arg1[%c0_109, %179, %c2_110, %c2_111, %c0_112] : memref<1x10x10x10x256xf32, #tpu.memory_space<vmem>>, vector<1x1x8x8x256xf32>
      %181 = vector.shape_cast %180 : vector<1x1x8x8x256xf32> to vector<8x8x256xf32>
      %182 = vector.shape_cast %177 : vector<256xf32> to vector<1x1x256xf32>
      %183 = vector.broadcast %182 : vector<1x1x256xf32> to vector<8x8x256xf32>
      %184 = arith.mulf %181, %183 : vector<8x8x256xf32>
      %185 = arith.addf %175, %184 : vector<8x8x256xf32>
      %c18 = arith.constant 18 : index
      %c0_113 = arith.constant 0 : index
      %186 = vector.load %arg2[%c18, %c0_113] : memref<27x256xf32, #tpu.memory_space<vmem>>, vector<1x256xf32>
      %187 = vector.shape_cast %186 : vector<1x256xf32> to vector<256xf32>
      %c2_i32 = arith.constant 2 : i32
      %188 = arith.addi %4, %c2_i32 : i32
      %c0_114 = arith.constant 0 : index
      %189 = arith.index_cast %188 : i32 to index
      %c0_115 = arith.constant 0 : index
      %c0_116 = arith.constant 0 : index
      %c0_117 = arith.constant 0 : index
      %190 = vector.load %arg1[%c0_114, %189, %c0_115, %c0_116, %c0_117] : memref<1x10x10x10x256xf32, #tpu.memory_space<vmem>>, vector<1x1x8x8x256xf32>
      %191 = vector.shape_cast %190 : vector<1x1x8x8x256xf32> to vector<8x8x256xf32>
      %192 = vector.shape_cast %187 : vector<256xf32> to vector<1x1x256xf32>
      %193 = vector.broadcast %192 : vector<1x1x256xf32> to vector<8x8x256xf32>
      %194 = arith.mulf %191, %193 : vector<8x8x256xf32>
      %195 = arith.addf %185, %194 : vector<8x8x256xf32>
      %c19 = arith.constant 19 : index
      %c0_118 = arith.constant 0 : index
      %196 = vector.load %arg2[%c19, %c0_118] : memref<27x256xf32, #tpu.memory_space<vmem>>, vector<1x256xf32>
      %197 = vector.shape_cast %196 : vector<1x256xf32> to vector<256xf32>
      %c2_i32_119 = arith.constant 2 : i32
      %198 = arith.addi %4, %c2_i32_119 : i32
      %c0_120 = arith.constant 0 : index
      %199 = arith.index_cast %198 : i32 to index
      %c0_121 = arith.constant 0 : index
      %c1_122 = arith.constant 1 : index
      %c0_123 = arith.constant 0 : index
      %200 = vector.load %arg1[%c0_120, %199, %c0_121, %c1_122, %c0_123] : memref<1x10x10x10x256xf32, #tpu.memory_space<vmem>>, vector<1x1x8x8x256xf32>
      %201 = vector.shape_cast %200 : vector<1x1x8x8x256xf32> to vector<8x8x256xf32>
      %202 = vector.shape_cast %197 : vector<256xf32> to vector<1x1x256xf32>
      %203 = vector.broadcast %202 : vector<1x1x256xf32> to vector<8x8x256xf32>
      %204 = arith.mulf %201, %203 : vector<8x8x256xf32>
      %205 = arith.addf %195, %204 : vector<8x8x256xf32>
      %c20 = arith.constant 20 : index
      %c0_124 = arith.constant 0 : index
      %206 = vector.load %arg2[%c20, %c0_124] : memref<27x256xf32, #tpu.memory_space<vmem>>, vector<1x256xf32>
      %207 = vector.shape_cast %206 : vector<1x256xf32> to vector<256xf32>
      %c2_i32_125 = arith.constant 2 : i32
      %208 = arith.addi %4, %c2_i32_125 : i32
      %c0_126 = arith.constant 0 : index
      %209 = arith.index_cast %208 : i32 to index
      %c0_127 = arith.constant 0 : index
      %c2_128 = arith.constant 2 : index
      %c0_129 = arith.constant 0 : index
      %210 = vector.load %arg1[%c0_126, %209, %c0_127, %c2_128, %c0_129] : memref<1x10x10x10x256xf32, #tpu.memory_space<vmem>>, vector<1x1x8x8x256xf32>
      %211 = vector.shape_cast %210 : vector<1x1x8x8x256xf32> to vector<8x8x256xf32>
      %212 = vector.shape_cast %207 : vector<256xf32> to vector<1x1x256xf32>
      %213 = vector.broadcast %212 : vector<1x1x256xf32> to vector<8x8x256xf32>
      %214 = arith.mulf %211, %213 : vector<8x8x256xf32>
      %215 = arith.addf %205, %214 : vector<8x8x256xf32>
      %c21 = arith.constant 21 : index
      %c0_130 = arith.constant 0 : index
      %216 = vector.load %arg2[%c21, %c0_130] : memref<27x256xf32, #tpu.memory_space<vmem>>, vector<1x256xf32>
      %217 = vector.shape_cast %216 : vector<1x256xf32> to vector<256xf32>
      %c2_i32_131 = arith.constant 2 : i32
      %218 = arith.addi %4, %c2_i32_131 : i32
      %c0_132 = arith.constant 0 : index
      %219 = arith.index_cast %218 : i32 to index
      %c1_133 = arith.constant 1 : index
      %c0_134 = arith.constant 0 : index
      %c0_135 = arith.constant 0 : index
      %220 = vector.load %arg1[%c0_132, %219, %c1_133, %c0_134, %c0_135] : memref<1x10x10x10x256xf32, #tpu.memory_space<vmem>>, vector<1x1x8x8x256xf32>
      %221 = vector.shape_cast %220 : vector<1x1x8x8x256xf32> to vector<8x8x256xf32>
      %222 = vector.shape_cast %217 : vector<256xf32> to vector<1x1x256xf32>
      %223 = vector.broadcast %222 : vector<1x1x256xf32> to vector<8x8x256xf32>
      %224 = arith.mulf %221, %223 : vector<8x8x256xf32>
      %225 = arith.addf %215, %224 : vector<8x8x256xf32>
      %c22 = arith.constant 22 : index
      %c0_136 = arith.constant 0 : index
      %226 = vector.load %arg2[%c22, %c0_136] : memref<27x256xf32, #tpu.memory_space<vmem>>, vector<1x256xf32>
      %227 = vector.shape_cast %226 : vector<1x256xf32> to vector<256xf32>
      %c2_i32_137 = arith.constant 2 : i32
      %228 = arith.addi %4, %c2_i32_137 : i32
      %c0_138 = arith.constant 0 : index
      %229 = arith.index_cast %228 : i32 to index
      %c1_139 = arith.constant 1 : index
      %c1_140 = arith.constant 1 : index
      %c0_141 = arith.constant 0 : index
      %230 = vector.load %arg1[%c0_138, %229, %c1_139, %c1_140, %c0_141] : memref<1x10x10x10x256xf32, #tpu.memory_space<vmem>>, vector<1x1x8x8x256xf32>
      %231 = vector.shape_cast %230 : vector<1x1x8x8x256xf32> to vector<8x8x256xf32>
      %232 = vector.shape_cast %227 : vector<256xf32> to vector<1x1x256xf32>
      %233 = vector.broadcast %232 : vector<1x1x256xf32> to vector<8x8x256xf32>
      %234 = arith.mulf %231, %233 : vector<8x8x256xf32>
      %235 = arith.addf %225, %234 : vector<8x8x256xf32>
      %c23 = arith.constant 23 : index
      %c0_142 = arith.constant 0 : index
      %236 = vector.load %arg2[%c23, %c0_142] : memref<27x256xf32, #tpu.memory_space<vmem>>, vector<1x256xf32>
      %237 = vector.shape_cast %236 : vector<1x256xf32> to vector<256xf32>
      %c2_i32_143 = arith.constant 2 : i32
      %238 = arith.addi %4, %c2_i32_143 : i32
      %c0_144 = arith.constant 0 : index
      %239 = arith.index_cast %238 : i32 to index
      %c1_145 = arith.constant 1 : index
      %c2_146 = arith.constant 2 : index
      %c0_147 = arith.constant 0 : index
      %240 = vector.load %arg1[%c0_144, %239, %c1_145, %c2_146, %c0_147] : memref<1x10x10x10x256xf32, #tpu.memory_space<vmem>>, vector<1x1x8x8x256xf32>
      %241 = vector.shape_cast %240 : vector<1x1x8x8x256xf32> to vector<8x8x256xf32>
      %242 = vector.shape_cast %237 : vector<256xf32> to vector<1x1x256xf32>
      %243 = vector.broadcast %242 : vector<1x1x256xf32> to vector<8x8x256xf32>
      %244 = arith.mulf %241, %243 : vector<8x8x256xf32>
      %245 = arith.addf %235, %244 : vector<8x8x256xf32>
      %c24 = arith.constant 24 : index
      %c0_148 = arith.constant 0 : index
      %246 = vector.load %arg2[%c24, %c0_148] : memref<27x256xf32, #tpu.memory_space<vmem>>, vector<1x256xf32>
      %247 = vector.shape_cast %246 : vector<1x256xf32> to vector<256xf32>
      %c2_i32_149 = arith.constant 2 : i32
      %248 = arith.addi %4, %c2_i32_149 : i32
      %c0_150 = arith.constant 0 : index
      %249 = arith.index_cast %248 : i32 to index
      %c2_151 = arith.constant 2 : index
      %c0_152 = arith.constant 0 : index
      %c0_153 = arith.constant 0 : index
      %250 = vector.load %arg1[%c0_150, %249, %c2_151, %c0_152, %c0_153] : memref<1x10x10x10x256xf32, #tpu.memory_space<vmem>>, vector<1x1x8x8x256xf32>
      %251 = vector.shape_cast %250 : vector<1x1x8x8x256xf32> to vector<8x8x256xf32>
      %252 = vector.shape_cast %247 : vector<256xf32> to vector<1x1x256xf32>
      %253 = vector.broadcast %252 : vector<1x1x256xf32> to vector<8x8x256xf32>
      %254 = arith.mulf %251, %253 : vector<8x8x256xf32>
      %255 = arith.addf %245, %254 : vector<8x8x256xf32>
      %c25 = arith.constant 25 : index
      %c0_154 = arith.constant 0 : index
      %256 = vector.load %arg2[%c25, %c0_154] : memref<27x256xf32, #tpu.memory_space<vmem>>, vector<1x256xf32>
      %257 = vector.shape_cast %256 : vector<1x256xf32> to vector<256xf32>
      %c2_i32_155 = arith.constant 2 : i32
      %258 = arith.addi %4, %c2_i32_155 : i32
      %c0_156 = arith.constant 0 : index
      %259 = arith.index_cast %258 : i32 to index
      %c2_157 = arith.constant 2 : index
      %c1_158 = arith.constant 1 : index
      %c0_159 = arith.constant 0 : index
      %260 = vector.load %arg1[%c0_156, %259, %c2_157, %c1_158, %c0_159] : memref<1x10x10x10x256xf32, #tpu.memory_space<vmem>>, vector<1x1x8x8x256xf32>
      %261 = vector.shape_cast %260 : vector<1x1x8x8x256xf32> to vector<8x8x256xf32>
      %262 = vector.shape_cast %257 : vector<256xf32> to vector<1x1x256xf32>
      %263 = vector.broadcast %262 : vector<1x1x256xf32> to vector<8x8x256xf32>
      %264 = arith.mulf %261, %263 : vector<8x8x256xf32>
      %265 = arith.addf %255, %264 : vector<8x8x256xf32>
      %c26 = arith.constant 26 : index
      %c0_160 = arith.constant 0 : index
      %266 = vector.load %arg2[%c26, %c0_160] : memref<27x256xf32, #tpu.memory_space<vmem>>, vector<1x256xf32>
      %267 = vector.shape_cast %266 : vector<1x256xf32> to vector<256xf32>
      %c2_i32_161 = arith.constant 2 : i32
      %268 = arith.addi %4, %c2_i32_161 : i32
      %c0_162 = arith.constant 0 : index
      %269 = arith.index_cast %268 : i32 to index
      %c2_163 = arith.constant 2 : index
      %c2_164 = arith.constant 2 : index
      %c0_165 = arith.constant 0 : index
      %270 = vector.load %arg1[%c0_162, %269, %c2_163, %c2_164, %c0_165] : memref<1x10x10x10x256xf32, #tpu.memory_space<vmem>>, vector<1x1x8x8x256xf32>
      %271 = vector.shape_cast %270 : vector<1x1x8x8x256xf32> to vector<8x8x256xf32>
      %272 = vector.shape_cast %267 : vector<256xf32> to vector<1x1x256xf32>
      %273 = vector.broadcast %272 : vector<1x1x256xf32> to vector<8x8x256xf32>
      %274 = arith.mulf %271, %273 : vector<8x8x256xf32>
      %275 = arith.addf %265, %274 : vector<8x8x256xf32>
      %c1_i32_166 = arith.constant 1 : i32
      %276 = arith.addi %4, %c1_i32_166 : i32
      %c0_167 = arith.constant 0 : index
      %277 = arith.index_cast %276 : i32 to index
      %c1_168 = arith.constant 1 : index
      %c1_169 = arith.constant 1 : index
      %c0_170 = arith.constant 0 : index
      %278 = vector.load %arg1[%c0_167, %277, %c1_168, %c1_169, %c0_170] : memref<1x10x10x10x256xf32, #tpu.memory_space<vmem>>, vector<1x1x8x8x256xf32>
      %279 = vector.shape_cast %278 : vector<1x1x8x8x256xf32> to vector<8x8x256xf32>
      %280 = arith.addf %279, %275 : vector<8x8x256xf32>
      %281 = vector.shape_cast %1 : vector<256xf32> to vector<1x1x256xf32>
      %282 = vector.broadcast %281 : vector<1x1x256xf32> to vector<8x8x256xf32>
      %283 = arith.addf %280, %282 : vector<8x8x256xf32>
      %cst_171 = arith.constant 5.000000e-01 : f32
      %284 = vector.broadcast %cst_171 : f32 to vector<8x8x256xf32>
      %285 = arith.mulf %284, %283 : vector<8x8x256xf32>
      %cst_172 = arith.constant 0.707106769 : f32
      %286 = vector.broadcast %cst_172 : f32 to vector<8x8x256xf32>
      %287 = arith.mulf %283, %286 : vector<8x8x256xf32>
      %288 = math.erf %287 : vector<8x8x256xf32>
      %cst_173 = arith.constant 1.000000e+00 : f32
      %289 = vector.broadcast %cst_173 : f32 to vector<8x8x256xf32>
      %290 = arith.addf %289, %288 : vector<8x8x256xf32>
      %291 = arith.mulf %285, %290 : vector<8x8x256xf32>
      %c0_174 = arith.constant 0 : index
      %292 = arith.index_cast %4 : i32 to index
      %c0_175 = arith.constant 0 : index
      %c0_176 = arith.constant 0 : index
      %c0_177 = arith.constant 0 : index
      %293 = vector.load %arg4[%c0_174, %292, %c0_175, %c0_176, %c0_177] : memref<1x8x8x8x256xf32, #tpu.memory_space<vmem>>, vector<1x1x8x8x256xf32>
      %294 = vector.shape_cast %293 : vector<1x1x8x8x256xf32> to vector<8x8x256xf32>
      %295 = vector.shape_cast %291 : vector<8x8x256xf32> to vector<1x1x8x8x256xf32>
      tpu.vector_store %arg4[%c0_174, %292, %c0_175, %c0_176, %c0_177], %295 {strides = array<i32>} : memref<1x8x8x8x256xf32, #tpu.memory_space<vmem>>, vector<1x1x8x8x256xf32>,
    }
    %c8_i32_1 = arith.constant 8 : i32
    return
  }
  func.func @transform_0(%arg0: i32) -> (i32, i32, i32, i32, i32) {
    %c0_i32 = arith.constant 0 : i32
    %c0_i32_0 = arith.constant 0 : i32
    %c0_i32_1 = arith.constant 0 : i32
    %c0_i32_2 = arith.constant 0 : i32
    %c0_i32_3 = arith.constant 0 : i32
    return %arg0, %c0_i32, %c0_i32_0, %c0_i32_1, %c0_i32_2 : i32, i32, i32, i32, i32
  }
  func.func @transform_1(%arg0: i32) -> (i32, i32) {
    %c0_i32 = arith.constant 0 : i32
    %c0_i32_0 = arith.constant 0 : i32
    %c0_i32_1 = arith.constant 0 : i32
    return %c0_i32, %c0_i32_0 : i32, i32
  }
  func.func @transform_2(%arg0: i32) -> (i32, i32) {
    %c0_i32 = arith.constant 0 : i32
    %c0_i32_0 = arith.constant 0 : i32
    %c0_i32_1 = arith.constant 0 : i32
    return %c0_i32, %c0_i32_0 : i32, i32
  }
  func.func @transform_3(%arg0: i32) -> (i32, i32, i32, i32, i32) {
    %c0_i32 = arith.constant 0 : i32
    %c0_i32_0 = arith.constant 0 : i32
    %c0_i32_1 = arith.constant 0 : i32
    %c0_i32_2 = arith.constant 0 : i32
    %c0_i32_3 = arith.constant 0 : i32
    return %arg0, %c0_i32, %c0_i32_0, %c0_i32_1, %c0_i32_2 : i32, i32, i32, i32, i32
  }
}

module attributes {stable_mosaic.version = 11 : i64} {
  func.func @_linear_kernel(%arg0: i32, %arg1: i32, %arg2: memref<512x64xf32, #tpu.memory_space<vmem>>, %arg3: memref<64x256xbf16, #tpu.memory_space<vmem>>, %arg4: memref<1x256xf32, #tpu.memory_space<vmem>>, %arg5: memref<512x256xf32, #tpu.memory_space<vmem>>) attributes {dimension_semantics = [#tpu.dimension_semantics<parallel>, #tpu.dimension_semantics<parallel>], iteration_bounds = array<i64: 2, 1>, scalar_prefetch = 0 : i64, scratch_operands = 0 : i64, tpu.core_type = #tpu.core_type<tc>, window_params = [{transform_indices = @transform_0, window_bounds = array<i64: 512, 64>}, {transform_indices = @transform_1, window_bounds = array<i64: 64, 256>}, {transform_indices = @transform_2, window_bounds = array<i64: 1, 256>}, {transform_indices = @transform_3, window_bounds = array<i64: 512, 256>}]} {
    %c0 = arith.constant 0 : index
    %c0_0 = arith.constant 0 : index
    %0 = vector.load %arg2[%c0, %c0_0] : memref<512x64xf32, #tpu.memory_space<vmem>>, vector<512x64xf32>
    %1 = arith.truncf %0 : vector<512x64xf32> to vector<512x64xbf16>
    %c0_1 = arith.constant 0 : index
    %c0_2 = arith.constant 0 : index
    %2 = vector.load %arg3[%c0_1, %c0_2] : memref<64x256xbf16, #tpu.memory_space<vmem>>, vector<64x256xbf16>
    %cst = arith.constant dense<0.000000e+00> : vector<512x256xf32>
    %3 = tpu.matmul %1, %2, %cst {dimension_numbers = #tpu.dot_dimension_numbers<[1], [0], [0], [1], [0, 0, 1, 1], [], []>} : vector<512x64xbf16>, vector<64x256xbf16>, vector<512x256xf32> -> vector<512x256xf32>
    %c0_3 = arith.constant 0 : index
    %c0_4 = arith.constant 0 : index
    %4 = vector.load %arg4[%c0_3, %c0_4] : memref<1x256xf32, #tpu.memory_space<vmem>>, vector<1x256xf32>
    %5 = vector.broadcast %4 : vector<1x256xf32> to vector<512x256xf32>
    %6 = arith.addf %3, %5 : vector<512x256xf32>
    %c0_5 = arith.constant 0 : index
    %c0_6 = arith.constant 0 : index
    %7 = vector.load %arg5[%c0_5, %c0_6] : memref<512x256xf32, #tpu.memory_space<vmem>>, vector<512x256xf32>
    tpu.vector_store %arg5[%c0_5, %c0_6], %6 {strides = array<i32>} : memref<512x256xf32, #tpu.memory_space<vmem>>, vector<512x256xf32>,
    return
  }
  func.func @transform_0(%arg0: i32, %arg1: i32) -> (i32, i32) {
    %c0_i32 = arith.constant 0 : i32
    %c0_i32_0 = arith.constant 0 : i32
    return %arg0, %c0_i32 : i32, i32
  }
  func.func @transform_1(%arg0: i32, %arg1: i32) -> (i32, i32) {
    %c0_i32 = arith.constant 0 : i32
    %c0_i32_0 = arith.constant 0 : i32
    return %c0_i32, %arg1 : i32, i32
  }
  func.func @transform_2(%arg0: i32, %arg1: i32) -> (i32, i32) {
    %c0_i32 = arith.constant 0 : i32
    %c0_i32_0 = arith.constant 0 : i32
    return %c0_i32, %arg1 : i32, i32
  }
  func.func @transform_3(%arg0: i32, %arg1: i32) -> (i32, i32) {
    %c0_i32 = arith.constant 0 : i32
    return %arg0, %arg1 : i32, i32
  }
}

module attributes {stable_mosaic.version = 11 : i64} {
  func.func @_linear_kernel(%arg0: i32, %arg1: i32, %arg2: memref<512x256xf32, #tpu.memory_space<vmem>>, %arg3: memref<256x64xbf16, #tpu.memory_space<vmem>>, %arg4: memref<1x64xf32, #tpu.memory_space<vmem>>, %arg5: memref<512x64xf32, #tpu.memory_space<vmem>>) attributes {dimension_semantics = [#tpu.dimension_semantics<parallel>, #tpu.dimension_semantics<parallel>], iteration_bounds = array<i64: 2, 1>, scalar_prefetch = 0 : i64, scratch_operands = 0 : i64, tpu.core_type = #tpu.core_type<tc>, window_params = [{transform_indices = @transform_0, window_bounds = array<i64: 512, 256>}, {transform_indices = @transform_1, window_bounds = array<i64: 256, 64>}, {transform_indices = @transform_2, window_bounds = array<i64: 1, 64>}, {transform_indices = @transform_3, window_bounds = array<i64: 512, 64>}]} {
    %c0 = arith.constant 0 : index
    %c0_0 = arith.constant 0 : index
    %0 = vector.load %arg2[%c0, %c0_0] : memref<512x256xf32, #tpu.memory_space<vmem>>, vector<512x256xf32>
    %1 = arith.truncf %0 : vector<512x256xf32> to vector<512x256xbf16>
    %c0_1 = arith.constant 0 : index
    %c0_2 = arith.constant 0 : index
    %2 = vector.load %arg3[%c0_1, %c0_2] : memref<256x64xbf16, #tpu.memory_space<vmem>>, vector<256x64xbf16>
    %cst = arith.constant dense<0.000000e+00> : vector<512x64xf32>
    %3 = tpu.matmul %1, %2, %cst {dimension_numbers = #tpu.dot_dimension_numbers<[1], [0], [0], [1], [0, 0, 1, 1], [], []>} : vector<512x256xbf16>, vector<256x64xbf16>, vector<512x64xf32> -> vector<512x64xf32>
    %c0_3 = arith.constant 0 : index
    %c0_4 = arith.constant 0 : index
    %4 = vector.load %arg4[%c0_3, %c0_4] : memref<1x64xf32, #tpu.memory_space<vmem>>, vector<1x64xf32>
    %5 = vector.broadcast %4 : vector<1x64xf32> to vector<512x64xf32>
    %6 = arith.addf %3, %5 : vector<512x64xf32>
    %c0_5 = arith.constant 0 : index
    %c0_6 = arith.constant 0 : index
    %7 = vector.load %arg5[%c0_5, %c0_6] : memref<512x64xf32, #tpu.memory_space<vmem>>, vector<512x64xf32>
    tpu.vector_store %arg5[%c0_5, %c0_6], %6 {strides = array<i32>} : memref<512x64xf32, #tpu.memory_space<vmem>>, vector<512x64xf32>,
    return
  }
  func.func @transform_0(%arg0: i32, %arg1: i32) -> (i32, i32) {
    %c0_i32 = arith.constant 0 : i32
    %c0_i32_0 = arith.constant 0 : i32
    return %arg0, %c0_i32 : i32, i32
  }
  func.func @transform_1(%arg0: i32, %arg1: i32) -> (i32, i32) {
    %c0_i32 = arith.constant 0 : i32
    %c0_i32_0 = arith.constant 0 : i32
    return %c0_i32, %arg1 : i32, i32
  }
  func.func @transform_2(%arg0: i32, %arg1: i32) -> (i32, i32) {
    %c0_i32 = arith.constant 0 : i32
    %c0_i32_0 = arith.constant 0 : i32
    return %c0_i32, %arg1 : i32, i32
  }
  func.func @transform_3(%arg0: i32, %arg1: i32) -> (i32, i32) {
    %c0_i32 = arith.constant 0 : i32
    return %arg0, %arg1 : i32, i32
  }
}

</mosaic_0001>

<llo_original>
// kernel: mlp_forward.3
$region0: #{mlp_forward.3}
  #allocation0 [shape = 'u32[]', space=smem, size = 0x4, offset = 0x4, fixed_abs, tag = 'smem constant byte address 0x4 - core index']
  #allocation1 [shape = 'u32[144,128]{1,0:T(1,128)}', space=vmem, size = 0x12000, scoped, tag = 'internal scratch']
  %s0 = inlined_call_operand.vmem [shape: f32[1024,64], index: 0, kind: input, shape index: {}]
  %s1 = inlined_call_operand.hbm [shape: bf16[64,256], index: 1, kind: input, shape index: {}]
  %s2 = inlined_call_operand.hbm [shape: f32[1,256], index: 2, kind: input, shape index: {}]
  %s3 = inlined_call_operand.vmem [shape: f32[1024,256], index: 3, kind: output, shape index: {}]
  %s4 = sld [smem:[#allocation0]]
  $region53: #{mlp_forward.3} parent=0
    _
  %s6 = ssub.s32 1, %s4
  %s7 = scalar_select 0, %s6, %s4
  $region1: #{mlp_forward.3} parent=0
    #allocation2 [shape = 'u8[32768]{0}', space=vmem, size = 0x8000, scoped, tag = 'input window, operand 1, single buffered']
    #allocation3 [shape = 's32[2]{0}', space=sflag, size = 0x8, scoped, tag = 'scoped memory for mlp_forward.3']
    #allocation4 [shape = 'u8[1024]{0}', space=vmem, size = 0x400, scoped, tag = 'input window, operand 2, single buffered']
    #allocation5 [shape = 's32[1]{0}', space=sflag, size = 0x4, scoped, tag = 'scoped memory for mlp_forward.3']
    %8 = vsyncpa [#allocation3], 0
    %9 = vsyncpa [#allocation5], 0
    loop: start=0, step=1, limit=4
    $region2: #{mlp_forward.3} parent=1 // loop_pre_header
      _
    $region3: #{mlp_forward.3} parent=1 // loop_header
      %s11 = sphi 0, %s15
      %p12 = scmp.ge.s32.totalorder %s11, 4
      %s18 = sphi 0, %s30
      %s19 = sphi 0, %s26
      %s20 = sphi 0, %s18
      %s21 = sphi 0, %s19
      %s22 = sphi 0, %s20
      %s23 = sphi 0, %s21
      %s33 = sphi 0, %s35
      %s36 = sphi 0, %s33
      %s37 = sphi 0, %s36
      %s53 = sphi 0, %s37
      %s59 = sphi 0, %s61
      %s62 = sphi 0, %s59
      %s63 = sphi 0, %s62
      %s79 = sphi 0, %s63
      %s85 = sphi 0, %s87
      %s88 = sphi 0, %s85
      %s89 = sphi 0, %s88
      %s105 = sphi 0, %s89
      %s113 = sphi 0, %s115
      %s116 = sphi 0, %s113
      %s117 = sphi 0, %s116
      %s133 = sphi 0, %s117
    $region4: #{mlp_forward.3} parent=1 // loop_header_branch
      %14 = sbr.rel (%p12) target = $region8
    $region5: #{mlp_forward.3} parent=1 // loop_body
      %s16 = ssub.s32 %s11, 1
      %s17 = ssub.s32 %s11, 2
      %s24 = sadd.s32 1, %s19
      %p25 = scmp.ge.s32.totalorder %s24, 1
      %s26 = scalar_select %p25, 0, %s24
      %s27 = sadd.s32 1, %s18
      %s28 = scalar_select %p25, %s27, %s18
      %p29 = scmp.ge.s32.totalorder %s28, 2
      %s30 = scalar_select %p29, 0, %s28
      %s31 = ssub.s32 %s18, %s30
      %p32 = scmp.eq.s32.totalorder %s31, 0
      %s34 = sadd.s32 %s33, 1
      %s35 = scalar_select %p32, %s33, %s34
      %p38 = pneg %p32
      %p39 = scmp.eq.s32.totalorder %s11, 1
      %p40 = por %p38, %p39
      %p41 = scmp.ne.s32.totalorder %s33, %s36
      %p42 = scmp.eq.s32.totalorder %s11, 0
      %p43 = por %p41, %p42
      %p44 = scmp.ne.s32.totalorder %s33, %s36
      %p45 = scmp.eq.s32.totalorder %s16, 1
      %p46 = por %p44, %p45
      %p47 = scmp.ne.s32.totalorder %s36, %s37
      %p48 = scmp.eq.s32.totalorder %s16, 0
      %p49 = por %p47, %p48
      %p50 = scmp.ne.s32.totalorder %s36, %s37
      %p51 = scmp.eq.s32.totalorder %s17, 1
      %p52 = por %p50, %p51
      %p54 = scmp.ne.s32.totalorder %s37, %s53
      %p55 = scmp.eq.s32.totalorder %s17, 0
      %p56 = por %p54, %p55
      %s57 = ssub.s32 %s19, %s26
      %p58 = scmp.eq.s32.totalorder %s57, 0
      %s60 = sadd.s32 %s59, 1
      %s61 = scalar_select %p58, %s59, %s60
      %p64 = pneg %p58
      %p65 = scmp.eq.s32.totalorder %s11, 1
      %p66 = por %p64, %p65
      %p67 = scmp.ne.s32.totalorder %s59, %s62
      %p68 = scmp.eq.s32.totalorder %s11, 0
      %p69 = por %p67, %p68
      %p70 = scmp.ne.s32.totalorder %s59, %s62
      %p71 = scmp.eq.s32.totalorder %s16, 1
      %p72 = por %p70, %p71
      %p73 = scmp.ne.s32.totalorder %s62, %s63
      %p74 = scmp.eq.s32.totalorder %s16, 0
      %p75 = por %p73, %p74
      %p76 = scmp.ne.s32.totalorder %s62, %s63
      %p77 = scmp.eq.s32.totalorder %s17, 1
      %p78 = por %p76, %p77
      %p80 = scmp.ne.s32.totalorder %s63, %s79
      %p81 = scmp.eq.s32.totalorder %s17, 0
      %p82 = por %p80, %p81
      %s83 = ssub.s32 %s19, %s26
      %p84 = scmp.eq.s32.totalorder %s83, 0
      %s86 = sadd.s32 %s85, 1
      %s87 = scalar_select %p84, %s85, %s86
      %p90 = pneg %p84
      %p91 = scmp.eq.s32.totalorder %s11, 1
      %p92 = por %p90, %p91
      %p93 = scmp.ne.s32.totalorder %s85, %s88
      %p94 = scmp.eq.s32.totalorder %s11, 0
      %p95 = por %p93, %p94
      %p96 = scmp.ne.s32.totalorder %s85, %s88
      %p97 = scmp.eq.s32.totalorder %s16, 1
      %p98 = por %p96, %p97
      %p99 = scmp.ne.s32.totalorder %s88, %s89
      %p100 = scmp.eq.s32.totalorder %s16, 0
      %p101 = por %p99, %p100
      %p102 = scmp.ne.s32.totalorder %s88, %s89
      %p103 = scmp.eq.s32.totalorder %s17, 1
      %p104 = por %p102, %p103
      %p106 = scmp.ne.s32.totalorder %s89, %s105
      %p107 = scmp.eq.s32.totalorder %s17, 0
      %p108 = por %p106, %p107
      %s109 = ssub.s32 %s18, %s30
      %s110 = ssub.s32 %s19, %s26
      %s111 = sor.u32 %s109, %s110
      %p112 = scmp.eq.s32.totalorder %s111, 0
      %s114 = sadd.s32 %s113, 1
      %s115 = scalar_select %p112, %s113, %s114
      %p118 = pneg %p112
      %p119 = scmp.eq.s32.totalorder %s11, 1
      %p120 = por %p118, %p119
      %p121 = scmp.ne.s32.totalorder %s113, %s116
      %p122 = scmp.eq.s32.totalorder %s11, 0
      %p123 = por %p121, %p122
      %p124 = scmp.ne.s32.totalorder %s113, %s116
      %p125 = scmp.eq.s32.totalorder %s16, 1
      %p126 = por %p124, %p125
      %p127 = scmp.ne.s32.totalorder %s116, %s117
      %p128 = scmp.eq.s32.totalorder %s16, 0
      %p129 = por %p127, %p128
      %p130 = scmp.ne.s32.totalorder %s116, %s117
      %p131 = scmp.eq.s32.totalorder %s17, 1
      %p132 = por %p130, %p131
      %p134 = scmp.ne.s32.totalorder %s117, %s133
      %p135 = scmp.eq.s32.totalorder %s17, 0
      %p136 = por %p134, %p135
      %p137 = scmp.le.s32.totalorder 1, %s11
      %p138 = scmp.lt.s32.totalorder %s11, 3
      %p139 = pnand %p137, %p138
      %p140 = pneg %p139
      // Predicated region
      $region9: #{mlp_forward.3} parent=5 // pred_check
        _
      $region10: #{mlp_forward.3} parent=5 // pred_check_branch
        %142 = sbr.rel (%p139) target = $region12
      $region11: #{mlp_forward.3} parent=5 // pred_region
        %s143 = ssub.s32 %s11, 1
        // Predicated region
        $region13: #{mlp_forward.3} parent=11 // pred_check
          %p144 = pneg %p75
        $region14: #{mlp_forward.3} parent=11 // pred_check_branch
          %146 = sbr.rel (%p144) target = $region16
        $region15: #{mlp_forward.3} parent=11 // pred_region
          %s147 = smul.u32 2, %s21
          %s149 = ssub.s32 1024, 1024
          %150 = vsyncadd [#allocation3], %s149
          %s151 = smul.addr %s147, 64
          %s152 = scalar_lea.hbm %s1, %s151
          %s153 = sshll.u32 [#allocation2], 4
          %s154 = int_to_ptr.vmem [resolvable:$true] %s153
          %159 = dma.hbm_to_vmem [thread:$0]  %s152, 1024, %s154, [#allocation3], 128, 128, 8
        $region16: #{mlp_forward.3} parent=11 // pred_fallthru
          _
        // Predicated region
        $region17: #{mlp_forward.3} parent=11 // pred_check
          %p160 = pneg %p101
        $region18: #{mlp_forward.3} parent=11 // pred_check_branch
          %162 = sbr.rel (%p160) target = $region20
        $region19: #{mlp_forward.3} parent=11 // pred_region
          %s163 = smul.u32 2, %s21
          %s165 = ssub.s32 32, 32
          %166 = vsyncadd [#allocation5], %s165
          %s167 = smul.addr %s163, 16
          %s168 = scalar_lea.hbm %s2, %s167
          %s170 = sshll.u32 [#allocation4], 4
          %s171 = int_to_ptr.vmem [resolvable:$true] %s170
          %173 = dma.hbm_to_vmem [thread:$0]  %s168, 32, %s171, [#allocation5]
        $region20: #{mlp_forward.3} parent=11 // pred_fallthru
          _
      $region12: #{mlp_forward.3} parent=5 // pred_fallthru
        _
      %p174 = scmp.lt.s32.totalorder %s11, 2
      // Predicated region
      $region21: #{mlp_forward.3} parent=5 // pred_check
        %p175 = pneg %p174
      $region22: #{mlp_forward.3} parent=5 // pred_check_branch
        %177 = sbr.rel (%p175) target = $region24
      $region23: #{mlp_forward.3} parent=5 // pred_region
        // Predicated region
        $region25: #{mlp_forward.3} parent=23 // pred_check
          %p178 = pneg %p43
        $region26: #{mlp_forward.3} parent=23 // pred_check_branch
          %180 = sbr.rel (%p178) target = $region28
        $region27: #{mlp_forward.3} parent=23 // pred_region
          %s181 = smul.u32 64, %s18
          %p182 = scmp.lt.s32.totalorder %s181, 127
          %s183 = scalar_select %p182, %s181, 127
          %s184 = smul.addr %s183, 8
          %s185 = scalar_lea.vmem %s0, %s184
          %s186 = smul.u32 64, %s18
        $region28: #{mlp_forward.3} parent=23 // pred_fallthru
          _
      $region24: #{mlp_forward.3} parent=5 // pred_fallthru
        _
      %p187 = scmp.le.s32.totalorder 1, %s11
      %p188 = scmp.lt.s32.totalorder %s11, 3
      %p189 = pnand %p187, %p188
      %p190 = pneg %p189
      // Predicated region
      $region29: #{mlp_forward.3} parent=5 // pred_check
        _
      $region30: #{mlp_forward.3} parent=5 // pred_check_branch
        %192 = sbr.rel (%p189) target = $region32
      $region31: #{mlp_forward.3} parent=5 // pred_region
        %s193 = ssub.s32 %s11, 1
        // Predicated region
        $region33: #{mlp_forward.3} parent=31 // pred_check
          %p194 = pneg %p75
        $region34: #{mlp_forward.3} parent=31 // pred_check_branch
          %196 = sbr.rel (%p194) target = $region36
        $region35: #{mlp_forward.3} parent=31 // pred_region
          %197 = dma.done [#allocation3], 1024
        $region36: #{mlp_forward.3} parent=31 // pred_fallthru
          _
        // Predicated region
        $region37: #{mlp_forward.3} parent=31 // pred_check
          %p198 = pneg %p101
        $region38: #{mlp_forward.3} parent=31 // pred_check_branch
          %200 = sbr.rel (%p198) target = $region40
        $region39: #{mlp_forward.3} parent=31 // pred_region
          %201 = dma.done [#allocation5], 32
        $region40: #{mlp_forward.3} parent=31 // pred_fallthru
          _
        %s202 = smul.u32 64, %s20
        %p203 = scmp.lt.s32.totalorder %s202, 127
        %s204 = scalar_select %p203, %s202, 127
        %s205 = smul.addr %s204, 8
        %s206 = scalar_lea.vmem %s0, %s205
        %p207 = pneg %p49
        %p208 = pneg %p46
        %p209 = pneg %p75
        %p210 = pneg %p72
        %p211 = pneg %p101
        %p212 = pneg %p98
        %p213 = pneg %p129
        %p214 = pneg %p126
        %s215 = smul.u32 64, %s20
        %s216 = smul.u32 2, %s21
        %p217 = scmp.lt.s32.totalorder %s215, 127
        %s218 = scalar_select %p217, %s215, 127
        %p219 = scmp.lt.s32.totalorder %s216, 1
        %s220 = scalar_select %p219, %s216, 1
        %s221 = smul.addr %s218, 2
        %s222 = sadd.s32 %s220, %s221
        %s223 = smul.addr %s222, 8
        %s224 = scalar_lea.vmem %s3, %s223
        %s225 = smul.u32 64, %s20
        %p226 = scmp.lt.s32.totalorder %s225, 127
        %s227 = scalar_select %p226, %s225, 127
        %s228 = smul.addr %s227, 8
        %s229 = scalar_lea.vmem %s0, %s228
        %s230 = smul.u32 64, %s20
        %s231 = smul.u32 2, %s21
        %s232 = smul.u32 2, %s21
        %s233 = smul.u32 64, %s20
        %s234 = smul.u32 2, %s21
        %p235 = scmp.lt.s32.totalorder %s233, 127
        %s236 = scalar_select %p235, %s233, 127
        %p237 = scmp.lt.s32.totalorder %s234, 1
        %s238 = scalar_select %p237, %s234, 1
        %s239 = smul.addr %s236, 2
        %s240 = sadd.s32 %s238, %s239
        %s241 = smul.addr %s240, 8
        %s242 = scalar_lea.vmem %s3, %s241
        %s243 = smul.u32 64, %s20
        %s244 = smul.u32 2, %s21
        %v246 = vld [vmem:[%s229] sm:$0xff]
        %v247 = vld [vmem:[%s229 + $0x8] sm:$0xff]
        %v248 = vld [vmem:[%s229 + $0x10] sm:$0xff]
        %v249 = vld [vmem:[%s229 + $0x18] sm:$0xff]
        %v250 = vld [vmem:[%s229 + $0x20] sm:$0xff]
        %v251 = vld [vmem:[%s229 + $0x28] sm:$0xff]
        %v252 = vld [vmem:[%s229 + $0x30] sm:$0xff]
        %v253 = vld [vmem:[%s229 + $0x38] sm:$0xff]
        %v254 = vld [vmem:[%s229 + $0x40] sm:$0xff]
        %v255 = vld [vmem:[%s229 + $0x48] sm:$0xff]
        %v256 = vld [vmem:[%s229 + $0x50] sm:$0xff]
        %v257 = vld [vmem:[%s229 + $0x58] sm:$0xff]
        %v258 = vld [vmem:[%s229 + $0x60] sm:$0xff]
        %v259 = vld [vmem:[%s229 + $0x68] sm:$0xff]
        %v260 = vld [vmem:[%s229 + $0x70] sm:$0xff]
        %v261 = vld [vmem:[%s229 + $0x78] sm:$0xff]
        %v262 = vld [vmem:[%s229 + $0x80] sm:$0xff]
        %v263 = vld [vmem:[%s229 + $0x88] sm:$0xff]
        %v264 = vld [vmem:[%s229 + $0x90] sm:$0xff]
        %v265 = vld [vmem:[%s229 + $0x98] sm:$0xff]
        %v266 = vld [vmem:[%s229 + $0xa0] sm:$0xff]
        %v267 = vld [vmem:[%s229 + $0xa8] sm:$0xff]
        %v268 = vld [vmem:[%s229 + $0xb0] sm:$0xff]
        %v269 = vld [vmem:[%s229 + $0xb8] sm:$0xff]
        %v270 = vld [vmem:[%s229 + $0xc0] sm:$0xff]
        %v271 = vld [vmem:[%s229 + $0xc8] sm:$0xff]
        %v272 = vld [vmem:[%s229 + $0xd0] sm:$0xff]
        %v273 = vld [vmem:[%s229 + $0xd8] sm:$0xff]
        %v274 = vld [vmem:[%s229 + $0xe0] sm:$0xff]
        %v275 = vld [vmem:[%s229 + $0xe8] sm:$0xff]
        %v276 = vld [vmem:[%s229 + $0xf0] sm:$0xff]
        %v277 = vld [vmem:[%s229 + $0xf8] sm:$0xff]
        %v278 = vld [vmem:[%s229 + $0x100] sm:$0xff]
        %v279 = vld [vmem:[%s229 + $0x108] sm:$0xff]
        %v280 = vld [vmem:[%s229 + $0x110] sm:$0xff]
        %v281 = vld [vmem:[%s229 + $0x118] sm:$0xff]
        %v282 = vld [vmem:[%s229 + $0x120] sm:$0xff]
        %v283 = vld [vmem:[%s229 + $0x128] sm:$0xff]
        %v284 = vld [vmem:[%s229 + $0x130] sm:$0xff]
        %v285 = vld [vmem:[%s229 + $0x138] sm:$0xff]
        %v286 = vld [vmem:[%s229 + $0x140] sm:$0xff]
        %v287 = vld [vmem:[%s229 + $0x148] sm:$0xff]
        %v288 = vld [vmem:[%s229 + $0x150] sm:$0xff]
        %v289 = vld [vmem:[%s229 + $0x158] sm:$0xff]
        %v290 = vld [vmem:[%s229 + $0x160] sm:$0xff]
        %v291 = vld [vmem:[%s229 + $0x168] sm:$0xff]
        %v292 = vld [vmem:[%s229 + $0x170] sm:$0xff]
        %v293 = vld [vmem:[%s229 + $0x178] sm:$0xff]
        %v294 = vld [vmem:[%s229 + $0x180] sm:$0xff]
        %v295 = vld [vmem:[%s229 + $0x188] sm:$0xff]
        %v296 = vld [vmem:[%s229 + $0x190] sm:$0xff]
        %v297 = vld [vmem:[%s229 + $0x198] sm:$0xff]
        %v298 = vld [vmem:[%s229 + $0x1a0] sm:$0xff]
        %v299 = vld [vmem:[%s229 + $0x1a8] sm:$0xff]
        %v300 = vld [vmem:[%s229 + $0x1b0] sm:$0xff]
        %v301 = vld [vmem:[%s229 + $0x1b8] sm:$0xff]
        %v302 = vld [vmem:[%s229 + $0x1c0] sm:$0xff]
        %v303 = vld [vmem:[%s229 + $0x1c8] sm:$0xff]
        %v304 = vld [vmem:[%s229 + $0x1d0] sm:$0xff]
        %v305 = vld [vmem:[%s229 + $0x1d8] sm:$0xff]
        %v306 = vld [vmem:[%s229 + $0x1e0] sm:$0xff]
        %v307 = vld [vmem:[%s229 + $0x1e8] sm:$0xff]
        %v308 = vld [vmem:[%s229 + $0x1f0] sm:$0xff]
        %v309 = vld [vmem:[%s229 + $0x1f8] sm:$0xff]
        %v310 = vpack.c.bf16 %v247, %v246
        %v311 = vpack.c.bf16 %v249, %v248
        %v312 = vpack.c.bf16 %v251, %v250
        %v313 = vpack.c.bf16 %v253, %v252
        %v314 = vpack.c.bf16 %v255, %v254
        %v315 = vpack.c.bf16 %v257, %v256
        %v316 = vpack.c.bf16 %v259, %v258
        %v317 = vpack.c.bf16 %v261, %v260
        %v318 = vpack.c.bf16 %v263, %v262
        %v319 = vpack.c.bf16 %v265, %v264
        %v320 = vpack.c.bf16 %v267, %v266
        %v321 = vpack.c.bf16 %v269, %v268
        %v322 = vpack.c.bf16 %v271, %v270
        %v323 = vpack.c.bf16 %v273, %v272
        %v324 = vpack.c.bf16 %v275, %v274
        %v325 = vpack.c.bf16 %v277, %v276
        %v326 = vpack.c.bf16 %v279, %v278
        %v327 = vpack.c.bf16 %v281, %v280
        %v328 = vpack.c.bf16 %v283, %v282
        %v329 = vpack.c.bf16 %v285, %v284
        %v330 = vpack.c.bf16 %v287, %v286
        %v331 = vpack.c.bf16 %v289, %v288
        %v332 = vpack.c.bf16 %v291, %v290
        %v333 = vpack.c.bf16 %v293, %v292
        %v334 = vpack.c.bf16 %v295, %v294
        %v335 = vpack.c.bf16 %v297, %v296
        %v336 = vpack.c.bf16 %v299, %v298
        %v337 = vpack.c.bf16 %v301, %v300
        %v338 = vpack.c.bf16 %v303, %v302
        %v339 = vpack.c.bf16 %v305, %v304
        %v340 = vpack.c.bf16 %v307, %v306
        %v341 = vpack.c.bf16 %v309, %v308
        %v342 = vld [vmem:[#allocation2] sm:$0xff]
        %v343 = vld [vmem:[#allocation2 + $0x8] sm:$0xff]
        %v344 = vld [vmem:[#allocation2 + $0x10] sm:$0xff]
        %v345 = vld [vmem:[#allocation2 + $0x18] sm:$0xff]
        %v346 = vld [vmem:[#allocation2 + $0x20] sm:$0xff]
        %v347 = vld [vmem:[#allocation2 + $0x28] sm:$0xff]
        %v348 = vld [vmem:[#allocation2 + $0x30] sm:$0xff]
        %v349 = vld [vmem:[#allocation2 + $0x38] sm:$0xff]
        %v350 = vld [vmem:[#allocation4] sm:$0x3]
        %v352 = vlaneseq
        %v353 = vshrl.u32 %v352, 7
        %v354 = vsub.s32 0, %v353
        %v355 = vrot.slane %v350, %v354
        %v356 = vlaneseq
        %v357 = vshrl.u32 %v356, 7
        %v358 = vsub.s32 1, %v357
        %v359 = vrot.slane %v350, %v358
        %v370 = vunpack.c.l.b16 %v342
        %v371 = vunpack.c.h.b16 %v342
        %v372 = vunpack.c.l.b16 %v343
        %v373 = vunpack.c.h.b16 %v343
        %v374 = vunpack.c.l.b16 %v344
        %v375 = vunpack.c.h.b16 %v344
        %v376 = vunpack.c.l.b16 %v345
        %v377 = vunpack.c.h.b16 %v345
        %v378 = vunpack.c.l.b16 %v346
        %v379 = vunpack.c.h.b16 %v346
        %v380 = vunpack.c.l.b16 %v347
        %v381 = vunpack.c.h.b16 %v347
        %v382 = vunpack.c.l.b16 %v348
        %v383 = vunpack.c.h.b16 %v348
        %v384 = vunpack.c.l.b16 %v349
        %v385 = vunpack.c.h.b16 %v349
        %v386 = vpack.c.b16 %v372, %v370
        %v387 = vpack.c.b16 %v373, %v371
        %v388 = vpack.c.b16 %v376, %v374
        %v389 = vpack.c.b16 %v377, %v375
        %v390 = vpack.c.b16 %v380, %v378
        %v391 = vpack.c.b16 %v381, %v379
        %v392 = vpack.c.b16 %v384, %v382
        %v393 = vpack.c.b16 %v385, %v383
        %vm402 = vcmask 523264
        %v404 = vsel %vm402, %v310, 0
        %v407 = vsel %vm402, %v311, 0
        %v410 = vsel %vm402, %v312, 0
        %v413 = vsel %vm402, %v313, 0
        %v416 = vsel %vm402, %v314, 0
        %v419 = vsel %vm402, %v315, 0
        %v422 = vsel %vm402, %v316, 0
        %v425 = vsel %vm402, %v317, 0
        %v428 = vsel %vm402, %v318, 0
        %v431 = vsel %vm402, %v319, 0
        %v434 = vsel %vm402, %v320, 0
        %v437 = vsel %vm402, %v321, 0
        %v440 = vsel %vm402, %v322, 0
        %v443 = vsel %vm402, %v323, 0
        %v446 = vsel %vm402, %v324, 0
        %v449 = vsel %vm402, %v325, 0
        %v452 = vsel %vm402, %v326, 0
        %v455 = vsel %vm402, %v327, 0
        %v458 = vsel %vm402, %v328, 0
        %v461 = vsel %vm402, %v329, 0
        %v464 = vsel %vm402, %v330, 0
        %v467 = vsel %vm402, %v331, 0
        %v470 = vsel %vm402, %v332, 0
        %v473 = vsel %vm402, %v333, 0
        %v476 = vsel %vm402, %v334, 0
        %v479 = vsel %vm402, %v335, 0
        %v482 = vsel %vm402, %v336, 0
        %v485 = vsel %vm402, %v337, 0
        %v488 = vsel %vm402, %v338, 0
        %v491 = vsel %vm402, %v339, 0
        %v494 = vsel %vm402, %v340, 0
        %v497 = vsel %vm402, %v341, 0
        %499 = vmatprep.subr.bf16.mxu0 %v387
        %500 = vmatpush1.bf16.msra.mxu0 %v386
        %501 = vmatprep.subr.bf16.mxu0 %v389
        %502 = vmatpush1.bf16.msra.mxu0 %v388
        %503 = vmatprep.subr.bf16.mxu0 %v391
        %504 = vmatpush1.bf16.msra.mxu0 %v390
        %505 = vmatprep.subr.bf16.mxu0 %v393
        %506 = vmatpush1.bf16.msra.mxu0 %v392
        %507 = vmatprep.subr.bf16.mxu0 0
        %508 = vmatpush1.bf16.msra.mxu0 0
        %509 = vmatprep.subr.bf16.mxu0 0
        %510 = vmatpush1.bf16.msra.mxu0 0
        %511 = vmatprep.subr.bf16.mxu0 0
        %512 = vmatpush1.bf16.msra.mxu0 0
        %513 = vmatprep.subr.bf16.mxu0 0
        %514 = vmatpush1.bf16.msra.mxu0 0
        %515 = vmatprep.subr.bf16.mxu0 0
        %516 = vmatpush1.bf16.msra.mxu0 0
        %517 = vmatprep.subr.bf16.mxu0 0
        %518 = vmatpush1.bf16.msra.mxu0 0
        %519 = vmatprep.subr.bf16.mxu0 0
        %520 = vmatpush1.bf16.msra.mxu0 0
        %521 = vmatprep.subr.bf16.mxu0 0
        %522 = vmatpush1.bf16.msra.mxu0 0
        %523 = vmatprep.subr.bf16.mxu0 0
        %524 = vmatpush1.bf16.msra.mxu0 0
        %525 = vmatprep.subr.bf16.mxu0 0
        %526 = vmatpush1.bf16.msra.mxu0 0
        %527 = vmatprep.subr.bf16.mxu0 0
        %528 = vmatpush1.bf16.msra.mxu0 0
        %529 = vmatprep.subr.bf16.mxu0 0
        %530 = vmatpush1.bf16.msra.mxu0 0
        %531 = vmatprep.mubr.bf16.mxu0 0
        %532 = vmatmul.mubr.bf16.gmra.mrb[0].mxu0 %v404
        %v533 = vpop.f32.mrb[0].mxu0
        %v534 = vadd.f32 %v355, %v533
        %v535 = vpop.f32.mrb[0].mxu0
        %v536 = vadd.f32 %v359, %v535
        %v537 = vpop.f32.mrb[0].mxu0
        %v538 = vadd.f32 %v355, %v537
        %v539 = vpop.f32.mrb[0].mxu0
        %v540 = vadd.f32 %v359, %v539
        %541 = vmatprep.mubr.bf16.mxu0 0
        %542 = vmatmul.mubr.bf16.gmra.mrb[0].mxu0 %v407
        %v543 = vpop.f32.mrb[0].mxu0
        %v544 = vadd.f32 %v355, %v543
        %v545 = vpop.f32.mrb[0].mxu0
        %v546 = vadd.f32 %v359, %v545
        %v547 = vpop.f32.mrb[0].mxu0
        %v548 = vadd.f32 %v355, %v547
        %v549 = vpop.f32.mrb[0].mxu0
        %v550 = vadd.f32 %v359, %v549
        %551 = vmatprep.mubr.bf16.mxu0 0
        %552 = vmatmul.mubr.bf16.gmra.mrb[0].mxu0 %v410
        %v553 = vpop.f32.mrb[0].mxu0
        %v554 = vadd.f32 %v355, %v553
        %v555 = vpop.f32.mrb[0].mxu0
        %v556 = vadd.f32 %v359, %v555
        %v557 = vpop.f32.mrb[0].mxu0
        %v558 = vadd.f32 %v355, %v557
        %v559 = vpop.f32.mrb[0].mxu0
        %v560 = vadd.f32 %v359, %v559
        %561 = vmatprep.mubr.bf16.mxu0 0
        %562 = vmatmul.mubr.bf16.gmra.mrb[0].mxu0 %v413
        %v563 = vpop.f32.mrb[0].mxu0
        %v564 = vadd.f32 %v355, %v563
        %v565 = vpop.f32.mrb[0].mxu0
        %v566 = vadd.f32 %v359, %v565
        %v567 = vpop.f32.mrb[0].mxu0
        %v568 = vadd.f32 %v355, %v567
        %v569 = vpop.f32.mrb[0].mxu0
        %v570 = vadd.f32 %v359, %v569
        %571 = vmatprep.mubr.bf16.mxu0 0
        %572 = vmatmul.mubr.bf16.gmra.mrb[0].mxu0 %v416
        %v573 = vpop.f32.mrb[0].mxu0
        %v574 = vadd.f32 %v355, %v573
        %v575 = vpop.f32.mrb[0].mxu0
        %v576 = vadd.f32 %v359, %v575
        %v577 = vpop.f32.mrb[0].mxu0
        %v578 = vadd.f32 %v355, %v577
        %v579 = vpop.f32.mrb[0].mxu0
        %v580 = vadd.f32 %v359, %v579
        %581 = vmatprep.mubr.bf16.mxu0 0
        %582 = vmatmul.mubr.bf16.gmra.mrb[0].mxu0 %v419
        %v583 = vpop.f32.mrb[0].mxu0
        %v584 = vadd.f32 %v355, %v583
        %v585 = vpop.f32.mrb[0].mxu0
        %v586 = vadd.f32 %v359, %v585
        %v587 = vpop.f32.mrb[0].mxu0
        %v588 = vadd.f32 %v355, %v587
        %v589 = vpop.f32.mrb[0].mxu0
        %v590 = vadd.f32 %v359, %v589
        %591 = vmatprep.mubr.bf16.mxu0 0
        %592 = vmatmul.mubr.bf16.gmra.mrb[0].mxu0 %v422
        %v593 = vpop.f32.mrb[0].mxu0
        %v594 = vadd.f32 %v355, %v593
        %v595 = vpop.f32.mrb[0].mxu0
        %v596 = vadd.f32 %v359, %v595
        %v597 = vpop.f32.mrb[0].mxu0
        %v598 = vadd.f32 %v355, %v597
        %v599 = vpop.f32.mrb[0].mxu0
        %v600 = vadd.f32 %v359, %v599
        %601 = vmatprep.mubr.bf16.mxu0 0
        %602 = vmatmul.mubr.bf16.gmra.mrb[0].mxu0 %v425
        %v603 = vpop.f32.mrb[0].mxu0
        %v604 = vadd.f32 %v355, %v603
        %v605 = vpop.f32.mrb[0].mxu0
        %v606 = vadd.f32 %v359, %v605
        %v607 = vpop.f32.mrb[0].mxu0
        %v608 = vadd.f32 %v355, %v607
        %v609 = vpop.f32.mrb[0].mxu0
        %v610 = vadd.f32 %v359, %v609
        %611 = vmatprep.mubr.bf16.mxu0 0
        %612 = vmatmul.mubr.bf16.gmra.mrb[0].mxu0 %v428
        %v613 = vpop.f32.mrb[0].mxu0
        %v614 = vadd.f32 %v355, %v613
        %v615 = vpop.f32.mrb[0].mxu0
        %v616 = vadd.f32 %v359, %v615
        %v617 = vpop.f32.mrb[0].mxu0
        %v618 = vadd.f32 %v355, %v617
        %v619 = vpop.f32.mrb[0].mxu0
        %v620 = vadd.f32 %v359, %v619
        %621 = vmatprep.mubr.bf16.mxu0 0
        %622 = vmatmul.mubr.bf16.gmra.mrb[0].mxu0 %v431
        %v623 = vpop.f32.mrb[0].mxu0
        %v624 = vadd.f32 %v355, %v623
        %v625 = vpop.f32.mrb[0].mxu0
        %v626 = vadd.f32 %v359, %v625
        %v627 = vpop.f32.mrb[0].mxu0
        %v628 = vadd.f32 %v355, %v627
        %v629 = vpop.f32.mrb[0].mxu0
        %v630 = vadd.f32 %v359, %v629
        %631 = vmatprep.mubr.bf16.mxu0 0
        %632 = vmatmul.mubr.bf16.gmra.mrb[0].mxu0 %v434
        %v633 = vpop.f32.mrb[0].mxu0
        %v634 = vadd.f32 %v355, %v633
        %v635 = vpop.f32.mrb[0].mxu0
        %v636 = vadd.f32 %v359, %v635
        %v637 = vpop.f32.mrb[0].mxu0
        %v638 = vadd.f32 %v355, %v637
        %v639 = vpop.f32.mrb[0].mxu0
        %v640 = vadd.f32 %v359, %v639
        %641 = vmatprep.mubr.bf16.mxu0 0
        %642 = vmatmul.mubr.bf16.gmra.mrb[0].mxu0 %v437
        %v643 = vpop.f32.mrb[0].mxu0
        %v644 = vadd.f32 %v355, %v643
        %v645 = vpop.f32.mrb[0].mxu0
        %v646 = vadd.f32 %v359, %v645
        %v647 = vpop.f32.mrb[0].mxu0
        %v648 = vadd.f32 %v355, %v647
        %v649 = vpop.f32.mrb[0].mxu0
        %v650 = vadd.f32 %v359, %v649
        %651 = vmatprep.mubr.bf16.mxu0 0
        %652 = vmatmul.mubr.bf16.gmra.mrb[0].mxu0 %v440
        %v653 = vpop.f32.mrb[0].mxu0
        %v654 = vadd.f32 %v355, %v653
        %v655 = vpop.f32.mrb[0].mxu0
        %v656 = vadd.f32 %v359, %v655
        %v657 = vpop.f32.mrb[0].mxu0
        %v658 = vadd.f32 %v355, %v657
        %v659 = vpop.f32.mrb[0].mxu0
        %v660 = vadd.f32 %v359, %v659
        %661 = vmatprep.mubr.bf16.mxu0 0
        %662 = vmatmul.mubr.bf16.gmra.mrb[0].mxu0 %v443
        %v663 = vpop.f32.mrb[0].mxu0
        %v664 = vadd.f32 %v355, %v663
        %v665 = vpop.f32.mrb[0].mxu0
        %v666 = vadd.f32 %v359, %v665
        %v667 = vpop.f32.mrb[0].mxu0
        %v668 = vadd.f32 %v355, %v667
        %v669 = vpop.f32.mrb[0].mxu0
        %v670 = vadd.f32 %v359, %v669
        %671 = vmatprep.mubr.bf16.mxu0 0
        %672 = vmatmul.mubr.bf16.gmra.mrb[0].mxu0 %v446
        %v673 = vpop.f32.mrb[0].mxu0
        %v674 = vadd.f32 %v355, %v673
        %v675 = vpop.f32.mrb[0].mxu0
        %v676 = vadd.f32 %v359, %v675
        %v677 = vpop.f32.mrb[0].mxu0
        %v678 = vadd.f32 %v355, %v677
        %v679 = vpop.f32.mrb[0].mxu0
        %v680 = vadd.f32 %v359, %v679
        %681 = vmatprep.mubr.bf16.mxu0 0
        %682 = vmatmul.mubr.bf16.gmra.mrb[0].mxu0 %v449
        %v683 = vpop.f32.mrb[0].mxu0
        %v684 = vadd.f32 %v355, %v683
        %v685 = vpop.f32.mrb[0].mxu0
        %v686 = vadd.f32 %v359, %v685
        %v687 = vpop.f32.mrb[0].mxu0
        %v688 = vadd.f32 %v355, %v687
        %v689 = vpop.f32.mrb[0].mxu0
        %v690 = vadd.f32 %v359, %v689
        %691 = vmatprep.mubr.bf16.mxu0 0
        %692 = vmatmul.mubr.bf16.gmra.mrb[0].mxu0 %v452
        %v693 = vpop.f32.mrb[0].mxu0
        %v694 = vadd.f32 %v355, %v693
        %v695 = vpop.f32.mrb[0].mxu0
        %v696 = vadd.f32 %v359, %v695
        %v697 = vpop.f32.mrb[0].mxu0
        %v698 = vadd.f32 %v355, %v697
        %v699 = vpop.f32.mrb[0].mxu0
        %v700 = vadd.f32 %v359, %v699
        %701 = vmatprep.mubr.bf16.mxu0 0
        %702 = vmatmul.mubr.bf16.gmra.mrb[0].mxu0 %v455
        %v703 = vpop.f32.mrb[0].mxu0
        %v704 = vadd.f32 %v355, %v703
        %v705 = vpop.f32.mrb[0].mxu0
        %v706 = vadd.f32 %v359, %v705
        %v707 = vpop.f32.mrb[0].mxu0
        %v708 = vadd.f32 %v355, %v707
        %v709 = vpop.f32.mrb[0].mxu0
        %v710 = vadd.f32 %v359, %v709
        %711 = vmatprep.mubr.bf16.mxu0 0
        %712 = vmatmul.mubr.bf16.gmra.mrb[0].mxu0 %v458
        %v713 = vpop.f32.mrb[0].mxu0
        %v714 = vadd.f32 %v355, %v713
        %v715 = vpop.f32.mrb[0].mxu0
        %v716 = vadd.f32 %v359, %v715
        %v717 = vpop.f32.mrb[0].mxu0
        %v718 = vadd.f32 %v355, %v717
        %v719 = vpop.f32.mrb[0].mxu0
        %v720 = vadd.f32 %v359, %v719
        %721 = vmatprep.mubr.bf16.mxu0 0
        %722 = vmatmul.mubr.bf16.gmra.mrb[0].mxu0 %v461
        %v723 = vpop.f32.mrb[0].mxu0
        %v724 = vadd.f32 %v355, %v723
        %v725 = vpop.f32.mrb[0].mxu0
        %v726 = vadd.f32 %v359, %v725
        %v727 = vpop.f32.mrb[0].mxu0
        %v728 = vadd.f32 %v355, %v727
        %v729 = vpop.f32.mrb[0].mxu0
        %v730 = vadd.f32 %v359, %v729
        %731 = vmatprep.mubr.bf16.mxu0 0
        %732 = vmatmul.mubr.bf16.gmra.mrb[0].mxu0 %v464
        %v733 = vpop.f32.mrb[0].mxu0
        %v734 = vadd.f32 %v355, %v733
        %v735 = vpop.f32.mrb[0].mxu0
        %v736 = vadd.f32 %v359, %v735
        %v737 = vpop.f32.mrb[0].mxu0
        %v738 = vadd.f32 %v355, %v737
        %v739 = vpop.f32.mrb[0].mxu0
        %v740 = vadd.f32 %v359, %v739
        %741 = vmatprep.mubr.bf16.mxu0 0
        %742 = vmatmul.mubr.bf16.gmra.mrb[0].mxu0 %v467
        %v743 = vpop.f32.mrb[0].mxu0
        %v744 = vadd.f32 %v355, %v743
        %v745 = vpop.f32.mrb[0].mxu0
        %v746 = vadd.f32 %v359, %v745
        %v747 = vpop.f32.mrb[0].mxu0
        %v748 = vadd.f32 %v355, %v747
        %v749 = vpop.f32.mrb[0].mxu0
        %v750 = vadd.f32 %v359, %v749
        %751 = vmatprep.mubr.bf16.mxu0 0
        %752 = vmatmul.mubr.bf16.gmra.mrb[0].mxu0 %v470
        %v753 = vpop.f32.mrb[0].mxu0
        %v754 = vadd.f32 %v355, %v753
        %v755 = vpop.f32.mrb[0].mxu0
        %v756 = vadd.f32 %v359, %v755
        %v757 = vpop.f32.mrb[0].mxu0
        %v758 = vadd.f32 %v355, %v757
        %v759 = vpop.f32.mrb[0].mxu0
        %v760 = vadd.f32 %v359, %v759
        %761 = vmatprep.mubr.bf16.mxu0 0
        %762 = vmatmul.mubr.bf16.gmra.mrb[0].mxu0 %v473
        %v763 = vpop.f32.mrb[0].mxu0
        %v764 = vadd.f32 %v355, %v763
        %v765 = vpop.f32.mrb[0].mxu0
        %v766 = vadd.f32 %v359, %v765
        %v767 = vpop.f32.mrb[0].mxu0
        %v768 = vadd.f32 %v355, %v767
        %v769 = vpop.f32.mrb[0].mxu0
        %v770 = vadd.f32 %v359, %v769
        %771 = vmatprep.mubr.bf16.mxu0 0
        %772 = vmatmul.mubr.bf16.gmra.mrb[0].mxu0 %v476
        %v773 = vpop.f32.mrb[0].mxu0
        %v774 = vadd.f32 %v355, %v773
        %v775 = vpop.f32.mrb[0].mxu0
        %v776 = vadd.f32 %v359, %v775
        %v777 = vpop.f32.mrb[0].mxu0
        %v778 = vadd.f32 %v355, %v777
        %v779 = vpop.f32.mrb[0].mxu0
        %v780 = vadd.f32 %v359, %v779
        %781 = vmatprep.mubr.bf16.mxu0 0
        %782 = vmatmul.mubr.bf16.gmra.mrb[0].mxu0 %v479
        %v783 = vpop.f32.mrb[0].mxu0
        %v784 = vadd.f32 %v355, %v783
        %v785 = vpop.f32.mrb[0].mxu0
        %v786 = vadd.f32 %v359, %v785
        %v787 = vpop.f32.mrb[0].mxu0
        %v788 = vadd.f32 %v355, %v787
        %v789 = vpop.f32.mrb[0].mxu0
        %v790 = vadd.f32 %v359, %v789
        %791 = vmatprep.mubr.bf16.mxu0 0
        %792 = vmatmul.mubr.bf16.gmra.mrb[0].mxu0 %v482
        %v793 = vpop.f32.mrb[0].mxu0
        %v794 = vadd.f32 %v355, %v793
        %v795 = vpop.f32.mrb[0].mxu0
        %v796 = vadd.f32 %v359, %v795
        %v797 = vpop.f32.mrb[0].mxu0
        %v798 = vadd.f32 %v355, %v797
        %v799 = vpop.f32.mrb[0].mxu0
        %v800 = vadd.f32 %v359, %v799
        %801 = vmatprep.mubr.bf16.mxu0 0
        %802 = vmatmul.mubr.bf16.gmra.mrb[0].mxu0 %v485
        %v803 = vpop.f32.mrb[0].mxu0
        %v804 = vadd.f32 %v355, %v803
        %v805 = vpop.f32.mrb[0].mxu0
        %v806 = vadd.f32 %v359, %v805
        %v807 = vpop.f32.mrb[0].mxu0
        %v808 = vadd.f32 %v355, %v807
        %v809 = vpop.f32.mrb[0].mxu0
        %v810 = vadd.f32 %v359, %v809
        %811 = vmatprep.mubr.bf16.mxu0 0
        %812 = vmatmul.mubr.bf16.gmra.mrb[0].mxu0 %v488
        %v813 = vpop.f32.mrb[0].mxu0
        %v814 = vadd.f32 %v355, %v813
        %v815 = vpop.f32.mrb[0].mxu0
        %v816 = vadd.f32 %v359, %v815
        %v817 = vpop.f32.mrb[0].mxu0
        %v818 = vadd.f32 %v355, %v817
        %v819 = vpop.f32.mrb[0].mxu0
        %v820 = vadd.f32 %v359, %v819
        %821 = vmatprep.mubr.bf16.mxu0 0
        %822 = vmatmul.mubr.bf16.gmra.mrb[0].mxu0 %v491
        %v823 = vpop.f32.mrb[0].mxu0
        %v824 = vadd.f32 %v355, %v823
        %v825 = vpop.f32.mrb[0].mxu0
        %v826 = vadd.f32 %v359, %v825
        %v827 = vpop.f32.mrb[0].mxu0
        %v828 = vadd.f32 %v355, %v827
        %v829 = vpop.f32.mrb[0].mxu0
        %v830 = vadd.f32 %v359, %v829
        %831 = vmatprep.mubr.bf16.mxu0 0
        %832 = vmatmul.mubr.bf16.gmra.mrb[0].mxu0 %v494
        %v833 = vpop.f32.mrb[0].mxu0
        %v834 = vadd.f32 %v355, %v833
        %v835 = vpop.f32.mrb[0].mxu0
        %v836 = vadd.f32 %v359, %v835
        %v837 = vpop.f32.mrb[0].mxu0
        %v838 = vadd.f32 %v355, %v837
        %v839 = vpop.f32.mrb[0].mxu0
        %v840 = vadd.f32 %v359, %v839
        %841 = vmatprep.mubr.bf16.mxu0 0
        %842 = vmatmul.mubr.bf16.gmra.mrb[0].mxu0 %v497
        %v843 = vpop.f32.mrb[0].mxu0
        %v844 = vadd.f32 %v355, %v843
        %v845 = vpop.f32.mrb[0].mxu0
        %v846 = vadd.f32 %v359, %v845
        %v847 = vpop.f32.mrb[0].mxu0
        %v848 = vadd.f32 %v355, %v847
        %v849 = vpop.f32.mrb[0].mxu0
        %v850 = vadd.f32 %v359, %v849
        %851 = vdwg.mxu0
        %852 = vst [vmem:[%s242] sm:$0xff] %v534
        %853 = vst [vmem:[%s242 + $0x8] sm:$0xff] %v536
        %854 = vst [vmem:[%s242 + $0x10] sm:$0xff] %v538
        %855 = vst [vmem:[%s242 + $0x18] sm:$0xff] %v540
        %856 = vst [vmem:[%s242 + $0x20] sm:$0xff] %v544
        %857 = vst [vmem:[%s242 + $0x28] sm:$0xff] %v546
        %858 = vst [vmem:[%s242 + $0x30] sm:$0xff] %v548
        %859 = vst [vmem:[%s242 + $0x38] sm:$0xff] %v550
        %860 = vst [vmem:[%s242 + $0x40] sm:$0xff] %v554
        %861 = vst [vmem:[%s242 + $0x48] sm:$0xff] %v556
        %862 = vst [vmem:[%s242 + $0x50] sm:$0xff] %v558
        %863 = vst [vmem:[%s242 + $0x58] sm:$0xff] %v560
        %864 = vst [vmem:[%s242 + $0x60] sm:$0xff] %v564
        %865 = vst [vmem:[%s242 + $0x68] sm:$0xff] %v566
        %866 = vst [vmem:[%s242 + $0x70] sm:$0xff] %v568
        %867 = vst [vmem:[%s242 + $0x78] sm:$0xff] %v570
        %868 = vst [vmem:[%s242 + $0x80] sm:$0xff] %v574
        %869 = vst [vmem:[%s242 + $0x88] sm:$0xff] %v576
        %870 = vst [vmem:[%s242 + $0x90] sm:$0xff] %v578
        %871 = vst [vmem:[%s242 + $0x98] sm:$0xff] %v580
        %872 = vst [vmem:[%s242 + $0xa0] sm:$0xff] %v584
        %873 = vst [vmem:[%s242 + $0xa8] sm:$0xff] %v586
        %874 = vst [vmem:[%s242 + $0xb0] sm:$0xff] %v588
        %875 = vst [vmem:[%s242 + $0xb8] sm:$0xff] %v590
        %876 = vst [vmem:[%s242 + $0xc0] sm:$0xff] %v594
        %877 = vst [vmem:[%s242 + $0xc8] sm:$0xff] %v596
        %878 = vst [vmem:[%s242 + $0xd0] sm:$0xff] %v598
        %879 = vst [vmem:[%s242 + $0xd8] sm:$0xff] %v600
        %880 = vst [vmem:[%s242 + $0xe0] sm:$0xff] %v604
        %881 = vst [vmem:[%s242 + $0xe8] sm:$0xff] %v606
        %882 = vst [vmem:[%s242 + $0xf0] sm:$0xff] %v608
        %883 = vst [vmem:[%s242 + $0xf8] sm:$0xff] %v610
        %884 = vst [vmem:[%s242 + $0x100] sm:$0xff] %v614
        %885 = vst [vmem:[%s242 + $0x108] sm:$0xff] %v616
        %886 = vst [vmem:[%s242 + $0x110] sm:$0xff] %v618
        %887 = vst [vmem:[%s242 + $0x118] sm:$0xff] %v620
        %888 = vst [vmem:[%s242 + $0x120] sm:$0xff] %v624
        %889 = vst [vmem:[%s242 + $0x128] sm:$0xff] %v626
        %890 = vst [vmem:[%s242 + $0x130] sm:$0xff] %v628
        %891 = vst [vmem:[%s242 + $0x138] sm:$0xff] %v630
        %892 = vst [vmem:[%s242 + $0x140] sm:$0xff] %v634
        %893 = vst [vmem:[%s242 + $0x148] sm:$0xff] %v636
        %894 = vst [vmem:[%s242 + $0x150] sm:$0xff] %v638
        %895 = vst [vmem:[%s242 + $0x158] sm:$0xff] %v640
        %896 = vst [vmem:[%s242 + $0x160] sm:$0xff] %v644
        %897 = vst [vmem:[%s242 + $0x168] sm:$0xff] %v646
        %898 = vst [vmem:[%s242 + $0x170] sm:$0xff] %v648
        %899 = vst [vmem:[%s242 + $0x178] sm:$0xff] %v650
        %900 = vst [vmem:[%s242 + $0x180] sm:$0xff] %v654
        %901 = vst [vmem:[%s242 + $0x188] sm:$0xff] %v656
        %902 = vst [vmem:[%s242 + $0x190] sm:$0xff] %v658
        %903 = vst [vmem:[%s242 + $0x198] sm:$0xff] %v660
        %904 = vst [vmem:[%s242 + $0x1a0] sm:$0xff] %v664
        %905 = vst [vmem:[%s242 + $0x1a8] sm:$0xff] %v666
        %906 = vst [vmem:[%s242 + $0x1b0] sm:$0xff] %v668
        %907 = vst [vmem:[%s242 + $0x1b8] sm:$0xff] %v670
        %908 = vst [vmem:[%s242 + $0x1c0] sm:$0xff] %v674
        %909 = vst [vmem:[%s242 + $0x1c8] sm:$0xff] %v676
        %910 = vst [vmem:[%s242 + $0x1d0] sm:$0xff] %v678
        %911 = vst [vmem:[%s242 + $0x1d8] sm:$0xff] %v680
        %912 = vst [vmem:[%s242 + $0x1e0] sm:$0xff] %v684
        %913 = vst [vmem:[%s242 + $0x1e8] sm:$0xff] %v686
        %914 = vst [vmem:[%s242 + $0x1f0] sm:$0xff] %v688
        %915 = vst [vmem:[%s242 + $0x1f8] sm:$0xff] %v690
        %916 = vst [vmem:[%s242 + $0x200] sm:$0xff] %v694
        %917 = vst [vmem:[%s242 + $0x208] sm:$0xff] %v696
        %918 = vst [vmem:[%s242 + $0x210] sm:$0xff] %v698
        %919 = vst [vmem:[%s242 + $0x218] sm:$0xff] %v700
        %920 = vst [vmem:[%s242 + $0x220] sm:$0xff] %v704
        %921 = vst [vmem:[%s242 + $0x228] sm:$0xff] %v706
        %922 = vst [vmem:[%s242 + $0x230] sm:$0xff] %v708
        %923 = vst [vmem:[%s242 + $0x238] sm:$0xff] %v710
        %924 = vst [vmem:[%s242 + $0x240] sm:$0xff] %v714
        %925 = vst [vmem:[%s242 + $0x248] sm:$0xff] %v716
        %926 = vst [vmem:[%s242 + $0x250] sm:$0xff] %v718
        %927 = vst [vmem:[%s242 + $0x258] sm:$0xff] %v720
        %928 = vst [vmem:[%s242 + $0x260] sm:$0xff] %v724
        %929 = vst [vmem:[%s242 + $0x268] sm:$0xff] %v726
        %930 = vst [vmem:[%s242 + $0x270] sm:$0xff] %v728
        %931 = vst [vmem:[%s242 + $0x278] sm:$0xff] %v730
        %932 = vst [vmem:[%s242 + $0x280] sm:$0xff] %v734
        %933 = vst [vmem:[%s242 + $0x288] sm:$0xff] %v736
        %934 = vst [vmem:[%s242 + $0x290] sm:$0xff] %v738
        %935 = vst [vmem:[%s242 + $0x298] sm:$0xff] %v740
        %936 = vst [vmem:[%s242 + $0x2a0] sm:$0xff] %v744
        %937 = vst [vmem:[%s242 + $0x2a8] sm:$0xff] %v746
        %938 = vst [vmem:[%s242 + $0x2b0] sm:$0xff] %v748
        %939 = vst [vmem:[%s242 + $0x2b8] sm:$0xff] %v750
        %940 = vst [vmem:[%s242 + $0x2c0] sm:$0xff] %v754
        %941 = vst [vmem:[%s242 + $0x2c8] sm:$0xff] %v756
        %942 = vst [vmem:[%s242 + $0x2d0] sm:$0xff] %v758
        %943 = vst [vmem:[%s242 + $0x2d8] sm:$0xff] %v760
        %944 = vst [vmem:[%s242 + $0x2e0] sm:$0xff] %v764
        %945 = vst [vmem:[%s242 + $0x2e8] sm:$0xff] %v766
        %946 = vst [vmem:[%s242 + $0x2f0] sm:$0xff] %v768
        %947 = vst [vmem:[%s242 + $0x2f8] sm:$0xff] %v770
        %948 = vst [vmem:[%s242 + $0x300] sm:$0xff] %v774
        %949 = vst [vmem:[%s242 + $0x308] sm:$0xff] %v776
        %950 = vst [vmem:[%s242 + $0x310] sm:$0xff] %v778
        %951 = vst [vmem:[%s242 + $0x318] sm:$0xff] %v780
        %952 = vst [vmem:[%s242 + $0x320] sm:$0xff] %v784
        %953 = vst [vmem:[%s242 + $0x328] sm:$0xff] %v786
        %954 = vst [vmem:[%s242 + $0x330] sm:$0xff] %v788
        %955 = vst [vmem:[%s242 + $0x338] sm:$0xff] %v790
        %956 = vst [vmem:[%s242 + $0x340] sm:$0xff] %v794
        %957 = vst [vmem:[%s242 + $0x348] sm:$0xff] %v796
        %958 = vst [vmem:[%s242 + $0x350] sm:$0xff] %v798
        %959 = vst [vmem:[%s242 + $0x358] sm:$0xff] %v800
        %960 = vst [vmem:[%s242 + $0x360] sm:$0xff] %v804
        %961 = vst [vmem:[%s242 + $0x368] sm:$0xff] %v806
        %962 = vst [vmem:[%s242 + $0x370] sm:$0xff] %v808
        %963 = vst [vmem:[%s242 + $0x378] sm:$0xff] %v810
        %964 = vst [vmem:[%s242 + $0x380] sm:$0xff] %v814
        %965 = vst [vmem:[%s242 + $0x388] sm:$0xff] %v816
        %966 = vst [vmem:[%s242 + $0x390] sm:$0xff] %v818
        %967 = vst [vmem:[%s242 + $0x398] sm:$0xff] %v820
        %968 = vst [vmem:[%s242 + $0x3a0] sm:$0xff] %v824
        %969 = vst [vmem:[%s242 + $0x3a8] sm:$0xff] %v826
        %970 = vst [vmem:[%s242 + $0x3b0] sm:$0xff] %v828
        %971 = vst [vmem:[%s242 + $0x3b8] sm:$0xff] %v830
        %972 = vst [vmem:[%s242 + $0x3c0] sm:$0xff] %v834
        %973 = vst [vmem:[%s242 + $0x3c8] sm:$0xff] %v836
        %974 = vst [vmem:[%s242 + $0x3d0] sm:$0xff] %v838
        %975 = vst [vmem:[%s242 + $0x3d8] sm:$0xff] %v840
        %976 = vst [vmem:[%s242 + $0x3e0] sm:$0xff] %v844
        %977 = vst [vmem:[%s242 + $0x3e8] sm:$0xff] %v846
        %978 = vst [vmem:[%s242 + $0x3f0] sm:$0xff] %v848
        %979 = vst [vmem:[%s242 + $0x3f8] sm:$0xff] %v850
        %s980 = smul.u32 64, %s20
        %s981 = smul.u32 2, %s21
        %p982 = scmp.lt.s32.totalorder %s980, 127
        %s983 = scalar_select %p982, %s980, 127
        %p984 = scmp.lt.s32.totalorder %s981, 1
        %s985 = scalar_select %p984, %s981, 1
        %s986 = smul.addr %s983, 2
        %s987 = sadd.s32 %s985, %s986
        %s988 = smul.addr %s987, 8
        %s989 = scalar_lea.vmem %s3, %s988
        // Predicated region
        $region41: #{mlp_forward.3} parent=31 // pred_check
          %p990 = pneg %p126
        $region42: #{mlp_forward.3} parent=31 // pred_check_branch
          %992 = sbr.rel (%p990) target = $region44
        $region43: #{mlp_forward.3} parent=31 // pred_region
          %s993 = smul.u32 64, %s20
          %s994 = smul.u32 2, %s21
        $region44: #{mlp_forward.3} parent=31 // pred_fallthru
          _
      $region32: #{mlp_forward.3} parent=5 // pred_fallthru
        _
      %p995 = scmp.le.s32.totalorder 2, %s11
      // Predicated region
      $region45: #{mlp_forward.3} parent=5 // pred_check
        %p996 = pneg %p995
      $region46: #{mlp_forward.3} parent=5 // pred_check_branch
        %998 = sbr.rel (%p996) target = $region48
      $region47: #{mlp_forward.3} parent=5 // pred_region
        %s999 = ssub.s32 %s11, 2
        // Predicated region
        $region49: #{mlp_forward.3} parent=47 // pred_check
          %p1000 = pneg %p132
        $region50: #{mlp_forward.3} parent=47 // pred_check_branch
          %1002 = sbr.rel (%p1000) target = $region52
        $region51: #{mlp_forward.3} parent=47 // pred_region
          %s1003 = smul.u32 64, %s22
          %s1004 = smul.u32 2, %s23
          %p1005 = scmp.lt.s32.totalorder %s1003, 127
          %s1006 = scalar_select %p1005, %s1003, 127
          %p1007 = scmp.lt.s32.totalorder %s1004, 1
          %s1008 = scalar_select %p1007, %s1004, 1
          %s1009 = smul.addr %s1006, 2
          %s1010 = sadd.s32 %s1008, %s1009
          %s1011 = smul.addr %s1010, 8
          %s1012 = scalar_lea.vmem %s3, %s1011
        $region52: #{mlp_forward.3} parent=47 // pred_fallthru
          _
      $region48: #{mlp_forward.3} parent=5 // pred_fallthru
        _
    $region6: #{mlp_forward.3} parent=1 // loop_footer
      %s15 = sadd.s32 1, %s11
    $region7: #{mlp_forward.3} parent=1 // loop_footer_branch
      %10 = sbr.rel target = $region3
    $region8: #{mlp_forward.3} parent=1 // loop_exit
      _
    %1013 = vsyncpa [#allocation3], 1
    %s1014 = scalar_lea.sflag [#allocation3], 1
    %1015 = vsyncpa %s1014, 1
    %1016 = vsyncpa [#allocation5], 1

// kernel: mlp_forward.5
$region0: #{mlp_forward.5}
  #allocation0 [shape = 'u32[]', space=smem, size = 0x4, offset = 0x4, fixed_abs, tag = 'smem constant byte address 0x4 - core index']
  #allocation1 [shape = 'u32[144,128]{1,0:T(1,128)}', space=vmem, size = 0x12000, scoped, tag = 'internal scratch']
  %s0 = inlined_call_operand.vmem [shape: f32[1024,256], index: 0, kind: input, shape index: {}]
  %s1 = inlined_call_operand.vmem [shape: bf16[256,64], index: 1, kind: input, shape index: {}]
  %s2 = inlined_call_operand.vmem [shape: f32[1,64], index: 2, kind: input, shape index: {}]
  %s3 = inlined_call_operand.vmem [shape: f32[1024,64], index: 3, kind: output, shape index: {}]
  %s4 = sld [smem:[#allocation0]]
  $region45: #{mlp_forward.5} parent=0
    _
  %s6 = ssub.s32 1, %s4
  %s7 = scalar_select 0, %s6, %s4
  loop: start=0, step=1, limit=4
  $region2: #{mlp_forward.5} parent=0 // loop_pre_header
    _
  $region3: #{mlp_forward.5} parent=0 // loop_header
    %s9 = sphi 0, %s13
    %p10 = scmp.ge.s32.totalorder %s9, 4
    %s16 = sphi 0, %s28
    %s17 = sphi 0, %s24
    %s18 = sphi 0, %s16
    %s19 = sphi 0, %s17
    %s20 = sphi 0, %s18
    %s21 = sphi 0, %s19
    %s31 = sphi 0, %s33
    %s34 = sphi 0, %s31
    %s35 = sphi 0, %s34
    %s51 = sphi 0, %s35
    %s57 = sphi 0, %s59
    %s60 = sphi 0, %s57
    %s61 = sphi 0, %s60
    %s77 = sphi 0, %s61
    %s83 = sphi 0, %s85
    %s86 = sphi 0, %s83
    %s87 = sphi 0, %s86
    %s103 = sphi 0, %s87
    %s111 = sphi 0, %s113
    %s114 = sphi 0, %s111
    %s115 = sphi 0, %s114
    %s131 = sphi 0, %s115
  $region4: #{mlp_forward.5} parent=0 // loop_header_branch
    %12 = sbr.rel (%p10) target = $region8
  $region5: #{mlp_forward.5} parent=0 // loop_body
    %s14 = ssub.s32 %s9, 1
    %s15 = ssub.s32 %s9, 2
    %s22 = sadd.s32 1, %s17
    %p23 = scmp.ge.s32.totalorder %s22, 1
    %s24 = scalar_select %p23, 0, %s22
    %s25 = sadd.s32 1, %s16
    %s26 = scalar_select %p23, %s25, %s16
    %p27 = scmp.ge.s32.totalorder %s26, 2
    %s28 = scalar_select %p27, 0, %s26
    %s29 = ssub.s32 %s16, %s28
    %p30 = scmp.eq.s32.totalorder %s29, 0
    %s32 = sadd.s32 %s31, 1
    %s33 = scalar_select %p30, %s31, %s32
    %p36 = pneg %p30
    %p37 = scmp.eq.s32.totalorder %s9, 1
    %p38 = por %p36, %p37
    %p39 = scmp.ne.s32.totalorder %s31, %s34
    %p40 = scmp.eq.s32.totalorder %s9, 0
    %p41 = por %p39, %p40
    %p42 = scmp.ne.s32.totalorder %s31, %s34
    %p43 = scmp.eq.s32.totalorder %s14, 1
    %p44 = por %p42, %p43
    %p45 = scmp.ne.s32.totalorder %s34, %s35
    %p46 = scmp.eq.s32.totalorder %s14, 0
    %p47 = por %p45, %p46
    %p48 = scmp.ne.s32.totalorder %s34, %s35
    %p49 = scmp.eq.s32.totalorder %s15, 1
    %p50 = por %p48, %p49
    %p52 = scmp.ne.s32.totalorder %s35, %s51
    %p53 = scmp.eq.s32.totalorder %s15, 0
    %p54 = por %p52, %p53
    %s55 = ssub.s32 %s17, %s24
    %p56 = scmp.eq.s32.totalorder %s55, 0
    %s58 = sadd.s32 %s57, 1
    %s59 = scalar_select %p56, %s57, %s58
    %p62 = pneg %p56
    %p63 = scmp.eq.s32.totalorder %s9, 1
    %p64 = por %p62, %p63
    %p65 = scmp.ne.s32.totalorder %s57, %s60
    %p66 = scmp.eq.s32.totalorder %s9, 0
    %p67 = por %p65, %p66
    %p68 = scmp.ne.s32.totalorder %s57, %s60
    %p69 = scmp.eq.s32.totalorder %s14, 1
    %p70 = por %p68, %p69
    %p71 = scmp.ne.s32.totalorder %s60, %s61
    %p72 = scmp.eq.s32.totalorder %s14, 0
    %p73 = por %p71, %p72
    %p74 = scmp.ne.s32.totalorder %s60, %s61
    %p75 = scmp.eq.s32.totalorder %s15, 1
    %p76 = por %p74, %p75
    %p78 = scmp.ne.s32.totalorder %s61, %s77
    %p79 = scmp.eq.s32.totalorder %s15, 0
    %p80 = por %p78, %p79
    %s81 = ssub.s32 %s17, %s24
    %p82 = scmp.eq.s32.totalorder %s81, 0
    %s84 = sadd.s32 %s83, 1
    %s85 = scalar_select %p82, %s83, %s84
    %p88 = pneg %p82
    %p89 = scmp.eq.s32.totalorder %s9, 1
    %p90 = por %p88, %p89
    %p91 = scmp.ne.s32.totalorder %s83, %s86
    %p92 = scmp.eq.s32.totalorder %s9, 0
    %p93 = por %p91, %p92
    %p94 = scmp.ne.s32.totalorder %s83, %s86
    %p95 = scmp.eq.s32.totalorder %s14, 1
    %p96 = por %p94, %p95
    %p97 = scmp.ne.s32.totalorder %s86, %s87
    %p98 = scmp.eq.s32.totalorder %s14, 0
    %p99 = por %p97, %p98
    %p100 = scmp.ne.s32.totalorder %s86, %s87
    %p101 = scmp.eq.s32.totalorder %s15, 1
    %p102 = por %p100, %p101
    %p104 = scmp.ne.s32.totalorder %s87, %s103
    %p105 = scmp.eq.s32.totalorder %s15, 0
    %p106 = por %p104, %p105
    %s107 = ssub.s32 %s16, %s28
    %s108 = ssub.s32 %s17, %s24
    %s109 = sor.u32 %s107, %s108
    %p110 = scmp.eq.s32.totalorder %s109, 0
    %s112 = sadd.s32 %s111, 1
    %s113 = scalar_select %p110, %s111, %s112
    %p116 = pneg %p110
    %p117 = scmp.eq.s32.totalorder %s9, 1
    %p118 = por %p116, %p117
    %p119 = scmp.ne.s32.totalorder %s111, %s114
    %p120 = scmp.eq.s32.totalorder %s9, 0
    %p121 = por %p119, %p120
    %p122 = scmp.ne.s32.totalorder %s111, %s114
    %p123 = scmp.eq.s32.totalorder %s14, 1
    %p124 = por %p122, %p123
    %p125 = scmp.ne.s32.totalorder %s114, %s115
    %p126 = scmp.eq.s32.totalorder %s14, 0
    %p127 = por %p125, %p126
    %p128 = scmp.ne.s32.totalorder %s114, %s115
    %p129 = scmp.eq.s32.totalorder %s15, 1
    %p130 = por %p128, %p129
    %p132 = scmp.ne.s32.totalorder %s115, %s131
    %p133 = scmp.eq.s32.totalorder %s15, 0
    %p134 = por %p132, %p133
    %p135 = scmp.le.s32.totalorder 1, %s9
    %p136 = scmp.lt.s32.totalorder %s9, 3
    %p137 = pnand %p135, %p136
    %p138 = pneg %p137
    // Predicated region
    $region9: #{mlp_forward.5} parent=5 // pred_check
      _
    $region10: #{mlp_forward.5} parent=5 // pred_check_branch
      %140 = sbr.rel (%p137) target = $region12
    $region11: #{mlp_forward.5} parent=5 // pred_region
      %s141 = ssub.s32 %s9, 1
      // Predicated region
      $region13: #{mlp_forward.5} parent=11 // pred_check
        %p142 = pneg %p73
      $region14: #{mlp_forward.5} parent=11 // pred_check_branch
        %144 = sbr.rel (%p142) target = $region16
      $region15: #{mlp_forward.5} parent=11 // pred_region
        %p145 = scmp.lt.s32.totalorder %s19, 0
        %s146 = scalar_select %p145, %s19, 0
        %s147 = smul.addr %s146, 4
        %s148 = scalar_lea.vmem %s1, %s147
      $region16: #{mlp_forward.5} parent=11 // pred_fallthru
        _
      // Predicated region
      $region17: #{mlp_forward.5} parent=11 // pred_check
        %p149 = pneg %p99
      $region18: #{mlp_forward.5} parent=11 // pred_check_branch
        %151 = sbr.rel (%p149) target = $region20
      $region19: #{mlp_forward.5} parent=11 // pred_region
        %p152 = scmp.lt.s32.totalorder %s19, 0
        %s153 = scalar_select %p152, %s19, 0
        %s154 = scalar_lea.vmem %s2, %s153
      $region20: #{mlp_forward.5} parent=11 // pred_fallthru
        _
    $region12: #{mlp_forward.5} parent=5 // pred_fallthru
      _
    %p155 = scmp.lt.s32.totalorder %s9, 2
    // Predicated region
    $region21: #{mlp_forward.5} parent=5 // pred_check
      %p156 = pneg %p155
    $region22: #{mlp_forward.5} parent=5 // pred_check_branch
      %158 = sbr.rel (%p156) target = $region24
    $region23: #{mlp_forward.5} parent=5 // pred_region
      // Predicated region
      $region25: #{mlp_forward.5} parent=23 // pred_check
        %p159 = pneg %p41
      $region26: #{mlp_forward.5} parent=23 // pred_check_branch
        %161 = sbr.rel (%p159) target = $region28
      $region27: #{mlp_forward.5} parent=23 // pred_region
        %s162 = smul.u32 64, %s16
        %p163 = scmp.lt.s32.totalorder %s162, 127
        %s164 = scalar_select %p163, %s162, 127
        %s165 = smul.addr %s164, 2
        %s166 = smul.addr %s165, 8
        %s167 = scalar_lea.vmem %s0, %s166
        %s168 = smul.u32 64, %s16
      $region28: #{mlp_forward.5} parent=23 // pred_fallthru
        _
    $region24: #{mlp_forward.5} parent=5 // pred_fallthru
      _
    %p169 = scmp.le.s32.totalorder 1, %s9
    %p170 = scmp.lt.s32.totalorder %s9, 3
    %p171 = pnand %p169, %p170
    %p172 = pneg %p171
    // Predicated region
    $region29: #{mlp_forward.5} parent=5 // pred_check
      _
    $region30: #{mlp_forward.5} parent=5 // pred_check_branch
      %174 = sbr.rel (%p171) target = $region32
    $region31: #{mlp_forward.5} parent=5 // pred_region
      %s175 = ssub.s32 %s9, 1
      %s176 = smul.u32 64, %s18
      %p177 = scmp.lt.s32.totalorder %s176, 127
      %s178 = scalar_select %p177, %s176, 127
      %s179 = smul.addr %s178, 2
      %s180 = smul.addr %s179, 8
      %s181 = scalar_lea.vmem %s0, %s180
      %p182 = pneg %p47
      %p183 = pneg %p44
      %p184 = scmp.lt.s32.totalorder %s19, 0
      %s185 = scalar_select %p184, %s19, 0
      %s186 = smul.addr %s185, 4
      %s187 = scalar_lea.vmem %s1, %s186
      %p188 = pneg %p73
      %p189 = pneg %p70
      %p190 = scmp.lt.s32.totalorder %s19, 0
      %s191 = scalar_select %p190, %s19, 0
      %s192 = scalar_lea.vmem %s2, %s191
      %p193 = pneg %p99
      %p194 = pneg %p96
      %p195 = pneg %p127
      %p196 = pneg %p124
      %s197 = smul.u32 64, %s18
      %p198 = scmp.lt.s32.totalorder %s197, 127
      %s199 = scalar_select %p198, %s197, 127
      %p200 = scmp.lt.s32.totalorder %s19, 0
      %s201 = scalar_select %p200, %s19, 0
      %s202 = sadd.s32 %s201, %s199
      %s203 = smul.addr %s202, 8
      %s204 = scalar_lea.vmem %s3, %s203
      %s205 = smul.u32 64, %s18
      %p206 = scmp.lt.s32.totalorder %s205, 127
      %s207 = scalar_select %p206, %s205, 127
      %s208 = smul.addr %s207, 2
      %s209 = smul.addr %s208, 8
      %s210 = scalar_lea.vmem %s0, %s209
      %s211 = smul.u32 64, %s18
      %p212 = scmp.lt.s32.totalorder %s19, 0
      %s213 = scalar_select %p212, %s19, 0
      %s214 = smul.addr %s213, 4
      %s215 = scalar_lea.vmem %s1, %s214
      %p216 = scmp.lt.s32.totalorder %s19, 0
      %s217 = scalar_select %p216, %s19, 0
      %s218 = scalar_lea.vmem %s2, %s217
      %s219 = smul.u32 64, %s18
      %p220 = scmp.lt.s32.totalorder %s219, 127
      %s221 = scalar_select %p220, %s219, 127
      %p222 = scmp.lt.s32.totalorder %s19, 0
      %s223 = scalar_select %p222, %s19, 0
      %s224 = sadd.s32 %s223, %s221
      %s225 = smul.addr %s224, 8
      %s226 = scalar_lea.vmem %s3, %s225
      %s227 = smul.u32 64, %s18
      %v229 = vld [vmem:[%s210] sm:$0xff]
      %v230 = vld [vmem:[%s210 + $0x8] sm:$0xff]
      %v231 = vld [vmem:[%s210 + $0x10] sm:$0xff]
      %v232 = vld [vmem:[%s210 + $0x18] sm:$0xff]
      %v233 = vld [vmem:[%s210 + $0x20] sm:$0xff]
      %v234 = vld [vmem:[%s210 + $0x28] sm:$0xff]
      %v235 = vld [vmem:[%s210 + $0x30] sm:$0xff]
      %v236 = vld [vmem:[%s210 + $0x38] sm:$0xff]
      %v237 = vld [vmem:[%s210 + $0x40] sm:$0xff]
      %v238 = vld [vmem:[%s210 + $0x48] sm:$0xff]
      %v239 = vld [vmem:[%s210 + $0x50] sm:$0xff]
      %v240 = vld [vmem:[%s210 + $0x58] sm:$0xff]
      %v241 = vld [vmem:[%s210 + $0x60] sm:$0xff]
      %v242 = vld [vmem:[%s210 + $0x68] sm:$0xff]
      %v243 = vld [vmem:[%s210 + $0x70] sm:$0xff]
      %v244 = vld [vmem:[%s210 + $0x78] sm:$0xff]
      %v245 = vld [vmem:[%s210 + $0x80] sm:$0xff]
      %v246 = vld [vmem:[%s210 + $0x88] sm:$0xff]
      %v247 = vld [vmem:[%s210 + $0x90] sm:$0xff]
      %v248 = vld [vmem:[%s210 + $0x98] sm:$0xff]
      %v249 = vld [vmem:[%s210 + $0xa0] sm:$0xff]
      %v250 = vld [vmem:[%s210 + $0xa8] sm:$0xff]
      %v251 = vld [vmem:[%s210 + $0xb0] sm:$0xff]
      %v252 = vld [vmem:[%s210 + $0xb8] sm:$0xff]
      %v253 = vld [vmem:[%s210 + $0xc0] sm:$0xff]
      %v254 = vld [vmem:[%s210 + $0xc8] sm:$0xff]
      %v255 = vld [vmem:[%s210 + $0xd0] sm:$0xff]
      %v256 = vld [vmem:[%s210 + $0xd8] sm:$0xff]
      %v257 = vld [vmem:[%s210 + $0xe0] sm:$0xff]
      %v258 = vld [vmem:[%s210 + $0xe8] sm:$0xff]
      %v259 = vld [vmem:[%s210 + $0xf0] sm:$0xff]
      %v260 = vld [vmem:[%s210 + $0xf8] sm:$0xff]
      %v261 = vld [vmem:[%s210 + $0x100] sm:$0xff]
      %v262 = vld [vmem:[%s210 + $0x108] sm:$0xff]
      %v263 = vld [vmem:[%s210 + $0x110] sm:$0xff]
      %v264 = vld [vmem:[%s210 + $0x118] sm:$0xff]
      %v265 = vld [vmem:[%s210 + $0x120] sm:$0xff]
      %v266 = vld [vmem:[%s210 + $0x128] sm:$0xff]
      %v267 = vld [vmem:[%s210 + $0x130] sm:$0xff]
      %v268 = vld [vmem:[%s210 + $0x138] sm:$0xff]
      %v269 = vld [vmem:[%s210 + $0x140] sm:$0xff]
      %v270 = vld [vmem:[%s210 + $0x148] sm:$0xff]
      %v271 = vld [vmem:[%s210 + $0x150] sm:$0xff]
      %v272 = vld [vmem:[%s210 + $0x158] sm:$0xff]
      %v273 = vld [vmem:[%s210 + $0x160] sm:$0xff]
      %v274 = vld [vmem:[%s210 + $0x168] sm:$0xff]
      %v275 = vld [vmem:[%s210 + $0x170] sm:$0xff]
      %v276 = vld [vmem:[%s210 + $0x178] sm:$0xff]
      %v277 = vld [vmem:[%s210 + $0x180] sm:$0xff]
      %v278 = vld [vmem:[%s210 + $0x188] sm:$0xff]
      %v279 = vld [vmem:[%s210 + $0x190] sm:$0xff]
      %v280 = vld [vmem:[%s210 + $0x198] sm:$0xff]
      %v281 = vld [vmem:[%s210 + $0x1a0] sm:$0xff]
      %v282 = vld [vmem:[%s210 + $0x1a8] sm:$0xff]
      %v283 = vld [vmem:[%s210 + $0x1b0] sm:$0xff]
      %v284 = vld [vmem:[%s210 + $0x1b8] sm:$0xff]
      %v285 = vld [vmem:[%s210 + $0x1c0] sm:$0xff]
      %v286 = vld [vmem:[%s210 + $0x1c8] sm:$0xff]
      %v287 = vld [vmem:[%s210 + $0x1d0] sm:$0xff]
      %v288 = vld [vmem:[%s210 + $0x1d8] sm:$0xff]
      %v289 = vld [vmem:[%s210 + $0x1e0] sm:$0xff]
      %v290 = vld [vmem:[%s210 + $0x1e8] sm:$0xff]
      %v291 = vld [vmem:[%s210 + $0x1f0] sm:$0xff]
      %v292 = vld [vmem:[%s210 + $0x1f8] sm:$0xff]
      %v293 = vld [vmem:[%s210 + $0x200] sm:$0xff]
      %v294 = vld [vmem:[%s210 + $0x208] sm:$0xff]
      %v295 = vld [vmem:[%s210 + $0x210] sm:$0xff]
      %v296 = vld [vmem:[%s210 + $0x218] sm:$0xff]
      %v297 = vld [vmem:[%s210 + $0x220] sm:$0xff]
      %v298 = vld [vmem:[%s210 + $0x228] sm:$0xff]
      %v299 = vld [vmem:[%s210 + $0x230] sm:$0xff]
      %v300 = vld [vmem:[%s210 + $0x238] sm:$0xff]
      %v301 = vld [vmem:[%s210 + $0x240] sm:$0xff]
      %v302 = vld [vmem:[%s210 + $0x248] sm:$0xff]
      %v303 = vld [vmem:[%s210 + $0x250] sm:$0xff]
      %v304 = vld [vmem:[%s210 + $0x258] sm:$0xff]
      %v305 = vld [vmem:[%s210 + $0x260] sm:$0xff]
      %v306 = vld [vmem:[%s210 + $0x268] sm:$0xff]
      %v307 = vld [vmem:[%s210 + $0x270] sm:$0xff]
      %v308 = vld [vmem:[%s210 + $0x278] sm:$0xff]
      %v309 = vld [vmem:[%s210 + $0x280] sm:$0xff]
      %v310 = vld [vmem:[%s210 + $0x288] sm:$0xff]
      %v311 = vld [vmem:[%s210 + $0x290] sm:$0xff]
      %v312 = vld [vmem:[%s210 + $0x298] sm:$0xff]
      %v313 = vld [vmem:[%s210 + $0x2a0] sm:$0xff]
      %v314 = vld [vmem:[%s210 + $0x2a8] sm:$0xff]
      %v315 = vld [vmem:[%s210 + $0x2b0] sm:$0xff]
      %v316 = vld [vmem:[%s210 + $0x2b8] sm:$0xff]
      %v317 = vld [vmem:[%s210 + $0x2c0] sm:$0xff]
      %v318 = vld [vmem:[%s210 + $0x2c8] sm:$0xff]
      %v319 = vld [vmem:[%s210 + $0x2d0] sm:$0xff]
      %v320 = vld [vmem:[%s210 + $0x2d8] sm:$0xff]
      %v321 = vld [vmem:[%s210 + $0x2e0] sm:$0xff]
      %v322 = vld [vmem:[%s210 + $0x2e8] sm:$0xff]
      %v323 = vld [vmem:[%s210 + $0x2f0] sm:$0xff]
      %v324 = vld [vmem:[%s210 + $0x2f8] sm:$0xff]
      %v325 = vld [vmem:[%s210 + $0x300] sm:$0xff]
      %v326 = vld [vmem:[%s210 + $0x308] sm:$0xff]
      %v327 = vld [vmem:[%s210 + $0x310] sm:$0xff]
      %v328 = vld [vmem:[%s210 + $0x318] sm:$0xff]
      %v329 = vld [vmem:[%s210 + $0x320] sm:$0xff]
      %v330 = vld [vmem:[%s210 + $0x328] sm:$0xff]
      %v331 = vld [vmem:[%s210 + $0x330] sm:$0xff]
      %v332 = vld [vmem:[%s210 + $0x338] sm:$0xff]
      %v333 = vld [vmem:[%s210 + $0x340] sm:$0xff]
      %v334 = vld [vmem:[%s210 + $0x348] sm:$0xff]
      %v335 = vld [vmem:[%s210 + $0x350] sm:$0xff]
      %v336 = vld [vmem:[%s210 + $0x358] sm:$0xff]
      %v337 = vld [vmem:[%s210 + $0x360] sm:$0xff]
      %v338 = vld [vmem:[%s210 + $0x368] sm:$0xff]
      %v339 = vld [vmem:[%s210 + $0x370] sm:$0xff]
      %v340 = vld [vmem:[%s210 + $0x378] sm:$0xff]
      %v341 = vld [vmem:[%s210 + $0x380] sm:$0xff]
      %v342 = vld [vmem:[%s210 + $0x388] sm:$0xff]
      %v343 = vld [vmem:[%s210 + $0x390] sm:$0xff]
      %v344 = vld [vmem:[%s210 + $0x398] sm:$0xff]
      %v345 = vld [vmem:[%s210 + $0x3a0] sm:$0xff]
      %v346 = vld [vmem:[%s210 + $0x3a8] sm:$0xff]
      %v347 = vld [vmem:[%s210 + $0x3b0] sm:$0xff]
      %v348 = vld [vmem:[%s210 + $0x3b8] sm:$0xff]
      %v349 = vld [vmem:[%s210 + $0x3c0] sm:$0xff]
      %v350 = vld [vmem:[%s210 + $0x3c8] sm:$0xff]
      %v351 = vld [vmem:[%s210 + $0x3d0] sm:$0xff]
      %v352 = vld [vmem:[%s210 + $0x3d8] sm:$0xff]
      %v353 = vld [vmem:[%s210 + $0x3e0] sm:$0xff]
      %v354 = vld [vmem:[%s210 + $0x3e8] sm:$0xff]
      %v355 = vld [vmem:[%s210 + $0x3f0] sm:$0xff]
      %v356 = vld [vmem:[%s210 + $0x3f8] sm:$0xff]
      %v357 = vpack.c.bf16 %v231, %v229
      %v358 = vpack.c.bf16 %v232, %v230
      %v359 = vpack.c.bf16 %v235, %v233
      %v360 = vpack.c.bf16 %v236, %v234
      %v361 = vpack.c.bf16 %v239, %v237
      %v362 = vpack.c.bf16 %v240, %v238
      %v363 = vpack.c.bf16 %v243, %v241
      %v364 = vpack.c.bf16 %v244, %v242
      %v365 = vpack.c.bf16 %v247, %v245
      %v366 = vpack.c.bf16 %v248, %v246
      %v367 = vpack.c.bf16 %v251, %v249
      %v368 = vpack.c.bf16 %v252, %v250
      %v369 = vpack.c.bf16 %v255, %v253
      %v370 = vpack.c.bf16 %v256, %v254
      %v371 = vpack.c.bf16 %v259, %v257
      %v372 = vpack.c.bf16 %v260, %v258
      %v373 = vpack.c.bf16 %v263, %v261
      %v374 = vpack.c.bf16 %v264, %v262
      %v375 = vpack.c.bf16 %v267, %v265
      %v376 = vpack.c.bf16 %v268, %v266
      %v377 = vpack.c.bf16 %v271, %v269
      %v378 = vpack.c.bf16 %v272, %v270
      %v379 = vpack.c.bf16 %v275, %v273
      %v380 = vpack.c.bf16 %v276, %v274
      %v381 = vpack.c.bf16 %v279, %v277
      %v382 = vpack.c.bf16 %v280, %v278
      %v383 = vpack.c.bf16 %v283, %v281
      %v384 = vpack.c.bf16 %v284, %v282
      %v385 = vpack.c.bf16 %v287, %v285
      %v386 = vpack.c.bf16 %v288, %v286
      %v387 = vpack.c.bf16 %v291, %v289
      %v388 = vpack.c.bf16 %v292, %v290
      %v389 = vpack.c.bf16 %v295, %v293
      %v390 = vpack.c.bf16 %v296, %v294
      %v391 = vpack.c.bf16 %v299, %v297
      %v392 = vpack.c.bf16 %v300, %v298
      %v393 = vpack.c.bf16 %v303, %v301
      %v394 = vpack.c.bf16 %v304, %v302
      %v395 = vpack.c.bf16 %v307, %v305
      %v396 = vpack.c.bf16 %v308, %v306
      %v397 = vpack.c.bf16 %v311, %v309
      %v398 = vpack.c.bf16 %v312, %v310
      %v399 = vpack.c.bf16 %v315, %v313
      %v400 = vpack.c.bf16 %v316, %v314
      %v401 = vpack.c.bf16 %v319, %v317
      %v402 = vpack.c.bf16 %v320, %v318
      %v403 = vpack.c.bf16 %v323, %v321
      %v404 = vpack.c.bf16 %v324, %v322
      %v405 = vpack.c.bf16 %v327, %v325
      %v406 = vpack.c.bf16 %v328, %v326
      %v407 = vpack.c.bf16 %v331, %v329
      %v408 = vpack.c.bf16 %v332, %v330
      %v409 = vpack.c.bf16 %v335, %v333
      %v410 = vpack.c.bf16 %v336, %v334
      %v411 = vpack.c.bf16 %v339, %v337
      %v412 = vpack.c.bf16 %v340, %v338
      %v413 = vpack.c.bf16 %v343, %v341
      %v414 = vpack.c.bf16 %v344, %v342
      %v415 = vpack.c.bf16 %v347, %v345
      %v416 = vpack.c.bf16 %v348, %v346
      %v417 = vpack.c.bf16 %v351, %v349
      %v418 = vpack.c.bf16 %v352, %v350
      %v419 = vpack.c.bf16 %v355, %v353
      %v420 = vpack.c.bf16 %v356, %v354
      %v421 = vld [vmem:[%s215] sm:$0xf]
      %v422 = vld [vmem:[%s215 + $0x4] sm:$0xf]
      %v423 = vld [vmem:[%s215 + $0x8] sm:$0xf]
      %v424 = vld [vmem:[%s215 + $0xc] sm:$0xf]
      %v425 = vld [vmem:[%s215 + $0x10] sm:$0xf]
      %v426 = vld [vmem:[%s215 + $0x14] sm:$0xf]
      %v427 = vld [vmem:[%s215 + $0x18] sm:$0xf]
      %v428 = vld [vmem:[%s215 + $0x1c] sm:$0xf]
      %v429 = vld [vmem:[%s215 + $0x20] sm:$0xf]
      %v430 = vld [vmem:[%s215 + $0x24] sm:$0xf]
      %v431 = vld [vmem:[%s215 + $0x28] sm:$0xf]
      %v432 = vld [vmem:[%s215 + $0x2c] sm:$0xf]
      %v433 = vld [vmem:[%s215 + $0x30] sm:$0xf]
      %v434 = vld [vmem:[%s215 + $0x34] sm:$0xf]
      %v435 = vld [vmem:[%s215 + $0x38] sm:$0xf]
      %v436 = vld [vmem:[%s215 + $0x3c] sm:$0xf]
      %v437 = vld [vmem:[%s215 + $0x40] sm:$0xf]
      %v438 = vld [vmem:[%s215 + $0x44] sm:$0xf]
      %v439 = vld [vmem:[%s215 + $0x48] sm:$0xf]
      %v440 = vld [vmem:[%s215 + $0x4c] sm:$0xf]
      %v441 = vld [vmem:[%s215 + $0x50] sm:$0xf]
      %v442 = vld [vmem:[%s215 + $0x54] sm:$0xf]
      %v443 = vld [vmem:[%s215 + $0x58] sm:$0xf]
      %v444 = vld [vmem:[%s215 + $0x5c] sm:$0xf]
      %v445 = vld [vmem:[%s215 + $0x60] sm:$0xf]
      %v446 = vld [vmem:[%s215 + $0x64] sm:$0xf]
      %v447 = vld [vmem:[%s215 + $0x68] sm:$0xf]
      %v448 = vld [vmem:[%s215 + $0x6c] sm:$0xf]
      %v449 = vld [vmem:[%s215 + $0x70] sm:$0xf]
      %v450 = vld [vmem:[%s215 + $0x74] sm:$0xf]
      %v451 = vld [vmem:[%s215 + $0x78] sm:$0xf]
      %v452 = vld [vmem:[%s215 + $0x7c] sm:$0xf]
      %v453 = vld [vmem:[%s218] sm:$0x1]
      %v455 = vlaneseq
      %v456 = vshrl.u32 %v455, 7
      %v457 = vsub.s32 0, %v456
      %v458 = vrot.slane %v453, %v457
      %v492 = vunpack.c.l.b16 %v421
      %v493 = vunpack.c.l.b16 %v422
      %v494 = vunpack.c.l.b16 %v423
      %v495 = vunpack.c.l.b16 %v424
      %v496 = vunpack.c.l.b16 %v425
      %v497 = vunpack.c.l.b16 %v426
      %v498 = vunpack.c.l.b16 %v427
      %v499 = vunpack.c.l.b16 %v428
      %v500 = vunpack.c.l.b16 %v429
      %v501 = vunpack.c.l.b16 %v430
      %v502 = vunpack.c.l.b16 %v431
      %v503 = vunpack.c.l.b16 %v432
      %v504 = vunpack.c.l.b16 %v433
      %v505 = vunpack.c.l.b16 %v434
      %v506 = vunpack.c.l.b16 %v435
      %v507 = vunpack.c.l.b16 %v436
      %v508 = vunpack.c.l.b16 %v437
      %v509 = vunpack.c.l.b16 %v438
      %v510 = vunpack.c.l.b16 %v439
      %v511 = vunpack.c.l.b16 %v440
      %v512 = vunpack.c.l.b16 %v441
      %v513 = vunpack.c.l.b16 %v442
      %v514 = vunpack.c.l.b16 %v443
      %v515 = vunpack.c.l.b16 %v444
      %v516 = vunpack.c.l.b16 %v445
      %v517 = vunpack.c.l.b16 %v446
      %v518 = vunpack.c.l.b16 %v447
      %v519 = vunpack.c.l.b16 %v448
      %v520 = vunpack.c.l.b16 %v449
      %v521 = vunpack.c.l.b16 %v450
      %v522 = vunpack.c.l.b16 %v451
      %v523 = vunpack.c.l.b16 %v452
      %v524 = vpack.c.b16 %v493, %v492
      %v525 = vpack.c.b16 %v495, %v494
      %v526 = vpack.c.b16 %v497, %v496
      %v527 = vpack.c.b16 %v499, %v498
      %v528 = vpack.c.b16 %v501, %v500
      %v529 = vpack.c.b16 %v503, %v502
      %v530 = vpack.c.b16 %v505, %v504
      %v531 = vpack.c.b16 %v507, %v506
      %v532 = vpack.c.b16 %v509, %v508
      %v533 = vpack.c.b16 %v511, %v510
      %v534 = vpack.c.b16 %v513, %v512
      %v535 = vpack.c.b16 %v515, %v514
      %v536 = vpack.c.b16 %v517, %v516
      %v537 = vpack.c.b16 %v519, %v518
      %v538 = vpack.c.b16 %v521, %v520
      %v539 = vpack.c.b16 %v523, %v522
      %556 = vmatprep.subr.bf16.mxu0 0
      %557 = vmatpush1.bf16.msra.mxu0 %v524
      %558 = vmatprep.subr.bf16.mxu0 0
      %559 = vmatpush1.bf16.msra.mxu0 %v525
      %560 = vmatprep.subr.bf16.mxu0 0
      %561 = vmatpush1.bf16.msra.mxu0 %v526
      %562 = vmatprep.subr.bf16.mxu0 0
      %563 = vmatpush1.bf16.msra.mxu0 %v527
      %564 = vmatprep.subr.bf16.mxu0 0
      %565 = vmatpush1.bf16.msra.mxu0 %v528
      %566 = vmatprep.subr.bf16.mxu0 0
      %567 = vmatpush1.bf16.msra.mxu0 %v529
      %568 = vmatprep.subr.bf16.mxu0 0
      %569 = vmatpush1.bf16.msra.mxu0 %v530
      %570 = vmatprep.subr.bf16.mxu0 0
      %571 = vmatpush1.bf16.msra.mxu0 %v531
      %572 = vmatprep.subr.bf16.mxu0 0
      %573 = vmatpush1.bf16.msra.mxu0 %v532
      %574 = vmatprep.subr.bf16.mxu0 0
      %575 = vmatpush1.bf16.msra.mxu0 %v533
      %576 = vmatprep.subr.bf16.mxu0 0
      %577 = vmatpush1.bf16.msra.mxu0 %v534
      %578 = vmatprep.subr.bf16.mxu0 0
      %579 = vmatpush1.bf16.msra.mxu0 %v535
      %580 = vmatprep.subr.bf16.mxu0 0
      %581 = vmatpush1.bf16.msra.mxu0 %v536
      %582 = vmatprep.subr.bf16.mxu0 0
      %583 = vmatpush1.bf16.msra.mxu0 %v537
      %584 = vmatprep.subr.bf16.mxu0 0
      %585 = vmatpush1.bf16.msra.mxu0 %v538
      %586 = vmatprep.subr.bf16.mxu0 0
      %587 = vmatpush1.bf16.msra.mxu0 %v539
      %588 = vmatprep.mubr.bf16.mxu0 %v358
      %589 = vmatmul.mubr.bf16.gmra.mrb[0].mxu0 %v357
      %v590 = vpop.f32.mrb[0].mxu0
      %v591 = vadd.f32 %v458, %v590
      %v592 = vpop.f32.mrb[0].mxu0
      %v593 = vpop.f32.mrb[0].mxu0
      %v594 = vadd.f32 %v458, %v593
      %v595 = vpop.f32.mrb[0].mxu0
      %596 = vmatprep.mubr.bf16.mxu0 %v360
      %597 = vmatmul.mubr.bf16.gmra.mrb[0].mxu0 %v359
      %v598 = vpop.f32.mrb[0].mxu0
      %v599 = vadd.f32 %v458, %v598
      %v600 = vpop.f32.mrb[0].mxu0
      %v601 = vpop.f32.mrb[0].mxu0
      %v602 = vadd.f32 %v458, %v601
      %v603 = vpop.f32.mrb[0].mxu0
      %604 = vmatprep.mubr.bf16.mxu0 %v362
      %605 = vmatmul.mubr.bf16.gmra.mrb[0].mxu0 %v361
      %v606 = vpop.f32.mrb[0].mxu0
      %v607 = vadd.f32 %v458, %v606
      %v608 = vpop.f32.mrb[0].mxu0
      %v609 = vpop.f32.mrb[0].mxu0
      %v610 = vadd.f32 %v458, %v609
      %v611 = vpop.f32.mrb[0].mxu0
      %612 = vmatprep.mubr.bf16.mxu0 %v364
      %613 = vmatmul.mubr.bf16.gmra.mrb[0].mxu0 %v363
      %v614 = vpop.f32.mrb[0].mxu0
      %v615 = vadd.f32 %v458, %v614
      %v616 = vpop.f32.mrb[0].mxu0
      %v617 = vpop.f32.mrb[0].mxu0
      %v618 = vadd.f32 %v458, %v617
      %v619 = vpop.f32.mrb[0].mxu0
      %620 = vmatprep.mubr.bf16.mxu0 %v366
      %621 = vmatmul.mubr.bf16.gmra.mrb[0].mxu0 %v365
      %v622 = vpop.f32.mrb[0].mxu0
      %v623 = vadd.f32 %v458, %v622
      %v624 = vpop.f32.mrb[0].mxu0
      %v625 = vpop.f32.mrb[0].mxu0
      %v626 = vadd.f32 %v458, %v625
      %v627 = vpop.f32.mrb[0].mxu0
      %628 = vmatprep.mubr.bf16.mxu0 %v368
      %629 = vmatmul.mubr.bf16.gmra.mrb[0].mxu0 %v367
      %v630 = vpop.f32.mrb[0].mxu0
      %v631 = vadd.f32 %v458, %v630
      %v632 = vpop.f32.mrb[0].mxu0
      %v633 = vpop.f32.mrb[0].mxu0
      %v634 = vadd.f32 %v458, %v633
      %v635 = vpop.f32.mrb[0].mxu0
      %636 = vmatprep.mubr.bf16.mxu0 %v370
      %637 = vmatmul.mubr.bf16.gmra.mrb[0].mxu0 %v369
      %v638 = vpop.f32.mrb[0].mxu0
      %v639 = vadd.f32 %v458, %v638
      %v640 = vpop.f32.mrb[0].mxu0
      %v641 = vpop.f32.mrb[0].mxu0
      %v642 = vadd.f32 %v458, %v641
      %v643 = vpop.f32.mrb[0].mxu0
      %644 = vmatprep.mubr.bf16.mxu0 %v372
      %645 = vmatmul.mubr.bf16.gmra.mrb[0].mxu0 %v371
      %v646 = vpop.f32.mrb[0].mxu0
      %v647 = vadd.f32 %v458, %v646
      %v648 = vpop.f32.mrb[0].mxu0
      %v649 = vpop.f32.mrb[0].mxu0
      %v650 = vadd.f32 %v458, %v649
      %v651 = vpop.f32.mrb[0].mxu0
      %652 = vmatprep.mubr.bf16.mxu0 %v374
      %653 = vmatmul.mubr.bf16.gmra.mrb[0].mxu0 %v373
      %v654 = vpop.f32.mrb[0].mxu0
      %v655 = vadd.f32 %v458, %v654
      %v656 = vpop.f32.mrb[0].mxu0
      %v657 = vpop.f32.mrb[0].mxu0
      %v658 = vadd.f32 %v458, %v657
      %v659 = vpop.f32.mrb[0].mxu0
      %660 = vmatprep.mubr.bf16.mxu0 %v376
      %661 = vmatmul.mubr.bf16.gmra.mrb[0].mxu0 %v375
      %v662 = vpop.f32.mrb[0].mxu0
      %v663 = vadd.f32 %v458, %v662
      %v664 = vpop.f32.mrb[0].mxu0
      %v665 = vpop.f32.mrb[0].mxu0
      %v666 = vadd.f32 %v458, %v665
      %v667 = vpop.f32.mrb[0].mxu0
      %668 = vmatprep.mubr.bf16.mxu0 %v378
      %669 = vmatmul.mubr.bf16.gmra.mrb[0].mxu0 %v377
      %v670 = vpop.f32.mrb[0].mxu0
      %v671 = vadd.f32 %v458, %v670
      %v672 = vpop.f32.mrb[0].mxu0
      %v673 = vpop.f32.mrb[0].mxu0
      %v674 = vadd.f32 %v458, %v673
      %v675 = vpop.f32.mrb[0].mxu0
      %676 = vmatprep.mubr.bf16.mxu0 %v380
      %677 = vmatmul.mubr.bf16.gmra.mrb[0].mxu0 %v379
      %v678 = vpop.f32.mrb[0].mxu0
      %v679 = vadd.f32 %v458, %v678
      %v680 = vpop.f32.mrb[0].mxu0
      %v681 = vpop.f32.mrb[0].mxu0
      %v682 = vadd.f32 %v458, %v681
      %v683 = vpop.f32.mrb[0].mxu0
      %684 = vmatprep.mubr.bf16.mxu0 %v382
      %685 = vmatmul.mubr.bf16.gmra.mrb[0].mxu0 %v381
      %v686 = vpop.f32.mrb[0].mxu0
      %v687 = vadd.f32 %v458, %v686
      %v688 = vpop.f32.mrb[0].mxu0
      %v689 = vpop.f32.mrb[0].mxu0
      %v690 = vadd.f32 %v458, %v689
      %v691 = vpop.f32.mrb[0].mxu0
      %692 = vmatprep.mubr.bf16.mxu0 %v384
      %693 = vmatmul.mubr.bf16.gmra.mrb[0].mxu0 %v383
      %v694 = vpop.f32.mrb[0].mxu0
      %v695 = vadd.f32 %v458, %v694
      %v696 = vpop.f32.mrb[0].mxu0
      %v697 = vpop.f32.mrb[0].mxu0
      %v698 = vadd.f32 %v458, %v697
      %v699 = vpop.f32.mrb[0].mxu0
      %700 = vmatprep.mubr.bf16.mxu0 %v386
      %701 = vmatmul.mubr.bf16.gmra.mrb[0].mxu0 %v385
      %v702 = vpop.f32.mrb[0].mxu0
      %v703 = vadd.f32 %v458, %v702
      %v704 = vpop.f32.mrb[0].mxu0
      %v705 = vpop.f32.mrb[0].mxu0
      %v706 = vadd.f32 %v458, %v705
      %v707 = vpop.f32.mrb[0].mxu0
      %708 = vmatprep.mubr.bf16.mxu0 %v388
      %709 = vmatmul.mubr.bf16.gmra.mrb[0].mxu0 %v387
      %v710 = vpop.f32.mrb[0].mxu0
      %v711 = vadd.f32 %v458, %v710
      %v712 = vpop.f32.mrb[0].mxu0
      %v713 = vpop.f32.mrb[0].mxu0
      %v714 = vadd.f32 %v458, %v713
      %v715 = vpop.f32.mrb[0].mxu0
      %716 = vmatprep.mubr.bf16.mxu0 %v390
      %717 = vmatmul.mubr.bf16.gmra.mrb[0].mxu0 %v389
      %v718 = vpop.f32.mrb[0].mxu0
      %v719 = vadd.f32 %v458, %v718
      %v720 = vpop.f32.mrb[0].mxu0
      %v721 = vpop.f32.mrb[0].mxu0
      %v722 = vadd.f32 %v458, %v721
      %v723 = vpop.f32.mrb[0].mxu0
      %724 = vmatprep.mubr.bf16.mxu0 %v392
      %725 = vmatmul.mubr.bf16.gmra.mrb[0].mxu0 %v391
      %v726 = vpop.f32.mrb[0].mxu0
      %v727 = vadd.f32 %v458, %v726
      %v728 = vpop.f32.mrb[0].mxu0
      %v729 = vpop.f32.mrb[0].mxu0
      %v730 = vadd.f32 %v458, %v729
      %v731 = vpop.f32.mrb[0].mxu0
      %732 = vmatprep.mubr.bf16.mxu0 %v394
      %733 = vmatmul.mubr.bf16.gmra.mrb[0].mxu0 %v393
      %v734 = vpop.f32.mrb[0].mxu0
      %v735 = vadd.f32 %v458, %v734
      %v736 = vpop.f32.mrb[0].mxu0
      %v737 = vpop.f32.mrb[0].mxu0
      %v738 = vadd.f32 %v458, %v737
      %v739 = vpop.f32.mrb[0].mxu0
      %740 = vmatprep.mubr.bf16.mxu0 %v396
      %741 = vmatmul.mubr.bf16.gmra.mrb[0].mxu0 %v395
      %v742 = vpop.f32.mrb[0].mxu0
      %v743 = vadd.f32 %v458, %v742
      %v744 = vpop.f32.mrb[0].mxu0
      %v745 = vpop.f32.mrb[0].mxu0
      %v746 = vadd.f32 %v458, %v745
      %v747 = vpop.f32.mrb[0].mxu0
      %748 = vmatprep.mubr.bf16.mxu0 %v398
      %749 = vmatmul.mubr.bf16.gmra.mrb[0].mxu0 %v397
      %v750 = vpop.f32.mrb[0].mxu0
      %v751 = vadd.f32 %v458, %v750
      %v752 = vpop.f32.mrb[0].mxu0
      %v753 = vpop.f32.mrb[0].mxu0
      %v754 = vadd.f32 %v458, %v753
      %v755 = vpop.f32.mrb[0].mxu0
      %756 = vmatprep.mubr.bf16.mxu0 %v400
      %757 = vmatmul.mubr.bf16.gmra.mrb[0].mxu0 %v399
      %v758 = vpop.f32.mrb[0].mxu0
      %v759 = vadd.f32 %v458, %v758
      %v760 = vpop.f32.mrb[0].mxu0
      %v761 = vpop.f32.mrb[0].mxu0
      %v762 = vadd.f32 %v458, %v761
      %v763 = vpop.f32.mrb[0].mxu0
      %764 = vmatprep.mubr.bf16.mxu0 %v402
      %765 = vmatmul.mubr.bf16.gmra.mrb[0].mxu0 %v401
      %v766 = vpop.f32.mrb[0].mxu0
      %v767 = vadd.f32 %v458, %v766
      %v768 = vpop.f32.mrb[0].mxu0
      %v769 = vpop.f32.mrb[0].mxu0
      %v770 = vadd.f32 %v458, %v769
      %v771 = vpop.f32.mrb[0].mxu0
      %772 = vmatprep.mubr.bf16.mxu0 %v404
      %773 = vmatmul.mubr.bf16.gmra.mrb[0].mxu0 %v403
      %v774 = vpop.f32.mrb[0].mxu0
      %v775 = vadd.f32 %v458, %v774
      %v776 = vpop.f32.mrb[0].mxu0
      %v777 = vpop.f32.mrb[0].mxu0
      %v778 = vadd.f32 %v458, %v777
      %v779 = vpop.f32.mrb[0].mxu0
      %780 = vmatprep.mubr.bf16.mxu0 %v406
      %781 = vmatmul.mubr.bf16.gmra.mrb[0].mxu0 %v405
      %v782 = vpop.f32.mrb[0].mxu0
      %v783 = vadd.f32 %v458, %v782
      %v784 = vpop.f32.mrb[0].mxu0
      %v785 = vpop.f32.mrb[0].mxu0
      %v786 = vadd.f32 %v458, %v785
      %v787 = vpop.f32.mrb[0].mxu0
      %788 = vmatprep.mubr.bf16.mxu0 %v408
      %789 = vmatmul.mubr.bf16.gmra.mrb[0].mxu0 %v407
      %v790 = vpop.f32.mrb[0].mxu0
      %v791 = vadd.f32 %v458, %v790
      %v792 = vpop.f32.mrb[0].mxu0
      %v793 = vpop.f32.mrb[0].mxu0
      %v794 = vadd.f32 %v458, %v793
      %v795 = vpop.f32.mrb[0].mxu0
      %796 = vmatprep.mubr.bf16.mxu0 %v410
      %797 = vmatmul.mubr.bf16.gmra.mrb[0].mxu0 %v409
      %v798 = vpop.f32.mrb[0].mxu0
      %v799 = vadd.f32 %v458, %v798
      %v800 = vpop.f32.mrb[0].mxu0
      %v801 = vpop.f32.mrb[0].mxu0
      %v802 = vadd.f32 %v458, %v801
      %v803 = vpop.f32.mrb[0].mxu0
      %804 = vmatprep.mubr.bf16.mxu0 %v412
      %805 = vmatmul.mubr.bf16.gmra.mrb[0].mxu0 %v411
      %v806 = vpop.f32.mrb[0].mxu0
      %v807 = vadd.f32 %v458, %v806
      %v808 = vpop.f32.mrb[0].mxu0
      %v809 = vpop.f32.mrb[0].mxu0
      %v810 = vadd.f32 %v458, %v809
      %v811 = vpop.f32.mrb[0].mxu0
      %812 = vmatprep.mubr.bf16.mxu0 %v414
      %813 = vmatmul.mubr.bf16.gmra.mrb[0].mxu0 %v413
      %v814 = vpop.f32.mrb[0].mxu0
      %v815 = vadd.f32 %v458, %v814
      %v816 = vpop.f32.mrb[0].mxu0
      %v817 = vpop.f32.mrb[0].mxu0
      %v818 = vadd.f32 %v458, %v817
      %v819 = vpop.f32.mrb[0].mxu0
      %820 = vmatprep.mubr.bf16.mxu0 %v416
      %821 = vmatmul.mubr.bf16.gmra.mrb[0].mxu0 %v415
      %v822 = vpop.f32.mrb[0].mxu0
      %v823 = vadd.f32 %v458, %v822
      %v824 = vpop.f32.mrb[0].mxu0
      %v825 = vpop.f32.mrb[0].mxu0
      %v826 = vadd.f32 %v458, %v825
      %v827 = vpop.f32.mrb[0].mxu0
      %828 = vmatprep.mubr.bf16.mxu0 %v418
      %829 = vmatmul.mubr.bf16.gmra.mrb[0].mxu0 %v417
      %v830 = vpop.f32.mrb[0].mxu0
      %v831 = vadd.f32 %v458, %v830
      %v832 = vpop.f32.mrb[0].mxu0
      %v833 = vpop.f32.mrb[0].mxu0
      %v834 = vadd.f32 %v458, %v833
      %v835 = vpop.f32.mrb[0].mxu0
      %836 = vmatprep.mubr.bf16.mxu0 %v420
      %837 = vmatmul.mubr.bf16.gmra.mrb[0].mxu0 %v419
      %v838 = vpop.f32.mrb[0].mxu0
      %v839 = vadd.f32 %v458, %v838
      %v840 = vpop.f32.mrb[0].mxu0
      %v841 = vpop.f32.mrb[0].mxu0
      %v842 = vadd.f32 %v458, %v841
      %v843 = vpop.f32.mrb[0].mxu0
      %844 = vdwg.mxu0
      %vm845 = vcmask 523264
      %846 = vst.msk [vmem:[%s226] sm:$0xff] %vm845, %v591
      %847 = vst.msk [vmem:[%s226 + $0x8] sm:$0xff] %vm845, %v594
      %848 = vst.msk [vmem:[%s226 + $0x10] sm:$0xff] %vm845, %v599
      %849 = vst.msk [vmem:[%s226 + $0x18] sm:$0xff] %vm845, %v602
      %850 = vst.msk [vmem:[%s226 + $0x20] sm:$0xff] %vm845, %v607
      %851 = vst.msk [vmem:[%s226 + $0x28] sm:$0xff] %vm845, %v610
      %852 = vst.msk [vmem:[%s226 + $0x30] sm:$0xff] %vm845, %v615
      %853 = vst.msk [vmem:[%s226 + $0x38] sm:$0xff] %vm845, %v618
      %854 = vst.msk [vmem:[%s226 + $0x40] sm:$0xff] %vm845, %v623
      %855 = vst.msk [vmem:[%s226 + $0x48] sm:$0xff] %vm845, %v626
      %856 = vst.msk [vmem:[%s226 + $0x50] sm:$0xff] %vm845, %v631
      %857 = vst.msk [vmem:[%s226 + $0x58] sm:$0xff] %vm845, %v634
      %858 = vst.msk [vmem:[%s226 + $0x60] sm:$0xff] %vm845, %v639
      %859 = vst.msk [vmem:[%s226 + $0x68] sm:$0xff] %vm845, %v642
      %860 = vst.msk [vmem:[%s226 + $0x70] sm:$0xff] %vm845, %v647
      %861 = vst.msk [vmem:[%s226 + $0x78] sm:$0xff] %vm845, %v650
      %862 = vst.msk [vmem:[%s226 + $0x80] sm:$0xff] %vm845, %v655
      %863 = vst.msk [vmem:[%s226 + $0x88] sm:$0xff] %vm845, %v658
      %864 = vst.msk [vmem:[%s226 + $0x90] sm:$0xff] %vm845, %v663
      %865 = vst.msk [vmem:[%s226 + $0x98] sm:$0xff] %vm845, %v666
      %866 = vst.msk [vmem:[%s226 + $0xa0] sm:$0xff] %vm845, %v671
      %867 = vst.msk [vmem:[%s226 + $0xa8] sm:$0xff] %vm845, %v674
      %868 = vst.msk [vmem:[%s226 + $0xb0] sm:$0xff] %vm845, %v679
      %869 = vst.msk [vmem:[%s226 + $0xb8] sm:$0xff] %vm845, %v682
      %870 = vst.msk [vmem:[%s226 + $0xc0] sm:$0xff] %vm845, %v687
      %871 = vst.msk [vmem:[%s226 + $0xc8] sm:$0xff] %vm845, %v690
      %872 = vst.msk [vmem:[%s226 + $0xd0] sm:$0xff] %vm845, %v695
      %873 = vst.msk [vmem:[%s226 + $0xd8] sm:$0xff] %vm845, %v698
      %874 = vst.msk [vmem:[%s226 + $0xe0] sm:$0xff] %vm845, %v703
      %875 = vst.msk [vmem:[%s226 + $0xe8] sm:$0xff] %vm845, %v706
      %876 = vst.msk [vmem:[%s226 + $0xf0] sm:$0xff] %vm845, %v711
      %877 = vst.msk [vmem:[%s226 + $0xf8] sm:$0xff] %vm845, %v714
      %878 = vst.msk [vmem:[%s226 + $0x100] sm:$0xff] %vm845, %v719
      %879 = vst.msk [vmem:[%s226 + $0x108] sm:$0xff] %vm845, %v722
      %880 = vst.msk [vmem:[%s226 + $0x110] sm:$0xff] %vm845, %v727
      %881 = vst.msk [vmem:[%s226 + $0x118] sm:$0xff] %vm845, %v730
      %882 = vst.msk [vmem:[%s226 + $0x120] sm:$0xff] %vm845, %v735
      %883 = vst.msk [vmem:[%s226 + $0x128] sm:$0xff] %vm845, %v738
      %884 = vst.msk [vmem:[%s226 + $0x130] sm:$0xff] %vm845, %v743
      %885 = vst.msk [vmem:[%s226 + $0x138] sm:$0xff] %vm845, %v746
      %886 = vst.msk [vmem:[%s226 + $0x140] sm:$0xff] %vm845, %v751
      %887 = vst.msk [vmem:[%s226 + $0x148] sm:$0xff] %vm845, %v754
      %888 = vst.msk [vmem:[%s226 + $0x150] sm:$0xff] %vm845, %v759
      %889 = vst.msk [vmem:[%s226 + $0x158] sm:$0xff] %vm845, %v762
      %890 = vst.msk [vmem:[%s226 + $0x160] sm:$0xff] %vm845, %v767
      %891 = vst.msk [vmem:[%s226 + $0x168] sm:$0xff] %vm845, %v770
      %892 = vst.msk [vmem:[%s226 + $0x170] sm:$0xff] %vm845, %v775
      %893 = vst.msk [vmem:[%s226 + $0x178] sm:$0xff] %vm845, %v778
      %894 = vst.msk [vmem:[%s226 + $0x180] sm:$0xff] %vm845, %v783
      %895 = vst.msk [vmem:[%s226 + $0x188] sm:$0xff] %vm845, %v786
      %896 = vst.msk [vmem:[%s226 + $0x190] sm:$0xff] %vm845, %v791
      %897 = vst.msk [vmem:[%s226 + $0x198] sm:$0xff] %vm845, %v794
      %898 = vst.msk [vmem:[%s226 + $0x1a0] sm:$0xff] %vm845, %v799
      %899 = vst.msk [vmem:[%s226 + $0x1a8] sm:$0xff] %vm845, %v802
      %900 = vst.msk [vmem:[%s226 + $0x1b0] sm:$0xff] %vm845, %v807
      %901 = vst.msk [vmem:[%s226 + $0x1b8] sm:$0xff] %vm845, %v810
      %902 = vst.msk [vmem:[%s226 + $0x1c0] sm:$0xff] %vm845, %v815
      %903 = vst.msk [vmem:[%s226 + $0x1c8] sm:$0xff] %vm845, %v818
      %904 = vst.msk [vmem:[%s226 + $0x1d0] sm:$0xff] %vm845, %v823
      %905 = vst.msk [vmem:[%s226 + $0x1d8] sm:$0xff] %vm845, %v826
      %906 = vst.msk [vmem:[%s226 + $0x1e0] sm:$0xff] %vm845, %v831
      %907 = vst.msk [vmem:[%s226 + $0x1e8] sm:$0xff] %vm845, %v834
      %908 = vst.msk [vmem:[%s226 + $0x1f0] sm:$0xff] %vm845, %v839
      %909 = vst.msk [vmem:[%s226 + $0x1f8] sm:$0xff] %vm845, %v842
      %s910 = smul.u32 64, %s18
      %p911 = scmp.lt.s32.totalorder %s910, 127
      %s912 = scalar_select %p911, %s910, 127
      %p913 = scmp.lt.s32.totalorder %s19, 0
      %s914 = scalar_select %p913, %s19, 0
      %s915 = sadd.s32 %s914, %s912
      %s916 = smul.addr %s915, 8
      %s917 = scalar_lea.vmem %s3, %s916
      // Predicated region
      $region33: #{mlp_forward.5} parent=31 // pred_check
        %p918 = pneg %p124
      $region34: #{mlp_forward.5} parent=31 // pred_check_branch
        %920 = sbr.rel (%p918) target = $region36
      $region35: #{mlp_forward.5} parent=31 // pred_region
        %s921 = smul.u32 64, %s18
      $region36: #{mlp_forward.5} parent=31 // pred_fallthru
        _
    $region32: #{mlp_forward.5} parent=5 // pred_fallthru
      _
    %p922 = scmp.le.s32.totalorder 2, %s9
    // Predicated region
    $region37: #{mlp_forward.5} parent=5 // pred_check
      %p923 = pneg %p922
    $region38: #{mlp_forward.5} parent=5 // pred_check_branch
      %925 = sbr.rel (%p923) target = $region40
    $region39: #{mlp_forward.5} parent=5 // pred_region
      %s926 = ssub.s32 %s9, 2
      // Predicated region
      $region41: #{mlp_forward.5} parent=39 // pred_check
        %p927 = pneg %p130
      $region42: #{mlp_forward.5} parent=39 // pred_check_branch
        %929 = sbr.rel (%p927) target = $region44
      $region43: #{mlp_forward.5} parent=39 // pred_region
        %s930 = smul.u32 64, %s20
        %p931 = scmp.lt.s32.totalorder %s930, 127
        %s932 = scalar_select %p931, %s930, 127
        %p933 = scmp.lt.s32.totalorder %s21, 0
        %s934 = scalar_select %p933, %s21, 0
        %s935 = sadd.s32 %s934, %s932
        %s936 = smul.addr %s935, 8
        %s937 = scalar_lea.vmem %s3, %s936
      $region44: #{mlp_forward.5} parent=39 // pred_fallthru
        _
    $region40: #{mlp_forward.5} parent=5 // pred_fallthru
      _
  $region6: #{mlp_forward.5} parent=0 // loop_footer
    %s13 = sadd.s32 1, %s9
  $region7: #{mlp_forward.5} parent=0 // loop_footer_branch
    %8 = sbr.rel target = $region3
  $region8: #{mlp_forward.5} parent=0 // loop_exit
    _

// kernel: mlp_forward.4
$region0: #{mlp_forward.4}
  #allocation0 [shape = 'u32[]', space=smem, size = 0x4, offset = 0x4, fixed_abs, tag = 'smem constant byte address 0x4 - core index']
  #allocation1 [shape = 'u32[144,128]{1,0:T(1,128)}', space=vmem, size = 0x12000, scoped, tag = 'internal scratch']
  %s0 = inlined_call_operand.vmem [shape: f32[2,10,10,10,256], index: 0, kind: input, shape index: {}]
  %s1 = inlined_call_operand.vmem [shape: f32[27,256], index: 1, kind: input, shape index: {}]
  %s2 = inlined_call_operand.vmem [shape: f32[1,256], index: 2, kind: input, shape index: {}]
  %s3 = inlined_call_operand.vmem [shape: f32[2,8,8,8,256], index: 3, kind: output, shape index: {}]
  %s4 = sld [smem:[#allocation0]]
  $region52: #{mlp_forward.4} parent=0
    _
  %s6 = ssub.s32 1, %s4
  %s7 = scalar_select 0, %s6, %s4
  loop: start=0, step=1, limit=4
  $region2: #{mlp_forward.4} parent=0 // loop_pre_header
    _
  $region3: #{mlp_forward.4} parent=0 // loop_header
    %s9 = sphi 0, %s13
    %p10 = scmp.ge.s32.totalorder %s9, 4
    %s19 = sphi 0, %s21
    %s22 = sphi 0, %s19
    %s23 = sphi 0, %s22
    %s39 = sphi 0, %s23
    %s43 = sphi 0, %s43
    %s45 = sphi 0, %s43
    %s46 = sphi 0, %s45
    %s60 = sphi 0, %s46
    %s64 = sphi 0, %s64
    %s66 = sphi 0, %s64
    %s67 = sphi 0, %s66
    %s81 = sphi 0, %s67
    %s87 = sphi 0, %s89
    %s90 = sphi 0, %s87
    %s91 = sphi 0, %s90
    %s107 = sphi 0, %s91
  $region4: #{mlp_forward.4} parent=0 // loop_header_branch
    %12 = sbr.rel (%p10) target = $region8
  $region5: #{mlp_forward.4} parent=0 // loop_body
    %s14 = ssub.s32 %s9, 1
    %s15 = ssub.s32 %s9, 2
    %s16 = sadd.s32 %s9, 1
    %s17 = ssub.s32 %s9, %s16
    %p18 = scmp.eq.s32.totalorder %s17, 0
    %s20 = sadd.s32 %s19, 1
    %s21 = scalar_select %p18, %s19, %s20
    %p24 = pneg %p18
    %p25 = scmp.eq.s32.totalorder %s9, 1
    %p26 = por %p24, %p25
    %p27 = scmp.ne.s32.totalorder %s19, %s22
    %p28 = scmp.eq.s32.totalorder %s9, 0
    %p29 = por %p27, %p28
    %p30 = scmp.ne.s32.totalorder %s19, %s22
    %p31 = scmp.eq.s32.totalorder %s14, 1
    %p32 = por %p30, %p31
    %p33 = scmp.ne.s32.totalorder %s22, %s23
    %p34 = scmp.eq.s32.totalorder %s14, 0
    %p35 = por %p33, %p34
    %p36 = scmp.ne.s32.totalorder %s22, %s23
    %p37 = scmp.eq.s32.totalorder %s15, 1
    %p38 = por %p36, %p37
    %p40 = scmp.ne.s32.totalorder %s23, %s39
    %p41 = scmp.eq.s32.totalorder %s15, 0
    %p42 = por %p40, %p41
    %s44 = sadd.s32 %s43, 1
    %p47 = scmp.eq.s32.totalorder %s9, 1
    %p48 = scmp.ne.s32.totalorder %s43, %s45
    %p49 = scmp.eq.s32.totalorder %s9, 0
    %p50 = por %p48, %p49
    %p51 = scmp.ne.s32.totalorder %s43, %s45
    %p52 = scmp.eq.s32.totalorder %s14, 1
    %p53 = por %p51, %p52
    %p54 = scmp.ne.s32.totalorder %s45, %s46
    %p55 = scmp.eq.s32.totalorder %s14, 0
    %p56 = por %p54, %p55
    %p57 = scmp.ne.s32.totalorder %s45, %s46
    %p58 = scmp.eq.s32.totalorder %s15, 1
    %p59 = por %p57, %p58
    %p61 = scmp.ne.s32.totalorder %s46, %s60
    %p62 = scmp.eq.s32.totalorder %s15, 0
    %p63 = por %p61, %p62
    %s65 = sadd.s32 %s64, 1
    %p68 = scmp.eq.s32.totalorder %s9, 1
    %p69 = scmp.ne.s32.totalorder %s64, %s66
    %p70 = scmp.eq.s32.totalorder %s9, 0
    %p71 = por %p69, %p70
    %p72 = scmp.ne.s32.totalorder %s64, %s66
    %p73 = scmp.eq.s32.totalorder %s14, 1
    %p74 = por %p72, %p73
    %p75 = scmp.ne.s32.totalorder %s66, %s67
    %p76 = scmp.eq.s32.totalorder %s14, 0
    %p77 = por %p75, %p76
    %p78 = scmp.ne.s32.totalorder %s66, %s67
    %p79 = scmp.eq.s32.totalorder %s15, 1
    %p80 = por %p78, %p79
    %p82 = scmp.ne.s32.totalorder %s67, %s81
    %p83 = scmp.eq.s32.totalorder %s15, 0
    %p84 = por %p82, %p83
    %s85 = ssub.s32 %s9, %s16
    %p86 = scmp.eq.s32.totalorder %s85, 0
    %s88 = sadd.s32 %s87, 1
    %s89 = scalar_select %p86, %s87, %s88
    %p92 = pneg %p86
    %p93 = scmp.eq.s32.totalorder %s9, 1
    %p94 = por %p92, %p93
    %p95 = scmp.ne.s32.totalorder %s87, %s90
    %p96 = scmp.eq.s32.totalorder %s9, 0
    %p97 = por %p95, %p96
    %p98 = scmp.ne.s32.totalorder %s87, %s90
    %p99 = scmp.eq.s32.totalorder %s14, 1
    %p100 = por %p98, %p99
    %p101 = scmp.ne.s32.totalorder %s90, %s91
    %p102 = scmp.eq.s32.totalorder %s14, 0
    %p103 = por %p101, %p102
    %p104 = scmp.ne.s32.totalorder %s90, %s91
    %p105 = scmp.eq.s32.totalorder %s15, 1
    %p106 = por %p104, %p105
    %p108 = scmp.ne.s32.totalorder %s91, %s107
    %p109 = scmp.eq.s32.totalorder %s15, 0
    %p110 = por %p108, %p109
    %p111 = scmp.le.s32.totalorder 1, %s9
    %p112 = scmp.lt.s32.totalorder %s9, 3
    %p113 = pnand %p111, %p112
    %p114 = pneg %p113
    // Predicated region
    $region9: #{mlp_forward.4} parent=5 // pred_check
      _
    $region10: #{mlp_forward.4} parent=5 // pred_check_branch
      %116 = sbr.rel (%p113) target = $region12
    $region11: #{mlp_forward.4} parent=5 // pred_region
      %s117 = ssub.s32 %s9, 1
      // Predicated region
      $region13: #{mlp_forward.4} parent=11 // pred_check
        %p118 = pneg %p56
      $region14: #{mlp_forward.4} parent=11 // pred_check_branch
        %120 = sbr.rel (%p118) target = $region16
      $region15: #{mlp_forward.4} parent=11 // pred_region
        _
      $region16: #{mlp_forward.4} parent=11 // pred_fallthru
        _
      // Predicated region
      $region17: #{mlp_forward.4} parent=11 // pred_check
        %p121 = pneg %p77
      $region18: #{mlp_forward.4} parent=11 // pred_check_branch
        %123 = sbr.rel (%p121) target = $region20
      $region19: #{mlp_forward.4} parent=11 // pred_region
        _
      $region20: #{mlp_forward.4} parent=11 // pred_fallthru
        _
    $region12: #{mlp_forward.4} parent=5 // pred_fallthru
      _
    %p124 = scmp.lt.s32.totalorder %s9, 2
    // Predicated region
    $region21: #{mlp_forward.4} parent=5 // pred_check
      %p125 = pneg %p124
    $region22: #{mlp_forward.4} parent=5 // pred_check_branch
      %127 = sbr.rel (%p125) target = $region24
    $region23: #{mlp_forward.4} parent=5 // pred_region
      // Predicated region
      $region25: #{mlp_forward.4} parent=23 // pred_check
        %p128 = pneg %p29
      $region26: #{mlp_forward.4} parent=23 // pred_check_branch
        %130 = sbr.rel (%p128) target = $region28
      $region27: #{mlp_forward.4} parent=23 // pred_region
        %p131 = scmp.lt.s32.totalorder %s9, 1
        %s132 = scalar_select %p131, %s9, 1
        %s133 = smul.addr %s132, 400
        %s134 = smul.addr %s133, 8
        %s135 = scalar_lea.vmem %s0, %s134
      $region28: #{mlp_forward.4} parent=23 // pred_fallthru
        _
    $region24: #{mlp_forward.4} parent=5 // pred_fallthru
      _
    %p136 = scmp.le.s32.totalorder 1, %s9
    %p137 = scmp.lt.s32.totalorder %s9, 3
    %p138 = pnand %p136, %p137
    %p139 = pneg %p138
    // Predicated region
    $region29: #{mlp_forward.4} parent=5 // pred_check
      _
    $region30: #{mlp_forward.4} parent=5 // pred_check_branch
      %141 = sbr.rel (%p138) target = $region32
    $region31: #{mlp_forward.4} parent=5 // pred_region
      %s142 = ssub.s32 %s9, 1
      %p143 = scmp.lt.s32.totalorder %s14, 1
      %s144 = scalar_select %p143, %s14, 1
      %s145 = smul.addr %s144, 400
      %s146 = smul.addr %s145, 8
      %s147 = scalar_lea.vmem %s0, %s146
      %p148 = pneg %p35
      %p149 = pneg %p32
      %p150 = pneg %p56
      %p151 = pneg %p53
      %p152 = pneg %p77
      %p153 = pneg %p74
      %p154 = pneg %p103
      %p155 = pneg %p100
      %p156 = scmp.lt.s32.totalorder %s14, 1
      %s157 = scalar_select %p156, %s14, 1
      %s158 = smul.addr %s157, 128
      %s159 = smul.addr %s158, 8
      %s160 = scalar_lea.vmem %s3, %s159
      %p161 = scmp.lt.s32.totalorder %s14, 1
      %s162 = scalar_select %p161, %s14, 1
      %s163 = smul.addr %s162, 400
      %s164 = smul.addr %s163, 8
      %s165 = scalar_lea.vmem %s0, %s164
      %p166 = scmp.lt.s32.totalorder %s14, 1
      %s167 = scalar_select %p166, %s14, 1
      %s168 = smul.addr %s167, 128
      %s169 = smul.addr %s168, 8
      %s170 = scalar_lea.vmem %s3, %s169
      %v171 = vld [vmem:[%s2] sm:$0x3]
      loop: start=0, step=1, limit=8
      $region33: #{mlp_forward.4} parent=31 // loop_pre_header
        _
      $region34: #{mlp_forward.4} parent=31 // loop_header
        %s173 = sphi 0, %s177
        %p174 = scmp.ge.s32.totalorder %s173, 8
      $region35: #{mlp_forward.4} parent=31 // loop_header_branch
        %176 = sbr.rel (%p174) target = $region39
      $region36: #{mlp_forward.4} parent=31 // loop_body
        %v178 = vld [vmem:[%s1] ss:$8 sm:$0x3]
        %s179 = smul.u32 %s173, 40
        %s180 = smul.addr %s179, 8
        %s181 = scalar_lea.vmem %s165, %s180
        %v182 = vld [vmem:[%s181] sm:$0xff]
        %v183 = vld [vmem:[%s181 + $0x8] sm:$0xff]
        %v184 = vld [vmem:[%s181 + $0x20] sm:$0xff]
        %v185 = vld [vmem:[%s181 + $0x28] sm:$0xff]
        %v186 = vld [vmem:[%s181 + $0x40] sm:$0xff]
        %v187 = vld [vmem:[%s181 + $0x48] sm:$0xff]
        %v188 = vld [vmem:[%s181 + $0x60] sm:$0xff]
        %v189 = vld [vmem:[%s181 + $0x68] sm:$0xff]
        %v190 = vld [vmem:[%s181 + $0x80] sm:$0xff]
        %v191 = vld [vmem:[%s181 + $0x88] sm:$0xff]
        %v192 = vld [vmem:[%s181 + $0xa0] sm:$0xff]
        %v193 = vld [vmem:[%s181 + $0xa8] sm:$0xff]
        %v194 = vld [vmem:[%s181 + $0xc0] sm:$0xff]
        %v195 = vld [vmem:[%s181 + $0xc8] sm:$0xff]
        %v196 = vld [vmem:[%s181 + $0xe0] sm:$0xff]
        %v197 = vld [vmem:[%s181 + $0xe8] sm:$0xff]
        %v199 = vlaneseq
        %v200 = vshrl.u32 %v199, 7
        %v201 = vsub.s32 0, %v200
        %v202 = vrot.slane %v178, %v201
        %v203 = vlaneseq
        %v204 = vshrl.u32 %v203, 7
        %v205 = vsub.s32 1, %v204
        %v206 = vrot.slane %v178, %v205
        %v209 = vmul.f32 %v182, %v202
        %v210 = vmul.f32 %v183, %v206
        %v211 = vmul.f32 %v184, %v202
        %v212 = vmul.f32 %v185, %v206
        %v213 = vmul.f32 %v186, %v202
        %v214 = vmul.f32 %v187, %v206
        %v215 = vmul.f32 %v188, %v202
        %v216 = vmul.f32 %v189, %v206
        %v217 = vmul.f32 %v190, %v202
        %v218 = vmul.f32 %v191, %v206
        %v219 = vmul.f32 %v192, %v202
        %v220 = vmul.f32 %v193, %v206
        %v221 = vmul.f32 %v194, %v202
        %v222 = vmul.f32 %v195, %v206
        %v223 = vmul.f32 %v196, %v202
        %v224 = vmul.f32 %v197, %v206
        %v225 = vadd.f32 %v209, 0.0
        %v226 = vadd.f32 %v210, 0.0
        %v227 = vadd.f32 %v211, 0.0
        %v228 = vadd.f32 %v212, 0.0
        %v229 = vadd.f32 %v213, 0.0
        %v230 = vadd.f32 %v214, 0.0
        %v231 = vadd.f32 %v215, 0.0
        %v232 = vadd.f32 %v216, 0.0
        %v233 = vadd.f32 %v217, 0.0
        %v234 = vadd.f32 %v218, 0.0
        %v235 = vadd.f32 %v219, 0.0
        %v236 = vadd.f32 %v220, 0.0
        %v237 = vadd.f32 %v221, 0.0
        %v238 = vadd.f32 %v222, 0.0
        %v239 = vadd.f32 %v223, 0.0
        %v240 = vadd.f32 %v224, 0.0
        %s241 = scalar_lea.vmem %s1, 1
        %v242 = vld [vmem:[%s241] ss:$8 sm:$0x3]
        %v243 = vld [vmem:[%s181] sm:$0xfe]
        %v244 = vld [vmem:[%s181 + $0x8] sm:$0xfe]
        %v245 = vld [vmem:[%s181 + $0x10] sm:$0x1]
        %v246 = vld [vmem:[%s181 + $0x18] sm:$0x1]
        %v247 = vld [vmem:[%s181 + $0x20] sm:$0xfe]
        %v248 = vld [vmem:[%s181 + $0x28] sm:$0xfe]
        %v249 = vld [vmem:[%s181 + $0x30] sm:$0x1]
        %v250 = vld [vmem:[%s181 + $0x38] sm:$0x1]
        %v251 = vld [vmem:[%s181 + $0x40] sm:$0xfe]
        %v252 = vld [vmem:[%s181 + $0x48] sm:$0xfe]
        %v253 = vld [vmem:[%s181 + $0x50] sm:$0x1]
        %v254 = vld [vmem:[%s181 + $0x58] sm:$0x1]
        %v255 = vld [vmem:[%s181 + $0x60] sm:$0xfe]
        %v256 = vld [vmem:[%s181 + $0x68] sm:$0xfe]
        %v257 = vld [vmem:[%s181 + $0x70] sm:$0x1]
        %v258 = vld [vmem:[%s181 + $0x78] sm:$0x1]
        %v259 = vld [vmem:[%s181 + $0x80] sm:$0xfe]
        %v260 = vld [vmem:[%s181 + $0x88] sm:$0xfe]
        %v261 = vld [vmem:[%s181 + $0x90] sm:$0x1]
        %v262 = vld [vmem:[%s181 + $0x98] sm:$0x1]
        %v263 = vld [vmem:[%s181 + $0xa0] sm:$0xfe]
        %v264 = vld [vmem:[%s181 + $0xa8] sm:$0xfe]
        %v265 = vld [vmem:[%s181 + $0xb0] sm:$0x1]
        %v266 = vld [vmem:[%s181 + $0xb8] sm:$0x1]
        %v267 = vld [vmem:[%s181 + $0xc0] sm:$0xfe]
        %v268 = vld [vmem:[%s181 + $0xc8] sm:$0xfe]
        %v269 = vld [vmem:[%s181 + $0xd0] sm:$0x1]
        %v270 = vld [vmem:[%s181 + $0xd8] sm:$0x1]
        %v271 = vld [vmem:[%s181 + $0xe0] sm:$0xfe]
        %v272 = vld [vmem:[%s181 + $0xe8] sm:$0xfe]
        %v273 = vld [vmem:[%s181 + $0xf0] sm:$0x1]
        %v274 = vld [vmem:[%s181 + $0xf8] sm:$0x1]
        %v276 = vlaneseq
        %v277 = vshrl.u32 %v276, 7
        %v278 = vsub.s32 0, %v277
        %v279 = vrot.slane %v242, %v278
        %v280 = vlaneseq
        %v281 = vshrl.u32 %v280, 7
        %v282 = vsub.s32 1, %v281
        %v283 = vrot.slane %v242, %v282
        %v286 = vmul.f32 %v243, %v279
        %v287 = vmul.f32 %v244, %v283
        %v288 = vmul.f32 %v245, %v279
        %v289 = vmul.f32 %v246, %v283
        %v290 = vmul.f32 %v247, %v279
        %v291 = vmul.f32 %v248, %v283
        %v292 = vmul.f32 %v249, %v279
        %v293 = vmul.f32 %v250, %v283
        %v294 = vmul.f32 %v251, %v279
        %v295 = vmul.f32 %v252, %v283
        %v296 = vmul.f32 %v253, %v279
        %v297 = vmul.f32 %v254, %v283
        %v298 = vmul.f32 %v255, %v279
        %v299 = vmul.f32 %v256, %v283
        %v300 = vmul.f32 %v257, %v279
        %v301 = vmul.f32 %v258, %v283
        %v302 = vmul.f32 %v259, %v279
        %v303 = vmul.f32 %v260, %v283
        %v304 = vmul.f32 %v261, %v279
        %v305 = vmul.f32 %v262, %v283
        %v306 = vmul.f32 %v263, %v279
        %v307 = vmul.f32 %v264, %v283
        %v308 = vmul.f32 %v265, %v279
        %v309 = vmul.f32 %v266, %v283
        %v310 = vmul.f32 %v267, %v279
        %v311 = vmul.f32 %v268, %v283
        %v312 = vmul.f32 %v269, %v279
        %v313 = vmul.f32 %v270, %v283
        %v314 = vmul.f32 %v271, %v279
        %v315 = vmul.f32 %v272, %v283
        %v316 = vmul.f32 %v273, %v279
        %v317 = vmul.f32 %v274, %v283
        %vm350 = vcmask 1046528
        %v351 = vrot.slane %v286, 1
        %v352 = vrot.slane %v288, 1
        %v353 = vsel %vm350, %v351, %v352
        %v354 = vrot.slane %v287, 1
        %v355 = vrot.slane %v289, 1
        %v356 = vsel %vm350, %v354, %v355
        %v357 = vrot.slane %v290, 1
        %v358 = vrot.slane %v292, 1
        %v359 = vsel %vm350, %v357, %v358
        %v360 = vrot.slane %v291, 1
        %v361 = vrot.slane %v293, 1
        %v362 = vsel %vm350, %v360, %v361
        %v363 = vrot.slane %v294, 1
        %v364 = vrot.slane %v296, 1
        %v365 = vsel %vm350, %v363, %v364
        %v366 = vrot.slane %v295, 1
        %v367 = vrot.slane %v297, 1
        %v368 = vsel %vm350, %v366, %v367
        %v369 = vrot.slane %v298, 1
        %v370 = vrot.slane %v300, 1
        %v371 = vsel %vm350, %v369, %v370
        %v372 = vrot.slane %v299, 1
        %v373 = vrot.slane %v301, 1
        %v374 = vsel %vm350, %v372, %v373
        %v375 = vrot.slane %v302, 1
        %v376 = vrot.slane %v304, 1
        %v377 = vsel %vm350, %v375, %v376
        %v378 = vrot.slane %v303, 1
        %v379 = vrot.slane %v305, 1
        %v380 = vsel %vm350, %v378, %v379
        %v381 = vrot.slane %v306, 1
        %v382 = vrot.slane %v308, 1
        %v383 = vsel %vm350, %v381, %v382
        %v384 = vrot.slane %v307, 1
        %v385 = vrot.slane %v309, 1
        %v386 = vsel %vm350, %v384, %v385
        %v387 = vrot.slane %v310, 1
        %v388 = vrot.slane %v312, 1
        %v389 = vsel %vm350, %v387, %v388
        %v390 = vrot.slane %v311, 1
        %v391 = vrot.slane %v313, 1
        %v392 = vsel %vm350, %v390, %v391
        %v393 = vrot.slane %v314, 1
        %v394 = vrot.slane %v316, 1
        %v395 = vsel %vm350, %v393, %v394
        %v396 = vrot.slane %v315, 1
        %v397 = vrot.slane %v317, 1
        %v398 = vsel %vm350, %v396, %v397
        %v415 = vadd.f32 %v225, %v353
        %v416 = vadd.f32 %v226, %v356
        %v417 = vadd.f32 %v227, %v359
        %v418 = vadd.f32 %v228, %v362
        %v419 = vadd.f32 %v229, %v365
        %v420 = vadd.f32 %v230, %v368
        %v421 = vadd.f32 %v231, %v371
        %v422 = vadd.f32 %v232, %v374
        %v423 = vadd.f32 %v233, %v377
        %v424 = vadd.f32 %v234, %v380
        %v425 = vadd.f32 %v235, %v383
        %v426 = vadd.f32 %v236, %v386
        %v427 = vadd.f32 %v237, %v389
        %v428 = vadd.f32 %v238, %v392
        %v429 = vadd.f32 %v239, %v395
        %v430 = vadd.f32 %v240, %v398
        %s431 = scalar_lea.vmem %s1, 2
        %v432 = vld [vmem:[%s431] ss:$8 sm:$0x3]
        %v433 = vld [vmem:[%s181] sm:$0xfc]
        %v434 = vld [vmem:[%s181 + $0x8] sm:$0xfc]
        %v435 = vld [vmem:[%s181 + $0x10] sm:$0x3]
        %v436 = vld [vmem:[%s181 + $0x18] sm:$0x3]
        %v437 = vld [vmem:[%s181 + $0x20] sm:$0xfc]
        %v438 = vld [vmem:[%s181 + $0x28] sm:$0xfc]
        %v439 = vld [vmem:[%s181 + $0x30] sm:$0x3]
        %v440 = vld [vmem:[%s181 + $0x38] sm:$0x3]
        %v441 = vld [vmem:[%s181 + $0x40] sm:$0xfc]
        %v442 = vld [vmem:[%s181 + $0x48] sm:$0xfc]
        %v443 = vld [vmem:[%s181 + $0x50] sm:$0x3]
        %v444 = vld [vmem:[%s181 + $0x58] sm:$0x3]
        %v445 = vld [vmem:[%s181 + $0x60] sm:$0xfc]
        %v446 = vld [vmem:[%s181 + $0x68] sm:$0xfc]
        %v447 = vld [vmem:[%s181 + $0x70] sm:$0x3]
        %v448 = vld [vmem:[%s181 + $0x78] sm:$0x3]
        %v449 = vld [vmem:[%s181 + $0x80] sm:$0xfc]
        %v450 = vld [vmem:[%s181 + $0x88] sm:$0xfc]
        %v451 = vld [vmem:[%s181 + $0x90] sm:$0x3]
        %v452 = vld [vmem:[%s181 + $0x98] sm:$0x3]
        %v453 = vld [vmem:[%s181 + $0xa0] sm:$0xfc]
        %v454 = vld [vmem:[%s181 + $0xa8] sm:$0xfc]
        %v455 = vld [vmem:[%s181 + $0xb0] sm:$0x3]
        %v456 = vld [vmem:[%s181 + $0xb8] sm:$0x3]
        %v457 = vld [vmem:[%s181 + $0xc0] sm:$0xfc]
        %v458 = vld [vmem:[%s181 + $0xc8] sm:$0xfc]
        %v459 = vld [vmem:[%s181 + $0xd0] sm:$0x3]
        %v460 = vld [vmem:[%s181 + $0xd8] sm:$0x3]
        %v461 = vld [vmem:[%s181 + $0xe0] sm:$0xfc]
        %v462 = vld [vmem:[%s181 + $0xe8] sm:$0xfc]
        %v463 = vld [vmem:[%s181 + $0xf0] sm:$0x3]
        %v464 = vld [vmem:[%s181 + $0xf8] sm:$0x3]
        %v466 = vlaneseq
        %v467 = vshrl.u32 %v466, 7
        %v468 = vsub.s32 0, %v467
        %v469 = vrot.slane %v432, %v468
        %v470 = vlaneseq
        %v471 = vshrl.u32 %v470, 7
        %v472 = vsub.s32 1, %v471
        %v473 = vrot.slane %v432, %v472
        %v476 = vmul.f32 %v433, %v469
        %v477 = vmul.f32 %v434, %v473
        %v478 = vmul.f32 %v435, %v469
        %v479 = vmul.f32 %v436, %v473
        %v480 = vmul.f32 %v437, %v469
        %v481 = vmul.f32 %v438, %v473
        %v482 = vmul.f32 %v439, %v469
        %v483 = vmul.f32 %v440, %v473
        %v484 = vmul.f32 %v441, %v469
        %v485 = vmul.f32 %v442, %v473
        %v486 = vmul.f32 %v443, %v469
        %v487 = vmul.f32 %v444, %v473
        %v488 = vmul.f32 %v445, %v469
        %v489 = vmul.f32 %v446, %v473
        %v490 = vmul.f32 %v447, %v469
        %v491 = vmul.f32 %v448, %v473
        %v492 = vmul.f32 %v449, %v469
        %v493 = vmul.f32 %v450, %v473
        %v494 = vmul.f32 %v451, %v469
        %v495 = vmul.f32 %v452, %v473
        %v496 = vmul.f32 %v453, %v469
        %v497 = vmul.f32 %v454, %v473
        %v498 = vmul.f32 %v455, %v469
        %v499 = vmul.f32 %v456, %v473
        %v500 = vmul.f32 %v457, %v469
        %v501 = vmul.f32 %v458, %v473
        %v502 = vmul.f32 %v459, %v469
        %v503 = vmul.f32 %v460, %v473
        %v504 = vmul.f32 %v461, %v469
        %v505 = vmul.f32 %v462, %v473
        %v506 = vmul.f32 %v463, %v469
        %v507 = vmul.f32 %v464, %v473
        %vm540 = vcmask 1045504
        %v541 = vrot.slane %v476, 2
        %v542 = vrot.slane %v478, 2
        %v543 = vsel %vm540, %v541, %v542
        %v544 = vrot.slane %v477, 2
        %v545 = vrot.slane %v479, 2
        %v546 = vsel %vm540, %v544, %v545
        %v547 = vrot.slane %v480, 2
        %v548 = vrot.slane %v482, 2
        %v549 = vsel %vm540, %v547, %v548
        %v550 = vrot.slane %v481, 2
        %v551 = vrot.slane %v483, 2
        %v552 = vsel %vm540, %v550, %v551
        %v553 = vrot.slane %v484, 2
        %v554 = vrot.slane %v486, 2
        %v555 = vsel %vm540, %v553, %v554
        %v556 = vrot.slane %v485, 2
        %v557 = vrot.slane %v487, 2
        %v558 = vsel %vm540, %v556, %v557
        %v559 = vrot.slane %v488, 2
        %v560 = vrot.slane %v490, 2
        %v561 = vsel %vm540, %v559, %v560
        %v562 = vrot.slane %v489, 2
        %v563 = vrot.slane %v491, 2
        %v564 = vsel %vm540, %v562, %v563
        %v565 = vrot.slane %v492, 2
        %v566 = vrot.slane %v494, 2
        %v567 = vsel %vm540, %v565, %v566
        %v568 = vrot.slane %v493, 2
        %v569 = vrot.slane %v495, 2
        %v570 = vsel %vm540, %v568, %v569
        %v571 = vrot.slane %v496, 2
        %v572 = vrot.slane %v498, 2
        %v573 = vsel %vm540, %v571, %v572
        %v574 = vrot.slane %v497, 2
        %v575 = vrot.slane %v499, 2
        %v576 = vsel %vm540, %v574, %v575
        %v577 = vrot.slane %v500, 2
        %v578 = vrot.slane %v502, 2
        %v579 = vsel %vm540, %v577, %v578
        %v580 = vrot.slane %v501, 2
        %v581 = vrot.slane %v503, 2
        %v582 = vsel %vm540, %v580, %v581
        %v583 = vrot.slane %v504, 2
        %v584 = vrot.slane %v506, 2
        %v585 = vsel %vm540, %v583, %v584
        %v586 = vrot.slane %v505, 2
        %v587 = vrot.slane %v507, 2
        %v588 = vsel %vm540, %v586, %v587
        %v605 = vadd.f32 %v415, %v543
        %v606 = vadd.f32 %v416, %v546
        %v607 = vadd.f32 %v417, %v549
        %v608 = vadd.f32 %v418, %v552
        %v609 = vadd.f32 %v419, %v555
        %v610 = vadd.f32 %v420, %v558
        %v611 = vadd.f32 %v421, %v561
        %v612 = vadd.f32 %v422, %v564
        %v613 = vadd.f32 %v423, %v567
        %v614 = vadd.f32 %v424, %v570
        %v615 = vadd.f32 %v425, %v573
        %v616 = vadd.f32 %v426, %v576
        %v617 = vadd.f32 %v427, %v579
        %v618 = vadd.f32 %v428, %v582
        %v619 = vadd.f32 %v429, %v585
        %v620 = vadd.f32 %v430, %v588
        %s621 = scalar_lea.vmem %s1, 3
        %v622 = vld [vmem:[%s621] ss:$8 sm:$0x3]
        %s623 = sadd.s32 4, %s179
        %s624 = smul.addr %s623, 8
        %s625 = scalar_lea.vmem %s165, %s624
        %v626 = vld [vmem:[%s625] sm:$0xff]
        %v627 = vld [vmem:[%s625 + $0x8] sm:$0xff]
        %v628 = vld [vmem:[%s625 + $0x20] sm:$0xff]
        %v629 = vld [vmem:[%s625 + $0x28] sm:$0xff]
        %v630 = vld [vmem:[%s625 + $0x40] sm:$0xff]
        %v631 = vld [vmem:[%s625 + $0x48] sm:$0xff]
        %v632 = vld [vmem:[%s625 + $0x60] sm:$0xff]
        %v633 = vld [vmem:[%s625 + $0x68] sm:$0xff]
        %v634 = vld [vmem:[%s625 + $0x80] sm:$0xff]
        %v635 = vld [vmem:[%s625 + $0x88] sm:$0xff]
        %v636 = vld [vmem:[%s625 + $0xa0] sm:$0xff]
        %v637 = vld [vmem:[%s625 + $0xa8] sm:$0xff]
        %v638 = vld [vmem:[%s625 + $0xc0] sm:$0xff]
        %v639 = vld [vmem:[%s625 + $0xc8] sm:$0xff]
        %v640 = vld [vmem:[%s625 + $0xe0] sm:$0xff]
        %v641 = vld [vmem:[%s625 + $0xe8] sm:$0xff]
        %v643 = vlaneseq
        %v644 = vshrl.u32 %v643, 7
        %v645 = vsub.s32 0, %v644
        %v646 = vrot.slane %v622, %v645
        %v647 = vlaneseq
        %v648 = vshrl.u32 %v647, 7
        %v649 = vsub.s32 1, %v648
        %v650 = vrot.slane %v622, %v649
        %v653 = vmul.f32 %v626, %v646
        %v654 = vmul.f32 %v627, %v650
        %v655 = vmul.f32 %v628, %v646
        %v656 = vmul.f32 %v629, %v650
        %v657 = vmul.f32 %v630, %v646
        %v658 = vmul.f32 %v631, %v650
        %v659 = vmul.f32 %v632, %v646
        %v660 = vmul.f32 %v633, %v650
        %v661 = vmul.f32 %v634, %v646
        %v662 = vmul.f32 %v635, %v650
        %v663 = vmul.f32 %v636, %v646
        %v664 = vmul.f32 %v637, %v650
        %v665 = vmul.f32 %v638, %v646
        %v666 = vmul.f32 %v639, %v650
        %v667 = vmul.f32 %v640, %v646
        %v668 = vmul.f32 %v641, %v650
        %v669 = vadd.f32 %v605, %v653
        %v670 = vadd.f32 %v606, %v654
        %v671 = vadd.f32 %v607, %v655
        %v672 = vadd.f32 %v608, %v656
        %v673 = vadd.f32 %v609, %v657
        %v674 = vadd.f32 %v610, %v658
        %v675 = vadd.f32 %v611, %v659
        %v676 = vadd.f32 %v612, %v660
        %v677 = vadd.f32 %v613, %v661
        %v678 = vadd.f32 %v614, %v662
        %v679 = vadd.f32 %v615, %v663
        %v680 = vadd.f32 %v616, %v664
        %v681 = vadd.f32 %v617, %v665
        %v682 = vadd.f32 %v618, %v666
        %v683 = vadd.f32 %v619, %v667
        %v684 = vadd.f32 %v620, %v668
        %s685 = scalar_lea.vmem %s1, 4
        %v686 = vld [vmem:[%s685] ss:$8 sm:$0x3]
        %v687 = vld [vmem:[%s625] sm:$0xfe]
        %v688 = vld [vmem:[%s625 + $0x8] sm:$0xfe]
        %v689 = vld [vmem:[%s625 + $0x10] sm:$0x1]
        %v690 = vld [vmem:[%s625 + $0x18] sm:$0x1]
        %v691 = vld [vmem:[%s625 + $0x20] sm:$0xfe]
        %v692 = vld [vmem:[%s625 + $0x28] sm:$0xfe]
        %v693 = vld [vmem:[%s625 + $0x30] sm:$0x1]
        %v694 = vld [vmem:[%s625 + $0x38] sm:$0x1]
        %v695 = vld [vmem:[%s625 + $0x40] sm:$0xfe]
        %v696 = vld [vmem:[%s625 + $0x48] sm:$0xfe]
        %v697 = vld [vmem:[%s625 + $0x50] sm:$0x1]
        %v698 = vld [vmem:[%s625 + $0x58] sm:$0x1]
        %v699 = vld [vmem:[%s625 + $0x60] sm:$0xfe]
        %v700 = vld [vmem:[%s625 + $0x68] sm:$0xfe]
        %v701 = vld [vmem:[%s625 + $0x70] sm:$0x1]
        %v702 = vld [vmem:[%s625 + $0x78] sm:$0x1]
        %v703 = vld [vmem:[%s625 + $0x80] sm:$0xfe]
        %v704 = vld [vmem:[%s625 + $0x88] sm:$0xfe]
        %v705 = vld [vmem:[%s625 + $0x90] sm:$0x1]
        %v706 = vld [vmem:[%s625 + $0x98] sm:$0x1]
        %v707 = vld [vmem:[%s625 + $0xa0] sm:$0xfe]
        %v708 = vld [vmem:[%s625 + $0xa8] sm:$0xfe]
        %v709 = vld [vmem:[%s625 + $0xb0] sm:$0x1]
        %v710 = vld [vmem:[%s625 + $0xb8] sm:$0x1]
        %v711 = vld [vmem:[%s625 + $0xc0] sm:$0xfe]
        %v712 = vld [vmem:[%s625 + $0xc8] sm:$0xfe]
        %v713 = vld [vmem:[%s625 + $0xd0] sm:$0x1]
        %v714 = vld [vmem:[%s625 + $0xd8] sm:$0x1]
        %v715 = vld [vmem:[%s625 + $0xe0] sm:$0xfe]
        %v716 = vld [vmem:[%s625 + $0xe8] sm:$0xfe]
        %v717 = vld [vmem:[%s625 + $0xf0] sm:$0x1]
        %v718 = vld [vmem:[%s625 + $0xf8] sm:$0x1]
        %v720 = vlaneseq
        %v721 = vshrl.u32 %v720, 7
        %v722 = vsub.s32 0, %v721
        %v723 = vrot.slane %v686, %v722
        %v724 = vlaneseq
        %v725 = vshrl.u32 %v724, 7
        %v726 = vsub.s32 1, %v725
        %v727 = vrot.slane %v686, %v726
        %v730 = vmul.f32 %v687, %v723
        %v731 = vmul.f32 %v688, %v727
        %v732 = vmul.f32 %v689, %v723
        %v733 = vmul.f32 %v690, %v727
        %v734 = vmul.f32 %v691, %v723
        %v735 = vmul.f32 %v692, %v727
        %v736 = vmul.f32 %v693, %v723
        %v737 = vmul.f32 %v694, %v727
        %v738 = vmul.f32 %v695, %v723
        %v739 = vmul.f32 %v696, %v727
        %v740 = vmul.f32 %v697, %v723
        %v741 = vmul.f32 %v698, %v727
        %v742 = vmul.f32 %v699, %v723
        %v743 = vmul.f32 %v700, %v727
        %v744 = vmul.f32 %v701, %v723
        %v745 = vmul.f32 %v702, %v727
        %v746 = vmul.f32 %v703, %v723
        %v747 = vmul.f32 %v704, %v727
        %v748 = vmul.f32 %v705, %v723
        %v749 = vmul.f32 %v706, %v727
        %v750 = vmul.f32 %v707, %v723
        %v751 = vmul.f32 %v708, %v727
        %v752 = vmul.f32 %v709, %v723
        %v753 = vmul.f32 %v710, %v727
        %v754 = vmul.f32 %v711, %v723
        %v755 = vmul.f32 %v712, %v727
        %v756 = vmul.f32 %v713, %v723
        %v757 = vmul.f32 %v714, %v727
        %v758 = vmul.f32 %v715, %v723
        %v759 = vmul.f32 %v716, %v727
        %v760 = vmul.f32 %v717, %v723
        %v761 = vmul.f32 %v718, %v727
        %v794 = vrot.slane %v730, 1
        %v795 = vrot.slane %v732, 1
        %v796 = vsel %vm350, %v794, %v795
        %v797 = vrot.slane %v731, 1
        %v798 = vrot.slane %v733, 1
        %v799 = vsel %vm350, %v797, %v798
        %v800 = vrot.slane %v734, 1
        %v801 = vrot.slane %v736, 1
        %v802 = vsel %vm350, %v800, %v801
        %v803 = vrot.slane %v735, 1
        %v804 = vrot.slane %v737, 1
        %v805 = vsel %vm350, %v803, %v804
        %v806 = vrot.slane %v738, 1
        %v807 = vrot.slane %v740, 1
        %v808 = vsel %vm350, %v806, %v807
        %v809 = vrot.slane %v739, 1
        %v810 = vrot.slane %v741, 1
        %v811 = vsel %vm350, %v809, %v810
        %v812 = vrot.slane %v742, 1
        %v813 = vrot.slane %v744, 1
        %v814 = vsel %vm350, %v812, %v813
        %v815 = vrot.slane %v743, 1
        %v816 = vrot.slane %v745, 1
        %v817 = vsel %vm350, %v815, %v816
        %v818 = vrot.slane %v746, 1
        %v819 = vrot.slane %v748, 1
        %v820 = vsel %vm350, %v818, %v819
        %v821 = vrot.slane %v747, 1
        %v822 = vrot.slane %v749, 1
        %v823 = vsel %vm350, %v821, %v822
        %v824 = vrot.slane %v750, 1
        %v825 = vrot.slane %v752, 1
        %v826 = vsel %vm350, %v824, %v825
        %v827 = vrot.slane %v751, 1
        %v828 = vrot.slane %v753, 1
        %v829 = vsel %vm350, %v827, %v828
        %v830 = vrot.slane %v754, 1
        %v831 = vrot.slane %v756, 1
        %v832 = vsel %vm350, %v830, %v831
        %v833 = vrot.slane %v755, 1
        %v834 = vrot.slane %v757, 1
        %v835 = vsel %vm350, %v833, %v834
        %v836 = vrot.slane %v758, 1
        %v837 = vrot.slane %v760, 1
        %v838 = vsel %vm350, %v836, %v837
        %v839 = vrot.slane %v759, 1
        %v840 = vrot.slane %v761, 1
        %v841 = vsel %vm350, %v839, %v840
        %v858 = vadd.f32 %v669, %v796
        %v859 = vadd.f32 %v670, %v799
        %v860 = vadd.f32 %v671, %v802
        %v861 = vadd.f32 %v672, %v805
        %v862 = vadd.f32 %v673, %v808
        %v863 = vadd.f32 %v674, %v811
        %v864 = vadd.f32 %v675, %v814
        %v865 = vadd.f32 %v676, %v817
        %v866 = vadd.f32 %v677, %v820
        %v867 = vadd.f32 %v678, %v823
        %v868 = vadd.f32 %v679, %v826
        %v869 = vadd.f32 %v680, %v829
        %v870 = vadd.f32 %v681, %v832
        %v871 = vadd.f32 %v682, %v835
        %v872 = vadd.f32 %v683, %v838
        %v873 = vadd.f32 %v684, %v841
        %s874 = scalar_lea.vmem %s1, 5
        %v875 = vld [vmem:[%s874] ss:$8 sm:$0x3]
        %v876 = vld [vmem:[%s625] sm:$0xfc]
        %v877 = vld [vmem:[%s625 + $0x8] sm:$0xfc]
        %v878 = vld [vmem:[%s625 + $0x10] sm:$0x3]
        %v879 = vld [vmem:[%s625 + $0x18] sm:$0x3]
        %v880 = vld [vmem:[%s625 + $0x20] sm:$0xfc]
        %v881 = vld [vmem:[%s625 + $0x28] sm:$0xfc]
        %v882 = vld [vmem:[%s625 + $0x30] sm:$0x3]
        %v883 = vld [vmem:[%s625 + $0x38] sm:$0x3]
        %v884 = vld [vmem:[%s625 + $0x40] sm:$0xfc]
        %v885 = vld [vmem:[%s625 + $0x48] sm:$0xfc]
        %v886 = vld [vmem:[%s625 + $0x50] sm:$0x3]
        %v887 = vld [vmem:[%s625 + $0x58] sm:$0x3]
        %v888 = vld [vmem:[%s625 + $0x60] sm:$0xfc]
        %v889 = vld [vmem:[%s625 + $0x68] sm:$0xfc]
        %v890 = vld [vmem:[%s625 + $0x70] sm:$0x3]
        %v891 = vld [vmem:[%s625 + $0x78] sm:$0x3]
        %v892 = vld [vmem:[%s625 + $0x80] sm:$0xfc]
        %v893 = vld [vmem:[%s625 + $0x88] sm:$0xfc]
        %v894 = vld [vmem:[%s625 + $0x90] sm:$0x3]
        %v895 = vld [vmem:[%s625 + $0x98] sm:$0x3]
        %v896 = vld [vmem:[%s625 + $0xa0] sm:$0xfc]
        %v897 = vld [vmem:[%s625 + $0xa8] sm:$0xfc]
        %v898 = vld [vmem:[%s625 + $0xb0] sm:$0x3]
        %v899 = vld [vmem:[%s625 + $0xb8] sm:$0x3]
        %v900 = vld [vmem:[%s625 + $0xc0] sm:$0xfc]
        %v901 = vld [vmem:[%s625 + $0xc8] sm:$0xfc]
        %v902 = vld [vmem:[%s625 + $0xd0] sm:$0x3]
        %v903 = vld [vmem:[%s625 + $0xd8] sm:$0x3]
        %v904 = vld [vmem:[%s625 + $0xe0] sm:$0xfc]
        %v905 = vld [vmem:[%s625 + $0xe8] sm:$0xfc]
        %v906 = vld [vmem:[%s625 + $0xf0] sm:$0x3]
        %v907 = vld [vmem:[%s625 + $0xf8] sm:$0x3]
        %v909 = vlaneseq
        %v910 = vshrl.u32 %v909, 7
        %v911 = vsub.s32 0, %v910
        %v912 = vrot.slane %v875, %v911
        %v913 = vlaneseq
        %v914 = vshrl.u32 %v913, 7
        %v915 = vsub.s32 1, %v914
        %v916 = vrot.slane %v875, %v915
        %v919 = vmul.f32 %v876, %v912
        %v920 = vmul.f32 %v877, %v916
        %v921 = vmul.f32 %v878, %v912
        %v922 = vmul.f32 %v879, %v916
        %v923 = vmul.f32 %v880, %v912
        %v924 = vmul.f32 %v881, %v916
        %v925 = vmul.f32 %v882, %v912
        %v926 = vmul.f32 %v883, %v916
        %v927 = vmul.f32 %v884, %v912
        %v928 = vmul.f32 %v885, %v916
        %v929 = vmul.f32 %v886, %v912
        %v930 = vmul.f32 %v887, %v916
        %v931 = vmul.f32 %v888, %v912
        %v932 = vmul.f32 %v889, %v916
        %v933 = vmul.f32 %v890, %v912
        %v934 = vmul.f32 %v891, %v916
        %v935 = vmul.f32 %v892, %v912
        %v936 = vmul.f32 %v893, %v916
        %v937 = vmul.f32 %v894, %v912
        %v938 = vmul.f32 %v895, %v916
        %v939 = vmul.f32 %v896, %v912
        %v940 = vmul.f32 %v897, %v916
        %v941 = vmul.f32 %v898, %v912
        %v942 = vmul.f32 %v899, %v916
        %v943 = vmul.f32 %v900, %v912
        %v944 = vmul.f32 %v901, %v916
        %v945 = vmul.f32 %v902, %v912
        %v946 = vmul.f32 %v903, %v916
        %v947 = vmul.f32 %v904, %v912
        %v948 = vmul.f32 %v905, %v916
        %v949 = vmul.f32 %v906, %v912
        %v950 = vmul.f32 %v907, %v916
        %v983 = vrot.slane %v919, 2
        %v984 = vrot.slane %v921, 2
        %v985 = vsel %vm540, %v983, %v984
        %v986 = vrot.slane %v920, 2
        %v987 = vrot.slane %v922, 2
        %v988 = vsel %vm540, %v986, %v987
        %v989 = vrot.slane %v923, 2
        %v990 = vrot.slane %v925, 2
        %v991 = vsel %vm540, %v989, %v990
        %v992 = vrot.slane %v924, 2
        %v993 = vrot.slane %v926, 2
        %v994 = vsel %vm540, %v992, %v993
        %v995 = vrot.slane %v927, 2
        %v996 = vrot.slane %v929, 2
        %v997 = vsel %vm540, %v995, %v996
        %v998 = vrot.slane %v928, 2
        %v999 = vrot.slane %v930, 2
        %v1000 = vsel %vm540, %v998, %v999
        %v1001 = vrot.slane %v931, 2
        %v1002 = vrot.slane %v933, 2
        %v1003 = vsel %vm540, %v1001, %v1002
        %v1004 = vrot.slane %v932, 2
        %v1005 = vrot.slane %v934, 2
        %v1006 = vsel %vm540, %v1004, %v1005
        %v1007 = vrot.slane %v935, 2
        %v1008 = vrot.slane %v937, 2
        %v1009 = vsel %vm540, %v1007, %v1008
        %v1010 = vrot.slane %v936, 2
        %v1011 = vrot.slane %v938, 2
        %v1012 = vsel %vm540, %v1010, %v1011
        %v1013 = vrot.slane %v939, 2
        %v1014 = vrot.slane %v941, 2
        %v1015 = vsel %vm540, %v1013, %v1014
        %v1016 = vrot.slane %v940, 2
        %v1017 = vrot.slane %v942, 2
        %v1018 = vsel %vm540, %v1016, %v1017
        %v1019 = vrot.slane %v943, 2
        %v1020 = vrot.slane %v945, 2
        %v1021 = vsel %vm540, %v1019, %v1020
        %v1022 = vrot.slane %v944, 2
        %v1023 = vrot.slane %v946, 2
        %v1024 = vsel %vm540, %v1022, %v1023
        %v1025 = vrot.slane %v947, 2
        %v1026 = vrot.slane %v949, 2
        %v1027 = vsel %vm540, %v1025, %v1026
        %v1028 = vrot.slane %v948, 2
        %v1029 = vrot.slane %v950, 2
        %v1030 = vsel %vm540, %v1028, %v1029
        %v1047 = vadd.f32 %v858, %v985
        %v1048 = vadd.f32 %v859, %v988
        %v1049 = vadd.f32 %v860, %v991
        %v1050 = vadd.f32 %v861, %v994
        %v1051 = vadd.f32 %v862, %v997
        %v1052 = vadd.f32 %v863, %v1000
        %v1053 = vadd.f32 %v864, %v1003
        %v1054 = vadd.f32 %v865, %v1006
        %v1055 = vadd.f32 %v866, %v1009
        %v1056 = vadd.f32 %v867, %v1012
        %v1057 = vadd.f32 %v868, %v1015
        %v1058 = vadd.f32 %v869, %v1018
        %v1059 = vadd.f32 %v870, %v1021
        %v1060 = vadd.f32 %v871, %v1024
        %v1061 = vadd.f32 %v872, %v1027
        %v1062 = vadd.f32 %v873, %v1030
        %s1063 = scalar_lea.vmem %s1, 6
        %v1064 = vld [vmem:[%s1063] ss:$8 sm:$0x3]
        %s1065 = sadd.s32 8, %s179
        %s1066 = smul.addr %s1065, 8
        %s1067 = scalar_lea.vmem %s165, %s1066
        %v1068 = vld [vmem:[%s1067] sm:$0xff]
        %v1069 = vld [vmem:[%s1067 + $0x8] sm:$0xff]
        %v1070 = vld [vmem:[%s1067 + $0x20] sm:$0xff]
        %v1071 = vld [vmem:[%s1067 + $0x28] sm:$0xff]
        %v1072 = vld [vmem:[%s1067 + $0x40] sm:$0xff]
        %v1073 = vld [vmem:[%s1067 + $0x48] sm:$0xff]
        %v1074 = vld [vmem:[%s1067 + $0x60] sm:$0xff]
        %v1075 = vld [vmem:[%s1067 + $0x68] sm:$0xff]
        %v1076 = vld [vmem:[%s1067 + $0x80] sm:$0xff]
        %v1077 = vld [vmem:[%s1067 + $0x88] sm:$0xff]
        %v1078 = vld [vmem:[%s1067 + $0xa0] sm:$0xff]
        %v1079 = vld [vmem:[%s1067 + $0xa8] sm:$0xff]
        %v1080 = vld [vmem:[%s1067 + $0xc0] sm:$0xff]
        %v1081 = vld [vmem:[%s1067 + $0xc8] sm:$0xff]
        %v1082 = vld [vmem:[%s1067 + $0xe0] sm:$0xff]
        %v1083 = vld [vmem:[%s1067 + $0xe8] sm:$0xff]
        %v1085 = vlaneseq
        %v1086 = vshrl.u32 %v1085, 7
        %v1087 = vsub.s32 0, %v1086
        %v1088 = vrot.slane %v1064, %v1087
        %v1089 = vlaneseq
        %v1090 = vshrl.u32 %v1089, 7
        %v1091 = vsub.s32 1, %v1090
        %v1092 = vrot.slane %v1064, %v1091
        %v1095 = vmul.f32 %v1068, %v1088
        %v1096 = vmul.f32 %v1069, %v1092
        %v1097 = vmul.f32 %v1070, %v1088
        %v1098 = vmul.f32 %v1071, %v1092
        %v1099 = vmul.f32 %v1072, %v1088
        %v1100 = vmul.f32 %v1073, %v1092
        %v1101 = vmul.f32 %v1074, %v1088
        %v1102 = vmul.f32 %v1075, %v1092
        %v1103 = vmul.f32 %v1076, %v1088
        %v1104 = vmul.f32 %v1077, %v1092
        %v1105 = vmul.f32 %v1078, %v1088
        %v1106 = vmul.f32 %v1079, %v1092
        %v1107 = vmul.f32 %v1080, %v1088
        %v1108 = vmul.f32 %v1081, %v1092
        %v1109 = vmul.f32 %v1082, %v1088
        %v1110 = vmul.f32 %v1083, %v1092
        %v1111 = vadd.f32 %v1047, %v1095
        %v1112 = vadd.f32 %v1048, %v1096
        %v1113 = vadd.f32 %v1049, %v1097
        %v1114 = vadd.f32 %v1050, %v1098
        %v1115 = vadd.f32 %v1051, %v1099
        %v1116 = vadd.f32 %v1052, %v1100
        %v1117 = vadd.f32 %v1053, %v1101
        %v1118 = vadd.f32 %v1054, %v1102
        %v1119 = vadd.f32 %v1055, %v1103
        %v1120 = vadd.f32 %v1056, %v1104
        %v1121 = vadd.f32 %v1057, %v1105
        %v1122 = vadd.f32 %v1058, %v1106
        %v1123 = vadd.f32 %v1059, %v1107
        %v1124 = vadd.f32 %v1060, %v1108
        %v1125 = vadd.f32 %v1061, %v1109
        %v1126 = vadd.f32 %v1062, %v1110
        %s1127 = scalar_lea.vmem %s1, 7
        %v1128 = vld [vmem:[%s1127] ss:$8 sm:$0x3]
        %v1129 = vld [vmem:[%s1067] sm:$0xfe]
        %v1130 = vld [vmem:[%s1067 + $0x8] sm:$0xfe]
        %v1131 = vld [vmem:[%s1067 + $0x10] sm:$0x1]
        %v1132 = vld [vmem:[%s1067 + $0x18] sm:$0x1]
        %v1133 = vld [vmem:[%s1067 + $0x20] sm:$0xfe]
        %v1134 = vld [vmem:[%s1067 + $0x28] sm:$0xfe]
        %v1135 = vld [vmem:[%s1067 + $0x30] sm:$0x1]
        %v1136 = vld [vmem:[%s1067 + $0x38] sm:$0x1]
        %v1137 = vld [vmem:[%s1067 + $0x40] sm:$0xfe]
        %v1138 = vld [vmem:[%s1067 + $0x48] sm:$0xfe]
        %v1139 = vld [vmem:[%s1067 + $0x50] sm:$0x1]
        %v1140 = vld [vmem:[%s1067 + $0x58] sm:$0x1]
        %v1141 = vld [vmem:[%s1067 + $0x60] sm:$0xfe]
        %v1142 = vld [vmem:[%s1067 + $0x68] sm:$0xfe]
        %v1143 = vld [vmem:[%s1067 + $0x70] sm:$0x1]
        %v1144 = vld [vmem:[%s1067 + $0x78] sm:$0x1]
        %v1145 = vld [vmem:[%s1067 + $0x80] sm:$0xfe]
        %v1146 = vld [vmem:[%s1067 + $0x88] sm:$0xfe]
        %v1147 = vld [vmem:[%s1067 + $0x90] sm:$0x1]
        %v1148 = vld [vmem:[%s1067 + $0x98] sm:$0x1]
        %v1149 = vld [vmem:[%s1067 + $0xa0] sm:$0xfe]
        %v1150 = vld [vmem:[%s1067 + $0xa8] sm:$0xfe]
        %v1151 = vld [vmem:[%s1067 + $0xb0] sm:$0x1]
        %v1152 = vld [vmem:[%s1067 + $0xb8] sm:$0x1]
        %v1153 = vld [vmem:[%s1067 + $0xc0] sm:$0xfe]
        %v1154 = vld [vmem:[%s1067 + $0xc8] sm:$0xfe]
        %v1155 = vld [vmem:[%s1067 + $0xd0] sm:$0x1]
        %v1156 = vld [vmem:[%s1067 + $0xd8] sm:$0x1]
        %v1157 = vld [vmem:[%s1067 + $0xe0] sm:$0xfe]
        %v1158 = vld [vmem:[%s1067 + $0xe8] sm:$0xfe]
        %v1159 = vld [vmem:[%s1067 + $0xf0] sm:$0x1]
        %v1160 = vld [vmem:[%s1067 + $0xf8] sm:$0x1]
        %v1162 = vlaneseq
        %v1163 = vshrl.u32 %v1162, 7
        %v1164 = vsub.s32 0, %v1163
        %v1165 = vrot.slane %v1128, %v1164
        %v1166 = vlaneseq
        %v1167 = vshrl.u32 %v1166, 7
        %v1168 = vsub.s32 1, %v1167
        %v1169 = vrot.slane %v1128, %v1168
        %v1172 = vmul.f32 %v1129, %v1165
        %v1173 = vmul.f32 %v1130, %v1169
        %v1174 = vmul.f32 %v1131, %v1165
        %v1175 = vmul.f32 %v1132, %v1169
        %v1176 = vmul.f32 %v1133, %v1165
        %v1177 = vmul.f32 %v1134, %v1169
        %v1178 = vmul.f32 %v1135, %v1165
        %v1179 = vmul.f32 %v1136, %v1169
        %v1180 = vmul.f32 %v1137, %v1165
        %v1181 = vmul.f32 %v1138, %v1169
        %v1182 = vmul.f32 %v1139, %v1165
        %v1183 = vmul.f32 %v1140, %v1169
        %v1184 = vmul.f32 %v1141, %v1165
        %v1185 = vmul.f32 %v1142, %v1169
        %v1186 = vmul.f32 %v1143, %v1165
        %v1187 = vmul.f32 %v1144, %v1169
        %v1188 = vmul.f32 %v1145, %v1165
        %v1189 = vmul.f32 %v1146, %v1169
        %v1190 = vmul.f32 %v1147, %v1165
        %v1191 = vmul.f32 %v1148, %v1169
        %v1192 = vmul.f32 %v1149, %v1165
        %v1193 = vmul.f32 %v1150, %v1169
        %v1194 = vmul.f32 %v1151, %v1165
        %v1195 = vmul.f32 %v1152, %v1169
        %v1196 = vmul.f32 %v1153, %v1165
        %v1197 = vmul.f32 %v1154, %v1169
        %v1198 = vmul.f32 %v1155, %v1165
        %v1199 = vmul.f32 %v1156, %v1169
        %v1200 = vmul.f32 %v1157, %v1165
        %v1201 = vmul.f32 %v1158, %v1169
        %v1202 = vmul.f32 %v1159, %v1165
        %v1203 = vmul.f32 %v1160, %v1169
        %v1236 = vrot.slane %v1172, 1
        %v1237 = vrot.slane %v1174, 1
        %v1238 = vsel %vm350, %v1236, %v1237
        %v1239 = vrot.slane %v1173, 1
        %v1240 = vrot.slane %v1175, 1
        %v1241 = vsel %vm350, %v1239, %v1240
        %v1242 = vrot.slane %v1176, 1
        %v1243 = vrot.slane %v1178, 1
        %v1244 = vsel %vm350, %v1242, %v1243
        %v1245 = vrot.slane %v1177, 1
        %v1246 = vrot.slane %v1179, 1
        %v1247 = vsel %vm350, %v1245, %v1246
        %v1248 = vrot.slane %v1180, 1
        %v1249 = vrot.slane %v1182, 1
        %v1250 = vsel %vm350, %v1248, %v1249
        %v1251 = vrot.slane %v1181, 1
        %v1252 = vrot.slane %v1183, 1
        %v1253 = vsel %vm350, %v1251, %v1252
        %v1254 = vrot.slane %v1184, 1
        %v1255 = vrot.slane %v1186, 1
        %v1256 = vsel %vm350, %v1254, %v1255
        %v1257 = vrot.slane %v1185, 1
        %v1258 = vrot.slane %v1187, 1
        %v1259 = vsel %vm350, %v1257, %v1258
        %v1260 = vrot.slane %v1188, 1
        %v1261 = vrot.slane %v1190, 1
        %v1262 = vsel %vm350, %v1260, %v1261
        %v1263 = vrot.slane %v1189, 1
        %v1264 = vrot.slane %v1191, 1
        %v1265 = vsel %vm350, %v1263, %v1264
        %v1266 = vrot.slane %v1192, 1
        %v1267 = vrot.slane %v1194, 1
        %v1268 = vsel %vm350, %v1266, %v1267
        %v1269 = vrot.slane %v1193, 1
        %v1270 = vrot.slane %v1195, 1
        %v1271 = vsel %vm350, %v1269, %v1270
        %v1272 = vrot.slane %v1196, 1
        %v1273 = vrot.slane %v1198, 1
        %v1274 = vsel %vm350, %v1272, %v1273
        %v1275 = vrot.slane %v1197, 1
        %v1276 = vrot.slane %v1199, 1
        %v1277 = vsel %vm350, %v1275, %v1276
        %v1278 = vrot.slane %v1200, 1
        %v1279 = vrot.slane %v1202, 1
        %v1280 = vsel %vm350, %v1278, %v1279
        %v1281 = vrot.slane %v1201, 1
        %v1282 = vrot.slane %v1203, 1
        %v1283 = vsel %vm350, %v1281, %v1282
        %v1300 = vadd.f32 %v1111, %v1238
        %v1301 = vadd.f32 %v1112, %v1241
        %v1302 = vadd.f32 %v1113, %v1244
        %v1303 = vadd.f32 %v1114, %v1247
        %v1304 = vadd.f32 %v1115, %v1250
        %v1305 = vadd.f32 %v1116, %v1253
        %v1306 = vadd.f32 %v1117, %v1256
        %v1307 = vadd.f32 %v1118, %v1259
        %v1308 = vadd.f32 %v1119, %v1262
        %v1309 = vadd.f32 %v1120, %v1265
        %v1310 = vadd.f32 %v1121, %v1268
        %v1311 = vadd.f32 %v1122, %v1271
        %v1312 = vadd.f32 %v1123, %v1274
        %v1313 = vadd.f32 %v1124, %v1277
        %v1314 = vadd.f32 %v1125, %v1280
        %v1315 = vadd.f32 %v1126, %v1283
        %s1316 = scalar_lea.vmem %s1, 16
        %v1317 = vld [vmem:[%s1316] ss:$8 sm:$0x3]
        %v1318 = vld [vmem:[%s1067] sm:$0xfc]
        %v1319 = vld [vmem:[%s1067 + $0x8] sm:$0xfc]
        %v1320 = vld [vmem:[%s1067 + $0x10] sm:$0x3]
        %v1321 = vld [vmem:[%s1067 + $0x18] sm:$0x3]
        %v1322 = vld [vmem:[%s1067 + $0x20] sm:$0xfc]
        %v1323 = vld [vmem:[%s1067 + $0x28] sm:$0xfc]
        %v1324 = vld [vmem:[%s1067 + $0x30] sm:$0x3]
        %v1325 = vld [vmem:[%s1067 + $0x38] sm:$0x3]
        %v1326 = vld [vmem:[%s1067 + $0x40] sm:$0xfc]
        %v1327 = vld [vmem:[%s1067 + $0x48] sm:$0xfc]
        %v1328 = vld [vmem:[%s1067 + $0x50] sm:$0x3]
        %v1329 = vld [vmem:[%s1067 + $0x58] sm:$0x3]
        %v1330 = vld [vmem:[%s1067 + $0x60] sm:$0xfc]
        %v1331 = vld [vmem:[%s1067 + $0x68] sm:$0xfc]
        %v1332 = vld [vmem:[%s1067 + $0x70] sm:$0x3]
        %v1333 = vld [vmem:[%s1067 + $0x78] sm:$0x3]
        %v1334 = vld [vmem:[%s1067 + $0x80] sm:$0xfc]
        %v1335 = vld [vmem:[%s1067 + $0x88] sm:$0xfc]
        %v1336 = vld [vmem:[%s1067 + $0x90] sm:$0x3]
        %v1337 = vld [vmem:[%s1067 + $0x98] sm:$0x3]
        %v1338 = vld [vmem:[%s1067 + $0xa0] sm:$0xfc]
        %v1339 = vld [vmem:[%s1067 + $0xa8] sm:$0xfc]
        %v1340 = vld [vmem:[%s1067 + $0xb0] sm:$0x3]
        %v1341 = vld [vmem:[%s1067 + $0xb8] sm:$0x3]
        %v1342 = vld [vmem:[%s1067 + $0xc0] sm:$0xfc]
        %v1343 = vld [vmem:[%s1067 + $0xc8] sm:$0xfc]
        %v1344 = vld [vmem:[%s1067 + $0xd0] sm:$0x3]
        %v1345 = vld [vmem:[%s1067 + $0xd8] sm:$0x3]
        %v1346 = vld [vmem:[%s1067 + $0xe0] sm:$0xfc]
        %v1347 = vld [vmem:[%s1067 + $0xe8] sm:$0xfc]
        %v1348 = vld [vmem:[%s1067 + $0xf0] sm:$0x3]
        %v1349 = vld [vmem:[%s1067 + $0xf8] sm:$0x3]
        %v1351 = vlaneseq
        %v1352 = vshrl.u32 %v1351, 7
        %v1353 = vsub.s32 0, %v1352
        %v1354 = vrot.slane %v1317, %v1353
        %v1355 = vlaneseq
        %v1356 = vshrl.u32 %v1355, 7
        %v1357 = vsub.s32 1, %v1356
        %v1358 = vrot.slane %v1317, %v1357
        %v1361 = vmul.f32 %v1318, %v1354
        %v1362 = vmul.f32 %v1319, %v1358
        %v1363 = vmul.f32 %v1320, %v1354
        %v1364 = vmul.f32 %v1321, %v1358
        %v1365 = vmul.f32 %v1322, %v1354
        %v1366 = vmul.f32 %v1323, %v1358
        %v1367 = vmul.f32 %v1324, %v1354
        %v1368 = vmul.f32 %v1325, %v1358
        %v1369 = vmul.f32 %v1326, %v1354
        %v1370 = vmul.f32 %v1327, %v1358
        %v1371 = vmul.f32 %v1328, %v1354
        %v1372 = vmul.f32 %v1329, %v1358
        %v1373 = vmul.f32 %v1330, %v1354
        %v1374 = vmul.f32 %v1331, %v1358
        %v1375 = vmul.f32 %v1332, %v1354
        %v1376 = vmul.f32 %v1333, %v1358
        %v1377 = vmul.f32 %v1334, %v1354
        %v1378 = vmul.f32 %v1335, %v1358
        %v1379 = vmul.f32 %v1336, %v1354
        %v1380 = vmul.f32 %v1337, %v1358
        %v1381 = vmul.f32 %v1338, %v1354
        %v1382 = vmul.f32 %v1339, %v1358
        %v1383 = vmul.f32 %v1340, %v1354
        %v1384 = vmul.f32 %v1341, %v1358
        %v1385 = vmul.f32 %v1342, %v1354
        %v1386 = vmul.f32 %v1343, %v1358
        %v1387 = vmul.f32 %v1344, %v1354
        %v1388 = vmul.f32 %v1345, %v1358
        %v1389 = vmul.f32 %v1346, %v1354
        %v1390 = vmul.f32 %v1347, %v1358
        %v1391 = vmul.f32 %v1348, %v1354
        %v1392 = vmul.f32 %v1349, %v1358
        %v1425 = vrot.slane %v1361, 2
        %v1426 = vrot.slane %v1363, 2
        %v1427 = vsel %vm540, %v1425, %v1426
        %v1428 = vrot.slane %v1362, 2
        %v1429 = vrot.slane %v1364, 2
        %v1430 = vsel %vm540, %v1428, %v1429
        %v1431 = vrot.slane %v1365, 2
        %v1432 = vrot.slane %v1367, 2
        %v1433 = vsel %vm540, %v1431, %v1432
        %v1434 = vrot.slane %v1366, 2
        %v1435 = vrot.slane %v1368, 2
        %v1436 = vsel %vm540, %v1434, %v1435
        %v1437 = vrot.slane %v1369, 2
        %v1438 = vrot.slane %v1371, 2
        %v1439 = vsel %vm540, %v1437, %v1438
        %v1440 = vrot.slane %v1370, 2
        %v1441 = vrot.slane %v1372, 2
        %v1442 = vsel %vm540, %v1440, %v1441
        %v1443 = vrot.slane %v1373, 2
        %v1444 = vrot.slane %v1375, 2
        %v1445 = vsel %vm540, %v1443, %v1444
        %v1446 = vrot.slane %v1374, 2
        %v1447 = vrot.slane %v1376, 2
        %v1448 = vsel %vm540, %v1446, %v1447
        %v1449 = vrot.slane %v1377, 2
        %v1450 = vrot.slane %v1379, 2
        %v1451 = vsel %vm540, %v1449, %v1450
        %v1452 = vrot.slane %v1378, 2
        %v1453 = vrot.slane %v1380, 2
        %v1454 = vsel %vm540, %v1452, %v1453
        %v1455 = vrot.slane %v1381, 2
        %v1456 = vrot.slane %v1383, 2
        %v1457 = vsel %vm540, %v1455, %v1456
        %v1458 = vrot.slane %v1382, 2
        %v1459 = vrot.slane %v1384, 2
        %v1460 = vsel %vm540, %v1458, %v1459
        %v1461 = vrot.slane %v1385, 2
        %v1462 = vrot.slane %v1387, 2
        %v1463 = vsel %vm540, %v1461, %v1462
        %v1464 = vrot.slane %v1386, 2
        %v1465 = vrot.slane %v1388, 2
        %v1466 = vsel %vm540, %v1464, %v1465
        %v1467 = vrot.slane %v1389, 2
        %v1468 = vrot.slane %v1391, 2
        %v1469 = vsel %vm540, %v1467, %v1468
        %v1470 = vrot.slane %v1390, 2
        %v1471 = vrot.slane %v1392, 2
        %v1472 = vsel %vm540, %v1470, %v1471
        %v1489 = vadd.f32 %v1300, %v1427
        %v1490 = vadd.f32 %v1301, %v1430
        %v1491 = vadd.f32 %v1302, %v1433
        %v1492 = vadd.f32 %v1303, %v1436
        %v1493 = vadd.f32 %v1304, %v1439
        %v1494 = vadd.f32 %v1305, %v1442
        %v1495 = vadd.f32 %v1306, %v1445
        %v1496 = vadd.f32 %v1307, %v1448
        %v1497 = vadd.f32 %v1308, %v1451
        %v1498 = vadd.f32 %v1309, %v1454
        %v1499 = vadd.f32 %v1310, %v1457
        %v1500 = vadd.f32 %v1311, %v1460
        %v1501 = vadd.f32 %v1312, %v1463
        %v1502 = vadd.f32 %v1313, %v1466
        %v1503 = vadd.f32 %v1314, %v1469
        %v1504 = vadd.f32 %v1315, %v1472
        %s1505 = scalar_lea.vmem %s1, 17
        %v1506 = vld [vmem:[%s1505] ss:$8 sm:$0x3]
        %s1507 = sadd.s32 %s173, 1
        %s1508 = smul.u32 %s1507, 40
        %s1509 = smul.addr %s1508, 8
        %s1510 = scalar_lea.vmem %s165, %s1509
        %v1511 = vld [vmem:[%s1510] sm:$0xff]
        %v1512 = vld [vmem:[%s1510 + $0x8] sm:$0xff]
        %v1513 = vld [vmem:[%s1510 + $0x20] sm:$0xff]
        %v1514 = vld [vmem:[%s1510 + $0x28] sm:$0xff]
        %v1515 = vld [vmem:[%s1510 + $0x40] sm:$0xff]
        %v1516 = vld [vmem:[%s1510 + $0x48] sm:$0xff]
        %v1517 = vld [vmem:[%s1510 + $0x60] sm:$0xff]
        %v1518 = vld [vmem:[%s1510 + $0x68] sm:$0xff]
        %v1519 = vld [vmem:[%s1510 + $0x80] sm:$0xff]
        %v1520 = vld [vmem:[%s1510 + $0x88] sm:$0xff]
        %v1521 = vld [vmem:[%s1510 + $0xa0] sm:$0xff]
        %v1522 = vld [vmem:[%s1510 + $0xa8] sm:$0xff]
        %v1523 = vld [vmem:[%s1510 + $0xc0] sm:$0xff]
        %v1524 = vld [vmem:[%s1510 + $0xc8] sm:$0xff]
        %v1525 = vld [vmem:[%s1510 + $0xe0] sm:$0xff]
        %v1526 = vld [vmem:[%s1510 + $0xe8] sm:$0xff]
        %v1528 = vlaneseq
        %v1529 = vshrl.u32 %v1528, 7
        %v1530 = vsub.s32 0, %v1529
        %v1531 = vrot.slane %v1506, %v1530
        %v1532 = vlaneseq
        %v1533 = vshrl.u32 %v1532, 7
        %v1534 = vsub.s32 1, %v1533
        %v1535 = vrot.slane %v1506, %v1534
        %v1538 = vmul.f32 %v1511, %v1531
        %v1539 = vmul.f32 %v1512, %v1535
        %v1540 = vmul.f32 %v1513, %v1531
        %v1541 = vmul.f32 %v1514, %v1535
        %v1542 = vmul.f32 %v1515, %v1531
        %v1543 = vmul.f32 %v1516, %v1535
        %v1544 = vmul.f32 %v1517, %v1531
        %v1545 = vmul.f32 %v1518, %v1535
        %v1546 = vmul.f32 %v1519, %v1531
        %v1547 = vmul.f32 %v1520, %v1535
        %v1548 = vmul.f32 %v1521, %v1531
        %v1549 = vmul.f32 %v1522, %v1535
        %v1550 = vmul.f32 %v1523, %v1531
        %v1551 = vmul.f32 %v1524, %v1535
        %v1552 = vmul.f32 %v1525, %v1531
        %v1553 = vmul.f32 %v1526, %v1535
        %v1554 = vadd.f32 %v1489, %v1538
        %v1555 = vadd.f32 %v1490, %v1539
        %v1556 = vadd.f32 %v1491, %v1540
        %v1557 = vadd.f32 %v1492, %v1541
        %v1558 = vadd.f32 %v1493, %v1542
        %v1559 = vadd.f32 %v1494, %v1543
        %v1560 = vadd.f32 %v1495, %v1544
        %v1561 = vadd.f32 %v1496, %v1545
        %v1562 = vadd.f32 %v1497, %v1546
        %v1563 = vadd.f32 %v1498, %v1547
        %v1564 = vadd.f32 %v1499, %v1548
        %v1565 = vadd.f32 %v1500, %v1549
        %v1566 = vadd.f32 %v1501, %v1550
        %v1567 = vadd.f32 %v1502, %v1551
        %v1568 = vadd.f32 %v1503, %v1552
        %v1569 = vadd.f32 %v1504, %v1553
        %s1570 = scalar_lea.vmem %s1, 18
        %v1571 = vld [vmem:[%s1570] ss:$8 sm:$0x3]
        %v1572 = vld [vmem:[%s1510] sm:$0xfe]
        %v1573 = vld [vmem:[%s1510 + $0x8] sm:$0xfe]
        %v1574 = vld [vmem:[%s1510 + $0x10] sm:$0x1]
        %v1575 = vld [vmem:[%s1510 + $0x18] sm:$0x1]
        %v1576 = vld [vmem:[%s1510 + $0x20] sm:$0xfe]
        %v1577 = vld [vmem:[%s1510 + $0x28] sm:$0xfe]
        %v1578 = vld [vmem:[%s1510 + $0x30] sm:$0x1]
        %v1579 = vld [vmem:[%s1510 + $0x38] sm:$0x1]
        %v1580 = vld [vmem:[%s1510 + $0x40] sm:$0xfe]
        %v1581 = vld [vmem:[%s1510 + $0x48] sm:$0xfe]
        %v1582 = vld [vmem:[%s1510 + $0x50] sm:$0x1]
        %v1583 = vld [vmem:[%s1510 + $0x58] sm:$0x1]
        %v1584 = vld [vmem:[%s1510 + $0x60] sm:$0xfe]
        %v1585 = vld [vmem:[%s1510 + $0x68] sm:$0xfe]
        %v1586 = vld [vmem:[%s1510 + $0x70] sm:$0x1]
        %v1587 = vld [vmem:[%s1510 + $0x78] sm:$0x1]
        %v1588 = vld [vmem:[%s1510 + $0x80] sm:$0xfe]
        %v1589 = vld [vmem:[%s1510 + $0x88] sm:$0xfe]
        %v1590 = vld [vmem:[%s1510 + $0x90] sm:$0x1]
        %v1591 = vld [vmem:[%s1510 + $0x98] sm:$0x1]
        %v1592 = vld [vmem:[%s1510 + $0xa0] sm:$0xfe]
        %v1593 = vld [vmem:[%s1510 + $0xa8] sm:$0xfe]
        %v1594 = vld [vmem:[%s1510 + $0xb0] sm:$0x1]
        %v1595 = vld [vmem:[%s1510 + $0xb8] sm:$0x1]
        %v1596 = vld [vmem:[%s1510 + $0xc0] sm:$0xfe]
        %v1597 = vld [vmem:[%s1510 + $0xc8] sm:$0xfe]
        %v1598 = vld [vmem:[%s1510 + $0xd0] sm:$0x1]
        %v1599 = vld [vmem:[%s1510 + $0xd8] sm:$0x1]
        %v1600 = vld [vmem:[%s1510 + $0xe0] sm:$0xfe]
        %v1601 = vld [vmem:[%s1510 + $0xe8] sm:$0xfe]
        %v1602 = vld [vmem:[%s1510 + $0xf0] sm:$0x1]
        %v1603 = vld [vmem:[%s1510 + $0xf8] sm:$0x1]
        %v1605 = vlaneseq
        %v1606 = vshrl.u32 %v1605, 7
        %v1607 = vsub.s32 0, %v1606
        %v1608 = vrot.slane %v1571, %v1607
        %v1609 = vlaneseq
        %v1610 = vshrl.u32 %v1609, 7
        %v1611 = vsub.s32 1, %v1610
        %v1612 = vrot.slane %v1571, %v1611
        %v1615 = vmul.f32 %v1572, %v1608
        %v1616 = vmul.f32 %v1573, %v1612
        %v1617 = vmul.f32 %v1574, %v1608
        %v1618 = vmul.f32 %v1575, %v1612
        %v1619 = vmul.f32 %v1576, %v1608
        %v1620 = vmul.f32 %v1577, %v1612
        %v1621 = vmul.f32 %v1578, %v1608
        %v1622 = vmul.f32 %v1579, %v1612
        %v1623 = vmul.f32 %v1580, %v1608
        %v1624 = vmul.f32 %v1581, %v1612
        %v1625 = vmul.f32 %v1582, %v1608
        %v1626 = vmul.f32 %v1583, %v1612
        %v1627 = vmul.f32 %v1584, %v1608
        %v1628 = vmul.f32 %v1585, %v1612
        %v1629 = vmul.f32 %v1586, %v1608
        %v1630 = vmul.f32 %v1587, %v1612
        %v1631 = vmul.f32 %v1588, %v1608
        %v1632 = vmul.f32 %v1589, %v1612
        %v1633 = vmul.f32 %v1590, %v1608
        %v1634 = vmul.f32 %v1591, %v1612
        %v1635 = vmul.f32 %v1592, %v1608
        %v1636 = vmul.f32 %v1593, %v1612
        %v1637 = vmul.f32 %v1594, %v1608
        %v1638 = vmul.f32 %v1595, %v1612
        %v1639 = vmul.f32 %v1596, %v1608
        %v1640 = vmul.f32 %v1597, %v1612
        %v1641 = vmul.f32 %v1598, %v1608
        %v1642 = vmul.f32 %v1599, %v1612
        %v1643 = vmul.f32 %v1600, %v1608
        %v1644 = vmul.f32 %v1601, %v1612
        %v1645 = vmul.f32 %v1602, %v1608
        %v1646 = vmul.f32 %v1603, %v1612
        %v1679 = vrot.slane %v1615, 1
        %v1680 = vrot.slane %v1617, 1
        %v1681 = vsel %vm350, %v1679, %v1680
        %v1682 = vrot.slane %v1616, 1
        %v1683 = vrot.slane %v1618, 1
        %v1684 = vsel %vm350, %v1682, %v1683
        %v1685 = vrot.slane %v1619, 1
        %v1686 = vrot.slane %v1621, 1
        %v1687 = vsel %vm350, %v1685, %v1686
        %v1688 = vrot.slane %v1620, 1
        %v1689 = vrot.slane %v1622, 1
        %v1690 = vsel %vm350, %v1688, %v1689
        %v1691 = vrot.slane %v1623, 1
        %v1692 = vrot.slane %v1625, 1
        %v1693 = vsel %vm350, %v1691, %v1692
        %v1694 = vrot.slane %v1624, 1
        %v1695 = vrot.slane %v1626, 1
        %v1696 = vsel %vm350, %v1694, %v1695
        %v1697 = vrot.slane %v1627, 1
        %v1698 = vrot.slane %v1629, 1
        %v1699 = vsel %vm350, %v1697, %v1698
        %v1700 = vrot.slane %v1628, 1
        %v1701 = vrot.slane %v1630, 1
        %v1702 = vsel %vm350, %v1700, %v1701
        %v1703 = vrot.slane %v1631, 1
        %v1704 = vrot.slane %v1633, 1
        %v1705 = vsel %vm350, %v1703, %v1704
        %v1706 = vrot.slane %v1632, 1
        %v1707 = vrot.slane %v1634, 1
        %v1708 = vsel %vm350, %v1706, %v1707
        %v1709 = vrot.slane %v1635, 1
        %v1710 = vrot.slane %v1637, 1
        %v1711 = vsel %vm350, %v1709, %v1710
        %v1712 = vrot.slane %v1636, 1
        %v1713 = vrot.slane %v1638, 1
        %v1714 = vsel %vm350, %v1712, %v1713
        %v1715 = vrot.slane %v1639, 1
        %v1716 = vrot.slane %v1641, 1
        %v1717 = vsel %vm350, %v1715, %v1716
        %v1718 = vrot.slane %v1640, 1
        %v1719 = vrot.slane %v1642, 1
        %v1720 = vsel %vm350, %v1718, %v1719
        %v1721 = vrot.slane %v1643, 1
        %v1722 = vrot.slane %v1645, 1
        %v1723 = vsel %vm350, %v1721, %v1722
        %v1724 = vrot.slane %v1644, 1
        %v1725 = vrot.slane %v1646, 1
        %v1726 = vsel %vm350, %v1724, %v1725
        %v1743 = vadd.f32 %v1554, %v1681
        %v1744 = vadd.f32 %v1555, %v1684
        %v1745 = vadd.f32 %v1556, %v1687
        %v1746 = vadd.f32 %v1557, %v1690
        %v1747 = vadd.f32 %v1558, %v1693
        %v1748 = vadd.f32 %v1559, %v1696
        %v1749 = vadd.f32 %v1560, %v1699
        %v1750 = vadd.f32 %v1561, %v1702
        %v1751 = vadd.f32 %v1562, %v1705
        %v1752 = vadd.f32 %v1563, %v1708
        %v1753 = vadd.f32 %v1564, %v1711
        %v1754 = vadd.f32 %v1565, %v1714
        %v1755 = vadd.f32 %v1566, %v1717
        %v1756 = vadd.f32 %v1567, %v1720
        %v1757 = vadd.f32 %v1568, %v1723
        %v1758 = vadd.f32 %v1569, %v1726
        %s1759 = scalar_lea.vmem %s1, 19
        %v1760 = vld [vmem:[%s1759] ss:$8 sm:$0x3]
        %v1761 = vld [vmem:[%s1510] sm:$0xfc]
        %v1762 = vld [vmem:[%s1510 + $0x8] sm:$0xfc]
        %v1763 = vld [vmem:[%s1510 + $0x10] sm:$0x3]
        %v1764 = vld [vmem:[%s1510 + $0x18] sm:$0x3]
        %v1765 = vld [vmem:[%s1510 + $0x20] sm:$0xfc]
        %v1766 = vld [vmem:[%s1510 + $0x28] sm:$0xfc]
        %v1767 = vld [vmem:[%s1510 + $0x30] sm:$0x3]
        %v1768 = vld [vmem:[%s1510 + $0x38] sm:$0x3]
        %v1769 = vld [vmem:[%s1510 + $0x40] sm:$0xfc]
        %v1770 = vld [vmem:[%s1510 + $0x48] sm:$0xfc]
        %v1771 = vld [vmem:[%s1510 + $0x50] sm:$0x3]
        %v1772 = vld [vmem:[%s1510 + $0x58] sm:$0x3]
        %v1773 = vld [vmem:[%s1510 + $0x60] sm:$0xfc]
        %v1774 = vld [vmem:[%s1510 + $0x68] sm:$0xfc]
        %v1775 = vld [vmem:[%s1510 + $0x70] sm:$0x3]
        %v1776 = vld [vmem:[%s1510 + $0x78] sm:$0x3]
        %v1777 = vld [vmem:[%s1510 + $0x80] sm:$0xfc]
        %v1778 = vld [vmem:[%s1510 + $0x88] sm:$0xfc]
        %v1779 = vld [vmem:[%s1510 + $0x90] sm:$0x3]
        %v1780 = vld [vmem:[%s1510 + $0x98] sm:$0x3]
        %v1781 = vld [vmem:[%s1510 + $0xa0] sm:$0xfc]
        %v1782 = vld [vmem:[%s1510 + $0xa8] sm:$0xfc]
        %v1783 = vld [vmem:[%s1510 + $0xb0] sm:$0x3]
        %v1784 = vld [vmem:[%s1510 + $0xb8] sm:$0x3]
        %v1785 = vld [vmem:[%s1510 + $0xc0] sm:$0xfc]
        %v1786 = vld [vmem:[%s1510 + $0xc8] sm:$0xfc]
        %v1787 = vld [vmem:[%s1510 + $0xd0] sm:$0x3]
        %v1788 = vld [vmem:[%s1510 + $0xd8] sm:$0x3]
        %v1789 = vld [vmem:[%s1510 + $0xe0] sm:$0xfc]
        %v1790 = vld [vmem:[%s1510 + $0xe8] sm:$0xfc]
        %v1791 = vld [vmem:[%s1510 + $0xf0] sm:$0x3]
        %v1792 = vld [vmem:[%s1510 + $0xf8] sm:$0x3]
        %v1794 = vlaneseq
        %v1795 = vshrl.u32 %v1794, 7
        %v1796 = vsub.s32 0, %v1795
        %v1797 = vrot.slane %v1760, %v1796
        %v1798 = vlaneseq
        %v1799 = vshrl.u32 %v1798, 7
        %v1800 = vsub.s32 1, %v1799
        %v1801 = vrot.slane %v1760, %v1800
        %v1804 = vmul.f32 %v1761, %v1797
        %v1805 = vmul.f32 %v1762, %v1801
        %v1806 = vmul.f32 %v1763, %v1797
        %v1807 = vmul.f32 %v1764, %v1801
        %v1808 = vmul.f32 %v1765, %v1797
        %v1809 = vmul.f32 %v1766, %v1801
        %v1810 = vmul.f32 %v1767, %v1797
        %v1811 = vmul.f32 %v1768, %v1801
        %v1812 = vmul.f32 %v1769, %v1797
        %v1813 = vmul.f32 %v1770, %v1801
        %v1814 = vmul.f32 %v1771, %v1797
        %v1815 = vmul.f32 %v1772, %v1801
        %v1816 = vmul.f32 %v1773, %v1797
        %v1817 = vmul.f32 %v1774, %v1801
        %v1818 = vmul.f32 %v1775, %v1797
        %v1819 = vmul.f32 %v1776, %v1801
        %v1820 = vmul.f32 %v1777, %v1797
        %v1821 = vmul.f32 %v1778, %v1801
        %v1822 = vmul.f32 %v1779, %v1797
        %v1823 = vmul.f32 %v1780, %v1801
        %v1824 = vmul.f32 %v1781, %v1797
        %v1825 = vmul.f32 %v1782, %v1801
        %v1826 = vmul.f32 %v1783, %v1797
        %v1827 = vmul.f32 %v1784, %v1801
        %v1828 = vmul.f32 %v1785, %v1797
        %v1829 = vmul.f32 %v1786, %v1801
        %v1830 = vmul.f32 %v1787, %v1797
        %v1831 = vmul.f32 %v1788, %v1801
        %v1832 = vmul.f32 %v1789, %v1797
        %v1833 = vmul.f32 %v1790, %v1801
        %v1834 = vmul.f32 %v1791, %v1797
        %v1835 = vmul.f32 %v1792, %v1801
        %v1868 = vrot.slane %v1804, 2
        %v1869 = vrot.slane %v1806, 2
        %v1870 = vsel %vm540, %v1868, %v1869
        %v1871 = vrot.slane %v1805, 2
        %v1872 = vrot.slane %v1807, 2
        %v1873 = vsel %vm540, %v1871, %v1872
        %v1874 = vrot.slane %v1808, 2
        %v1875 = vrot.slane %v1810, 2
        %v1876 = vsel %vm540, %v1874, %v1875
        %v1877 = vrot.slane %v1809, 2
        %v1878 = vrot.slane %v1811, 2
        %v1879 = vsel %vm540, %v1877, %v1878
        %v1880 = vrot.slane %v1812, 2
        %v1881 = vrot.slane %v1814, 2
        %v1882 = vsel %vm540, %v1880, %v1881
        %v1883 = vrot.slane %v1813, 2
        %v1884 = vrot.slane %v1815, 2
        %v1885 = vsel %vm540, %v1883, %v1884
        %v1886 = vrot.slane %v1816, 2
        %v1887 = vrot.slane %v1818, 2
        %v1888 = vsel %vm540, %v1886, %v1887
        %v1889 = vrot.slane %v1817, 2
        %v1890 = vrot.slane %v1819, 2
        %v1891 = vsel %vm540, %v1889, %v1890
        %v1892 = vrot.slane %v1820, 2
        %v1893 = vrot.slane %v1822, 2
        %v1894 = vsel %vm540, %v1892, %v1893
        %v1895 = vrot.slane %v1821, 2
        %v1896 = vrot.slane %v1823, 2
        %v1897 = vsel %vm540, %v1895, %v1896
        %v1898 = vrot.slane %v1824, 2
        %v1899 = vrot.slane %v1826, 2
        %v1900 = vsel %vm540, %v1898, %v1899
        %v1901 = vrot.slane %v1825, 2
        %v1902 = vrot.slane %v1827, 2
        %v1903 = vsel %vm540, %v1901, %v1902
        %v1904 = vrot.slane %v1828, 2
        %v1905 = vrot.slane %v1830, 2
        %v1906 = vsel %vm540, %v1904, %v1905
        %v1907 = vrot.slane %v1829, 2
        %v1908 = vrot.slane %v1831, 2
        %v1909 = vsel %vm540, %v1907, %v1908
        %v1910 = vrot.slane %v1832, 2
        %v1911 = vrot.slane %v1834, 2
        %v1912 = vsel %vm540, %v1910, %v1911
        %v1913 = vrot.slane %v1833, 2
        %v1914 = vrot.slane %v1835, 2
        %v1915 = vsel %vm540, %v1913, %v1914
        %v1932 = vadd.f32 %v1743, %v1870
        %v1933 = vadd.f32 %v1744, %v1873
        %v1934 = vadd.f32 %v1745, %v1876
        %v1935 = vadd.f32 %v1746, %v1879
        %v1936 = vadd.f32 %v1747, %v1882
        %v1937 = vadd.f32 %v1748, %v1885
        %v1938 = vadd.f32 %v1749, %v1888
        %v1939 = vadd.f32 %v1750, %v1891
        %v1940 = vadd.f32 %v1751, %v1894
        %v1941 = vadd.f32 %v1752, %v1897
        %v1942 = vadd.f32 %v1753, %v1900
        %v1943 = vadd.f32 %v1754, %v1903
        %v1944 = vadd.f32 %v1755, %v1906
        %v1945 = vadd.f32 %v1756, %v1909
        %v1946 = vadd.f32 %v1757, %v1912
        %v1947 = vadd.f32 %v1758, %v1915
        %s1948 = scalar_lea.vmem %s1, 20
        %v1949 = vld [vmem:[%s1948] ss:$8 sm:$0x3]
        %s1950 = sadd.s32 4, %s1508
        %s1951 = smul.addr %s1950, 8
        %s1952 = scalar_lea.vmem %s165, %s1951
        %v1953 = vld [vmem:[%s1952] sm:$0xff]
        %v1954 = vld [vmem:[%s1952 + $0x8] sm:$0xff]
        %v1955 = vld [vmem:[%s1952 + $0x20] sm:$0xff]
        %v1956 = vld [vmem:[%s1952 + $0x28] sm:$0xff]
        %v1957 = vld [vmem:[%s1952 + $0x40] sm:$0xff]
        %v1958 = vld [vmem:[%s1952 + $0x48] sm:$0xff]
        %v1959 = vld [vmem:[%s1952 + $0x60] sm:$0xff]
        %v1960 = vld [vmem:[%s1952 + $0x68] sm:$0xff]
        %v1961 = vld [vmem:[%s1952 + $0x80] sm:$0xff]
        %v1962 = vld [vmem:[%s1952 + $0x88] sm:$0xff]
        %v1963 = vld [vmem:[%s1952 + $0xa0] sm:$0xff]
        %v1964 = vld [vmem:[%s1952 + $0xa8] sm:$0xff]
        %v1965 = vld [vmem:[%s1952 + $0xc0] sm:$0xff]
        %v1966 = vld [vmem:[%s1952 + $0xc8] sm:$0xff]
        %v1967 = vld [vmem:[%s1952 + $0xe0] sm:$0xff]
        %v1968 = vld [vmem:[%s1952 + $0xe8] sm:$0xff]
        %v1970 = vlaneseq
        %v1971 = vshrl.u32 %v1970, 7
        %v1972 = vsub.s32 0, %v1971
        %v1973 = vrot.slane %v1949, %v1972
        %v1974 = vlaneseq
        %v1975 = vshrl.u32 %v1974, 7
        %v1976 = vsub.s32 1, %v1975
        %v1977 = vrot.slane %v1949, %v1976
        %v1980 = vmul.f32 %v1953, %v1973
        %v1981 = vmul.f32 %v1954, %v1977
        %v1982 = vmul.f32 %v1955, %v1973
        %v1983 = vmul.f32 %v1956, %v1977
        %v1984 = vmul.f32 %v1957, %v1973
        %v1985 = vmul.f32 %v1958, %v1977
        %v1986 = vmul.f32 %v1959, %v1973
        %v1987 = vmul.f32 %v1960, %v1977
        %v1988 = vmul.f32 %v1961, %v1973
        %v1989 = vmul.f32 %v1962, %v1977
        %v1990 = vmul.f32 %v1963, %v1973
        %v1991 = vmul.f32 %v1964, %v1977
        %v1992 = vmul.f32 %v1965, %v1973
        %v1993 = vmul.f32 %v1966, %v1977
        %v1994 = vmul.f32 %v1967, %v1973
        %v1995 = vmul.f32 %v1968, %v1977
        %v1996 = vadd.f32 %v1932, %v1980
        %v1997 = vadd.f32 %v1933, %v1981
        %v1998 = vadd.f32 %v1934, %v1982
        %v1999 = vadd.f32 %v1935, %v1983
        %v2000 = vadd.f32 %v1936, %v1984
        %v2001 = vadd.f32 %v1937, %v1985
        %v2002 = vadd.f32 %v1938, %v1986
        %v2003 = vadd.f32 %v1939, %v1987
        %v2004 = vadd.f32 %v1940, %v1988
        %v2005 = vadd.f32 %v1941, %v1989
        %v2006 = vadd.f32 %v1942, %v1990
        %v2007 = vadd.f32 %v1943, %v1991
        %v2008 = vadd.f32 %v1944, %v1992
        %v2009 = vadd.f32 %v1945, %v1993
        %v2010 = vadd.f32 %v1946, %v1994
        %v2011 = vadd.f32 %v1947, %v1995
        %s2012 = scalar_lea.vmem %s1, 21
        %v2013 = vld [vmem:[%s2012] ss:$8 sm:$0x3]
        %v2014 = vld [vmem:[%s1952] sm:$0xfe]
        %v2015 = vld [vmem:[%s1952 + $0x8] sm:$0xfe]
        %v2016 = vld [vmem:[%s1952 + $0x10] sm:$0x1]
        %v2017 = vld [vmem:[%s1952 + $0x18] sm:$0x1]
        %v2018 = vld [vmem:[%s1952 + $0x20] sm:$0xfe]
        %v2019 = vld [vmem:[%s1952 + $0x28] sm:$0xfe]
        %v2020 = vld [vmem:[%s1952 + $0x30] sm:$0x1]
        %v2021 = vld [vmem:[%s1952 + $0x38] sm:$0x1]
        %v2022 = vld [vmem:[%s1952 + $0x40] sm:$0xfe]
        %v2023 = vld [vmem:[%s1952 + $0x48] sm:$0xfe]
        %v2024 = vld [vmem:[%s1952 + $0x50] sm:$0x1]
        %v2025 = vld [vmem:[%s1952 + $0x58] sm:$0x1]
        %v2026 = vld [vmem:[%s1952 + $0x60] sm:$0xfe]
        %v2027 = vld [vmem:[%s1952 + $0x68] sm:$0xfe]
        %v2028 = vld [vmem:[%s1952 + $0x70] sm:$0x1]
        %v2029 = vld [vmem:[%s1952 + $0x78] sm:$0x1]
        %v2030 = vld [vmem:[%s1952 + $0x80] sm:$0xfe]
        %v2031 = vld [vmem:[%s1952 + $0x88] sm:$0xfe]
        %v2032 = vld [vmem:[%s1952 + $0x90] sm:$0x1]
        %v2033 = vld [vmem:[%s1952 + $0x98] sm:$0x1]
        %v2034 = vld [vmem:[%s1952 + $0xa0] sm:$0xfe]
        %v2035 = vld [vmem:[%s1952 + $0xa8] sm:$0xfe]
        %v2036 = vld [vmem:[%s1952 + $0xb0] sm:$0x1]
        %v2037 = vld [vmem:[%s1952 + $0xb8] sm:$0x1]
        %v2038 = vld [vmem:[%s1952 + $0xc0] sm:$0xfe]
        %v2039 = vld [vmem:[%s1952 + $0xc8] sm:$0xfe]
        %v2040 = vld [vmem:[%s1952 + $0xd0] sm:$0x1]
        %v2041 = vld [vmem:[%s1952 + $0xd8] sm:$0x1]
        %v2042 = vld [vmem:[%s1952 + $0xe0] sm:$0xfe]
        %v2043 = vld [vmem:[%s1952 + $0xe8] sm:$0xfe]
        %v2044 = vld [vmem:[%s1952 + $0xf0] sm:$0x1]
        %v2045 = vld [vmem:[%s1952 + $0xf8] sm:$0x1]
        %v2047 = vlaneseq
        %v2048 = vshrl.u32 %v2047, 7
        %v2049 = vsub.s32 0, %v2048
        %v2050 = vrot.slane %v2013, %v2049
        %v2051 = vlaneseq
        %v2052 = vshrl.u32 %v2051, 7
        %v2053 = vsub.s32 1, %v2052
        %v2054 = vrot.slane %v2013, %v2053
        %v2057 = vmul.f32 %v2014, %v2050
        %v2058 = vmul.f32 %v2015, %v2054
        %v2059 = vmul.f32 %v2016, %v2050
        %v2060 = vmul.f32 %v2017, %v2054
        %v2061 = vmul.f32 %v2018, %v2050
        %v2062 = vmul.f32 %v2019, %v2054
        %v2063 = vmul.f32 %v2020, %v2050
        %v2064 = vmul.f32 %v2021, %v2054
        %v2065 = vmul.f32 %v2022, %v2050
        %v2066 = vmul.f32 %v2023, %v2054
        %v2067 = vmul.f32 %v2024, %v2050
        %v2068 = vmul.f32 %v2025, %v2054
        %v2069 = vmul.f32 %v2026, %v2050
        %v2070 = vmul.f32 %v2027, %v2054
        %v2071 = vmul.f32 %v2028, %v2050
        %v2072 = vmul.f32 %v2029, %v2054
        %v2073 = vmul.f32 %v2030, %v2050
        %v2074 = vmul.f32 %v2031, %v2054
        %v2075 = vmul.f32 %v2032, %v2050
        %v2076 = vmul.f32 %v2033, %v2054
        %v2077 = vmul.f32 %v2034, %v2050
        %v2078 = vmul.f32 %v2035, %v2054
        %v2079 = vmul.f32 %v2036, %v2050
        %v2080 = vmul.f32 %v2037, %v2054
        %v2081 = vmul.f32 %v2038, %v2050
        %v2082 = vmul.f32 %v2039, %v2054
        %v2083 = vmul.f32 %v2040, %v2050
        %v2084 = vmul.f32 %v2041, %v2054
        %v2085 = vmul.f32 %v2042, %v2050
        %v2086 = vmul.f32 %v2043, %v2054
        %v2087 = vmul.f32 %v2044, %v2050
        %v2088 = vmul.f32 %v2045, %v2054
        %v2121 = vrot.slane %v2057, 1
        %v2122 = vrot.slane %v2059, 1
        %v2123 = vsel %vm350, %v2121, %v2122
        %v2124 = vrot.slane %v2058, 1
        %v2125 = vrot.slane %v2060, 1
        %v2126 = vsel %vm350, %v2124, %v2125
        %v2127 = vrot.slane %v2061, 1
        %v2128 = vrot.slane %v2063, 1
        %v2129 = vsel %vm350, %v2127, %v2128
        %v2130 = vrot.slane %v2062, 1
        %v2131 = vrot.slane %v2064, 1
        %v2132 = vsel %vm350, %v2130, %v2131
        %v2133 = vrot.slane %v2065, 1
        %v2134 = vrot.slane %v2067, 1
        %v2135 = vsel %vm350, %v2133, %v2134
        %v2136 = vrot.slane %v2066, 1
        %v2137 = vrot.slane %v2068, 1
        %v2138 = vsel %vm350, %v2136, %v2137
        %v2139 = vrot.slane %v2069, 1
        %v2140 = vrot.slane %v2071, 1
        %v2141 = vsel %vm350, %v2139, %v2140
        %v2142 = vrot.slane %v2070, 1
        %v2143 = vrot.slane %v2072, 1
        %v2144 = vsel %vm350, %v2142, %v2143
        %v2145 = vrot.slane %v2073, 1
        %v2146 = vrot.slane %v2075, 1
        %v2147 = vsel %vm350, %v2145, %v2146
        %v2148 = vrot.slane %v2074, 1
        %v2149 = vrot.slane %v2076, 1
        %v2150 = vsel %vm350, %v2148, %v2149
        %v2151 = vrot.slane %v2077, 1
        %v2152 = vrot.slane %v2079, 1
        %v2153 = vsel %vm350, %v2151, %v2152
        %v2154 = vrot.slane %v2078, 1
        %v2155 = vrot.slane %v2080, 1
        %v2156 = vsel %vm350, %v2154, %v2155
        %v2157 = vrot.slane %v2081, 1
        %v2158 = vrot.slane %v2083, 1
        %v2159 = vsel %vm350, %v2157, %v2158
        %v2160 = vrot.slane %v2082, 1
        %v2161 = vrot.slane %v2084, 1
        %v2162 = vsel %vm350, %v2160, %v2161
        %v2163 = vrot.slane %v2085, 1
        %v2164 = vrot.slane %v2087, 1
        %v2165 = vsel %vm350, %v2163, %v2164
        %v2166 = vrot.slane %v2086, 1
        %v2167 = vrot.slane %v2088, 1
        %v2168 = vsel %vm350, %v2166, %v2167
        %v2185 = vadd.f32 %v1996, %v2123
        %v2186 = vadd.f32 %v1997, %v2126
        %v2187 = vadd.f32 %v1998, %v2129
        %v2188 = vadd.f32 %v1999, %v2132
        %v2189 = vadd.f32 %v2000, %v2135
        %v2190 = vadd.f32 %v2001, %v2138
        %v2191 = vadd.f32 %v2002, %v2141
        %v2192 = vadd.f32 %v2003, %v2144
        %v2193 = vadd.f32 %v2004, %v2147
        %v2194 = vadd.f32 %v2005, %v2150
        %v2195 = vadd.f32 %v2006, %v2153
        %v2196 = vadd.f32 %v2007, %v2156
        %v2197 = vadd.f32 %v2008, %v2159
        %v2198 = vadd.f32 %v2009, %v2162
        %v2199 = vadd.f32 %v2010, %v2165
        %v2200 = vadd.f32 %v2011, %v2168
        %s2201 = scalar_lea.vmem %s1, 22
        %v2202 = vld [vmem:[%s2201] ss:$8 sm:$0x3]
        %v2203 = vld [vmem:[%s1952] sm:$0xfc]
        %v2204 = vld [vmem:[%s1952 + $0x8] sm:$0xfc]
        %v2205 = vld [vmem:[%s1952 + $0x10] sm:$0x3]
        %v2206 = vld [vmem:[%s1952 + $0x18] sm:$0x3]
        %v2207 = vld [vmem:[%s1952 + $0x20] sm:$0xfc]
        %v2208 = vld [vmem:[%s1952 + $0x28] sm:$0xfc]
        %v2209 = vld [vmem:[%s1952 + $0x30] sm:$0x3]
        %v2210 = vld [vmem:[%s1952 + $0x38] sm:$0x3]
        %v2211 = vld [vmem:[%s1952 + $0x40] sm:$0xfc]
        %v2212 = vld [vmem:[%s1952 + $0x48] sm:$0xfc]
        %v2213 = vld [vmem:[%s1952 + $0x50] sm:$0x3]
        %v2214 = vld [vmem:[%s1952 + $0x58] sm:$0x3]
        %v2215 = vld [vmem:[%s1952 + $0x60] sm:$0xfc]
        %v2216 = vld [vmem:[%s1952 + $0x68] sm:$0xfc]
        %v2217 = vld [vmem:[%s1952 + $0x70] sm:$0x3]
        %v2218 = vld [vmem:[%s1952 + $0x78] sm:$0x3]
        %v2219 = vld [vmem:[%s1952 + $0x80] sm:$0xfc]
        %v2220 = vld [vmem:[%s1952 + $0x88] sm:$0xfc]
        %v2221 = vld [vmem:[%s1952 + $0x90] sm:$0x3]
        %v2222 = vld [vmem:[%s1952 + $0x98] sm:$0x3]
        %v2223 = vld [vmem:[%s1952 + $0xa0] sm:$0xfc]
        %v2224 = vld [vmem:[%s1952 + $0xa8] sm:$0xfc]
        %v2225 = vld [vmem:[%s1952 + $0xb0] sm:$0x3]
        %v2226 = vld [vmem:[%s1952 + $0xb8] sm:$0x3]
        %v2227 = vld [vmem:[%s1952 + $0xc0] sm:$0xfc]
        %v2228 = vld [vmem:[%s1952 + $0xc8] sm:$0xfc]
        %v2229 = vld [vmem:[%s1952 + $0xd0] sm:$0x3]
        %v2230 = vld [vmem:[%s1952 + $0xd8] sm:$0x3]
        %v2231 = vld [vmem:[%s1952 + $0xe0] sm:$0xfc]
        %v2232 = vld [vmem:[%s1952 + $0xe8] sm:$0xfc]
        %v2233 = vld [vmem:[%s1952 + $0xf0] sm:$0x3]
        %v2234 = vld [vmem:[%s1952 + $0xf8] sm:$0x3]
        %v2236 = vlaneseq
        %v2237 = vshrl.u32 %v2236, 7
        %v2238 = vsub.s32 0, %v2237
        %v2239 = vrot.slane %v2202, %v2238
        %v2240 = vlaneseq
        %v2241 = vshrl.u32 %v2240, 7
        %v2242 = vsub.s32 1, %v2241
        %v2243 = vrot.slane %v2202, %v2242
        %v2246 = vmul.f32 %v2203, %v2239
        %v2247 = vmul.f32 %v2204, %v2243
        %v2248 = vmul.f32 %v2205, %v2239
        %v2249 = vmul.f32 %v2206, %v2243
        %v2250 = vmul.f32 %v2207, %v2239
        %v2251 = vmul.f32 %v2208, %v2243
        %v2252 = vmul.f32 %v2209, %v2239
        %v2253 = vmul.f32 %v2210, %v2243
        %v2254 = vmul.f32 %v2211, %v2239
        %v2255 = vmul.f32 %v2212, %v2243
        %v2256 = vmul.f32 %v2213, %v2239
        %v2257 = vmul.f32 %v2214, %v2243
        %v2258 = vmul.f32 %v2215, %v2239
        %v2259 = vmul.f32 %v2216, %v2243
        %v2260 = vmul.f32 %v2217, %v2239
        %v2261 = vmul.f32 %v2218, %v2243
        %v2262 = vmul.f32 %v2219, %v2239
        %v2263 = vmul.f32 %v2220, %v2243
        %v2264 = vmul.f32 %v2221, %v2239
        %v2265 = vmul.f32 %v2222, %v2243
        %v2266 = vmul.f32 %v2223, %v2239
        %v2267 = vmul.f32 %v2224, %v2243
        %v2268 = vmul.f32 %v2225, %v2239
        %v2269 = vmul.f32 %v2226, %v2243
        %v2270 = vmul.f32 %v2227, %v2239
        %v2271 = vmul.f32 %v2228, %v2243
        %v2272 = vmul.f32 %v2229, %v2239
        %v2273 = vmul.f32 %v2230, %v2243
        %v2274 = vmul.f32 %v2231, %v2239
        %v2275 = vmul.f32 %v2232, %v2243
        %v2276 = vmul.f32 %v2233, %v2239
        %v2277 = vmul.f32 %v2234, %v2243
        %v2310 = vrot.slane %v2246, 2
        %v2311 = vrot.slane %v2248, 2
        %v2312 = vsel %vm540, %v2310, %v2311
        %v2313 = vrot.slane %v2247, 2
        %v2314 = vrot.slane %v2249, 2
        %v2315 = vsel %vm540, %v2313, %v2314
        %v2316 = vrot.slane %v2250, 2
        %v2317 = vrot.slane %v2252, 2
        %v2318 = vsel %vm540, %v2316, %v2317
        %v2319 = vrot.slane %v2251, 2
        %v2320 = vrot.slane %v2253, 2
        %v2321 = vsel %vm540, %v2319, %v2320
        %v2322 = vrot.slane %v2254, 2
        %v2323 = vrot.slane %v2256, 2
        %v2324 = vsel %vm540, %v2322, %v2323
        %v2325 = vrot.slane %v2255, 2
        %v2326 = vrot.slane %v2257, 2
        %v2327 = vsel %vm540, %v2325, %v2326
        %v2328 = vrot.slane %v2258, 2
        %v2329 = vrot.slane %v2260, 2
        %v2330 = vsel %vm540, %v2328, %v2329
        %v2331 = vrot.slane %v2259, 2
        %v2332 = vrot.slane %v2261, 2
        %v2333 = vsel %vm540, %v2331, %v2332
        %v2334 = vrot.slane %v2262, 2
        %v2335 = vrot.slane %v2264, 2
        %v2336 = vsel %vm540, %v2334, %v2335
        %v2337 = vrot.slane %v2263, 2
        %v2338 = vrot.slane %v2265, 2
        %v2339 = vsel %vm540, %v2337, %v2338
        %v2340 = vrot.slane %v2266, 2
        %v2341 = vrot.slane %v2268, 2
        %v2342 = vsel %vm540, %v2340, %v2341
        %v2343 = vrot.slane %v2267, 2
        %v2344 = vrot.slane %v2269, 2
        %v2345 = vsel %vm540, %v2343, %v2344
        %v2346 = vrot.slane %v2270, 2
        %v2347 = vrot.slane %v2272, 2
        %v2348 = vsel %vm540, %v2346, %v2347
        %v2349 = vrot.slane %v2271, 2
        %v2350 = vrot.slane %v2273, 2
        %v2351 = vsel %vm540, %v2349, %v2350
        %v2352 = vrot.slane %v2274, 2
        %v2353 = vrot.slane %v2276, 2
        %v2354 = vsel %vm540, %v2352, %v2353
        %v2355 = vrot.slane %v2275, 2
        %v2356 = vrot.slane %v2277, 2
        %v2357 = vsel %vm540, %v2355, %v2356
        %v2374 = vadd.f32 %v2185, %v2312
        %v2375 = vadd.f32 %v2186, %v2315
        %v2376 = vadd.f32 %v2187, %v2318
        %v2377 = vadd.f32 %v2188, %v2321
        %v2378 = vadd.f32 %v2189, %v2324
        %v2379 = vadd.f32 %v2190, %v2327
        %v2380 = vadd.f32 %v2191, %v2330
        %v2381 = vadd.f32 %v2192, %v2333
        %v2382 = vadd.f32 %v2193, %v2336
        %v2383 = vadd.f32 %v2194, %v2339
        %v2384 = vadd.f32 %v2195, %v2342
        %v2385 = vadd.f32 %v2196, %v2345
        %v2386 = vadd.f32 %v2197, %v2348
        %v2387 = vadd.f32 %v2198, %v2351
        %v2388 = vadd.f32 %v2199, %v2354
        %v2389 = vadd.f32 %v2200, %v2357
        %s2390 = scalar_lea.vmem %s1, 23
        %v2391 = vld [vmem:[%s2390] ss:$8 sm:$0x3]
        %s2392 = sadd.s32 8, %s1508
        %s2393 = smul.addr %s2392, 8
        %s2394 = scalar_lea.vmem %s165, %s2393
        %v2395 = vld [vmem:[%s2394] sm:$0xff]
        %v2396 = vld [vmem:[%s2394 + $0x8] sm:$0xff]
        %v2397 = vld [vmem:[%s2394 + $0x20] sm:$0xff]
        %v2398 = vld [vmem:[%s2394 + $0x28] sm:$0xff]
        %v2399 = vld [vmem:[%s2394 + $0x40] sm:$0xff]
        %v2400 = vld [vmem:[%s2394 + $0x48] sm:$0xff]
        %v2401 = vld [vmem:[%s2394 + $0x60] sm:$0xff]
        %v2402 = vld [vmem:[%s2394 + $0x68] sm:$0xff]
        %v2403 = vld [vmem:[%s2394 + $0x80] sm:$0xff]
        %v2404 = vld [vmem:[%s2394 + $0x88] sm:$0xff]
        %v2405 = vld [vmem:[%s2394 + $0xa0] sm:$0xff]
        %v2406 = vld [vmem:[%s2394 + $0xa8] sm:$0xff]
        %v2407 = vld [vmem:[%s2394 + $0xc0] sm:$0xff]
        %v2408 = vld [vmem:[%s2394 + $0xc8] sm:$0xff]
        %v2409 = vld [vmem:[%s2394 + $0xe0] sm:$0xff]
        %v2410 = vld [vmem:[%s2394 + $0xe8] sm:$0xff]
        %v2412 = vlaneseq
        %v2413 = vshrl.u32 %v2412, 7
        %v2414 = vsub.s32 0, %v2413
        %v2415 = vrot.slane %v2391, %v2414
        %v2416 = vlaneseq
        %v2417 = vshrl.u32 %v2416, 7
        %v2418 = vsub.s32 1, %v2417
        %v2419 = vrot.slane %v2391, %v2418
        %v2422 = vmul.f32 %v2395, %v2415
        %v2423 = vmul.f32 %v2396, %v2419
        %v2424 = vmul.f32 %v2397, %v2415
        %v2425 = vmul.f32 %v2398, %v2419
        %v2426 = vmul.f32 %v2399, %v2415
        %v2427 = vmul.f32 %v2400, %v2419
        %v2428 = vmul.f32 %v2401, %v2415
        %v2429 = vmul.f32 %v2402, %v2419
        %v2430 = vmul.f32 %v2403, %v2415
        %v2431 = vmul.f32 %v2404, %v2419
        %v2432 = vmul.f32 %v2405, %v2415
        %v2433 = vmul.f32 %v2406, %v2419
        %v2434 = vmul.f32 %v2407, %v2415
        %v2435 = vmul.f32 %v2408, %v2419
        %v2436 = vmul.f32 %v2409, %v2415
        %v2437 = vmul.f32 %v2410, %v2419
        %v2438 = vadd.f32 %v2374, %v2422
        %v2439 = vadd.f32 %v2375, %v2423
        %v2440 = vadd.f32 %v2376, %v2424
        %v2441 = vadd.f32 %v2377, %v2425
        %v2442 = vadd.f32 %v2378, %v2426
        %v2443 = vadd.f32 %v2379, %v2427
        %v2444 = vadd.f32 %v2380, %v2428
        %v2445 = vadd.f32 %v2381, %v2429
        %v2446 = vadd.f32 %v2382, %v2430
        %v2447 = vadd.f32 %v2383, %v2431
        %v2448 = vadd.f32 %v2384, %v2432
        %v2449 = vadd.f32 %v2385, %v2433
        %v2450 = vadd.f32 %v2386, %v2434
        %v2451 = vadd.f32 %v2387, %v2435
        %v2452 = vadd.f32 %v2388, %v2436
        %v2453 = vadd.f32 %v2389, %v2437
        %s2454 = scalar_lea.vmem %s1, 32
        %v2455 = vld [vmem:[%s2454] ss:$8 sm:$0x3]
        %v2456 = vld [vmem:[%s2394] sm:$0xfe]
        %v2457 = vld [vmem:[%s2394 + $0x8] sm:$0xfe]
        %v2458 = vld [vmem:[%s2394 + $0x10] sm:$0x1]
        %v2459 = vld [vmem:[%s2394 + $0x18] sm:$0x1]
        %v2460 = vld [vmem:[%s2394 + $0x20] sm:$0xfe]
        %v2461 = vld [vmem:[%s2394 + $0x28] sm:$0xfe]
        %v2462 = vld [vmem:[%s2394 + $0x30] sm:$0x1]
        %v2463 = vld [vmem:[%s2394 + $0x38] sm:$0x1]
        %v2464 = vld [vmem:[%s2394 + $0x40] sm:$0xfe]
        %v2465 = vld [vmem:[%s2394 + $0x48] sm:$0xfe]
        %v2466 = vld [vmem:[%s2394 + $0x50] sm:$0x1]
        %v2467 = vld [vmem:[%s2394 + $0x58] sm:$0x1]
        %v2468 = vld [vmem:[%s2394 + $0x60] sm:$0xfe]
        %v2469 = vld [vmem:[%s2394 + $0x68] sm:$0xfe]
        %v2470 = vld [vmem:[%s2394 + $0x70] sm:$0x1]
        %v2471 = vld [vmem:[%s2394 + $0x78] sm:$0x1]
        %v2472 = vld [vmem:[%s2394 + $0x80] sm:$0xfe]
        %v2473 = vld [vmem:[%s2394 + $0x88] sm:$0xfe]
        %v2474 = vld [vmem:[%s2394 + $0x90] sm:$0x1]
        %v2475 = vld [vmem:[%s2394 + $0x98] sm:$0x1]
        %v2476 = vld [vmem:[%s2394 + $0xa0] sm:$0xfe]
        %v2477 = vld [vmem:[%s2394 + $0xa8] sm:$0xfe]
        %v2478 = vld [vmem:[%s2394 + $0xb0] sm:$0x1]
        %v2479 = vld [vmem:[%s2394 + $0xb8] sm:$0x1]
        %v2480 = vld [vmem:[%s2394 + $0xc0] sm:$0xfe]
        %v2481 = vld [vmem:[%s2394 + $0xc8] sm:$0xfe]
        %v2482 = vld [vmem:[%s2394 + $0xd0] sm:$0x1]
        %v2483 = vld [vmem:[%s2394 + $0xd8] sm:$0x1]
        %v2484 = vld [vmem:[%s2394 + $0xe0] sm:$0xfe]
        %v2485 = vld [vmem:[%s2394 + $0xe8] sm:$0xfe]
        %v2486 = vld [vmem:[%s2394 + $0xf0] sm:$0x1]
        %v2487 = vld [vmem:[%s2394 + $0xf8] sm:$0x1]
        %v2489 = vlaneseq
        %v2490 = vshrl.u32 %v2489, 7
        %v2491 = vsub.s32 0, %v2490
        %v2492 = vrot.slane %v2455, %v2491
        %v2493 = vlaneseq
        %v2494 = vshrl.u32 %v2493, 7
        %v2495 = vsub.s32 1, %v2494
        %v2496 = vrot.slane %v2455, %v2495
        %v2499 = vmul.f32 %v2456, %v2492
        %v2500 = vmul.f32 %v2457, %v2496
        %v2501 = vmul.f32 %v2458, %v2492
        %v2502 = vmul.f32 %v2459, %v2496
        %v2503 = vmul.f32 %v2460, %v2492
        %v2504 = vmul.f32 %v2461, %v2496
        %v2505 = vmul.f32 %v2462, %v2492
        %v2506 = vmul.f32 %v2463, %v2496
        %v2507 = vmul.f32 %v2464, %v2492
        %v2508 = vmul.f32 %v2465, %v2496
        %v2509 = vmul.f32 %v2466, %v2492
        %v2510 = vmul.f32 %v2467, %v2496
        %v2511 = vmul.f32 %v2468, %v2492
        %v2512 = vmul.f32 %v2469, %v2496
        %v2513 = vmul.f32 %v2470, %v2492
        %v2514 = vmul.f32 %v2471, %v2496
        %v2515 = vmul.f32 %v2472, %v2492
        %v2516 = vmul.f32 %v2473, %v2496
        %v2517 = vmul.f32 %v2474, %v2492
        %v2518 = vmul.f32 %v2475, %v2496
        %v2519 = vmul.f32 %v2476, %v2492
        %v2520 = vmul.f32 %v2477, %v2496
        %v2521 = vmul.f32 %v2478, %v2492
        %v2522 = vmul.f32 %v2479, %v2496
        %v2523 = vmul.f32 %v2480, %v2492
        %v2524 = vmul.f32 %v2481, %v2496
        %v2525 = vmul.f32 %v2482, %v2492
        %v2526 = vmul.f32 %v2483, %v2496
        %v2527 = vmul.f32 %v2484, %v2492
        %v2528 = vmul.f32 %v2485, %v2496
        %v2529 = vmul.f32 %v2486, %v2492
        %v2530 = vmul.f32 %v2487, %v2496
        %v2563 = vrot.slane %v2499, 1
        %v2564 = vrot.slane %v2501, 1
        %v2565 = vsel %vm350, %v2563, %v2564
        %v2566 = vrot.slane %v2500, 1
        %v2567 = vrot.slane %v2502, 1
        %v2568 = vsel %vm350, %v2566, %v2567
        %v2569 = vrot.slane %v2503, 1
        %v2570 = vrot.slane %v2505, 1
        %v2571 = vsel %vm350, %v2569, %v2570
        %v2572 = vrot.slane %v2504, 1
        %v2573 = vrot.slane %v2506, 1
        %v2574 = vsel %vm350, %v2572, %v2573
        %v2575 = vrot.slane %v2507, 1
        %v2576 = vrot.slane %v2509, 1
        %v2577 = vsel %vm350, %v2575, %v2576
        %v2578 = vrot.slane %v2508, 1
        %v2579 = vrot.slane %v2510, 1
        %v2580 = vsel %vm350, %v2578, %v2579
        %v2581 = vrot.slane %v2511, 1
        %v2582 = vrot.slane %v2513, 1
        %v2583 = vsel %vm350, %v2581, %v2582
        %v2584 = vrot.slane %v2512, 1
        %v2585 = vrot.slane %v2514, 1
        %v2586 = vsel %vm350, %v2584, %v2585
        %v2587 = vrot.slane %v2515, 1
        %v2588 = vrot.slane %v2517, 1
        %v2589 = vsel %vm350, %v2587, %v2588
        %v2590 = vrot.slane %v2516, 1
        %v2591 = vrot.slane %v2518, 1
        %v2592 = vsel %vm350, %v2590, %v2591
        %v2593 = vrot.slane %v2519, 1
        %v2594 = vrot.slane %v2521, 1
        %v2595 = vsel %vm350, %v2593, %v2594
        %v2596 = vrot.slane %v2520, 1
        %v2597 = vrot.slane %v2522, 1
        %v2598 = vsel %vm350, %v2596, %v2597
        %v2599 = vrot.slane %v2523, 1
        %v2600 = vrot.slane %v2525, 1
        %v2601 = vsel %vm350, %v2599, %v2600
        %v2602 = vrot.slane %v2524, 1
        %v2603 = vrot.slane %v2526, 1
        %v2604 = vsel %vm350, %v2602, %v2603
        %v2605 = vrot.slane %v2527, 1
        %v2606 = vrot.slane %v2529, 1
        %v2607 = vsel %vm350, %v2605, %v2606
        %v2608 = vrot.slane %v2528, 1
        %v2609 = vrot.slane %v2530, 1
        %v2610 = vsel %vm350, %v2608, %v2609
        %v2627 = vadd.f32 %v2438, %v2565
        %v2628 = vadd.f32 %v2439, %v2568
        %v2629 = vadd.f32 %v2440, %v2571
        %v2630 = vadd.f32 %v2441, %v2574
        %v2631 = vadd.f32 %v2442, %v2577
        %v2632 = vadd.f32 %v2443, %v2580
        %v2633 = vadd.f32 %v2444, %v2583
        %v2634 = vadd.f32 %v2445, %v2586
        %v2635 = vadd.f32 %v2446, %v2589
        %v2636 = vadd.f32 %v2447, %v2592
        %v2637 = vadd.f32 %v2448, %v2595
        %v2638 = vadd.f32 %v2449, %v2598
        %v2639 = vadd.f32 %v2450, %v2601
        %v2640 = vadd.f32 %v2451, %v2604
        %v2641 = vadd.f32 %v2452, %v2607
        %v2642 = vadd.f32 %v2453, %v2610
        %s2643 = scalar_lea.vmem %s1, 33
        %v2644 = vld [vmem:[%s2643] ss:$8 sm:$0x3]
        %v2645 = vld [vmem:[%s2394] sm:$0xfc]
        %v2646 = vld [vmem:[%s2394 + $0x8] sm:$0xfc]
        %v2647 = vld [vmem:[%s2394 + $0x10] sm:$0x3]
        %v2648 = vld [vmem:[%s2394 + $0x18] sm:$0x3]
        %v2649 = vld [vmem:[%s2394 + $0x20] sm:$0xfc]
        %v2650 = vld [vmem:[%s2394 + $0x28] sm:$0xfc]
        %v2651 = vld [vmem:[%s2394 + $0x30] sm:$0x3]
        %v2652 = vld [vmem:[%s2394 + $0x38] sm:$0x3]
        %v2653 = vld [vmem:[%s2394 + $0x40] sm:$0xfc]
        %v2654 = vld [vmem:[%s2394 + $0x48] sm:$0xfc]
        %v2655 = vld [vmem:[%s2394 + $0x50] sm:$0x3]
        %v2656 = vld [vmem:[%s2394 + $0x58] sm:$0x3]
        %v2657 = vld [vmem:[%s2394 + $0x60] sm:$0xfc]
        %v2658 = vld [vmem:[%s2394 + $0x68] sm:$0xfc]
        %v2659 = vld [vmem:[%s2394 + $0x70] sm:$0x3]
        %v2660 = vld [vmem:[%s2394 + $0x78] sm:$0x3]
        %v2661 = vld [vmem:[%s2394 + $0x80] sm:$0xfc]
        %v2662 = vld [vmem:[%s2394 + $0x88] sm:$0xfc]
        %v2663 = vld [vmem:[%s2394 + $0x90] sm:$0x3]
        %v2664 = vld [vmem:[%s2394 + $0x98] sm:$0x3]
        %v2665 = vld [vmem:[%s2394 + $0xa0] sm:$0xfc]
        %v2666 = vld [vmem:[%s2394 + $0xa8] sm:$0xfc]
        %v2667 = vld [vmem:[%s2394 + $0xb0] sm:$0x3]
        %v2668 = vld [vmem:[%s2394 + $0xb8] sm:$0x3]
        %v2669 = vld [vmem:[%s2394 + $0xc0] sm:$0xfc]
        %v2670 = vld [vmem:[%s2394 + $0xc8] sm:$0xfc]
        %v2671 = vld [vmem:[%s2394 + $0xd0] sm:$0x3]
        %v2672 = vld [vmem:[%s2394 + $0xd8] sm:$0x3]
        %v2673 = vld [vmem:[%s2394 + $0xe0] sm:$0xfc]
        %v2674 = vld [vmem:[%s2394 + $0xe8] sm:$0xfc]
        %v2675 = vld [vmem:[%s2394 + $0xf0] sm:$0x3]
        %v2676 = vld [vmem:[%s2394 + $0xf8] sm:$0x3]
        %v2678 = vlaneseq
        %v2679 = vshrl.u32 %v2678, 7
        %v2680 = vsub.s32 0, %v2679
        %v2681 = vrot.slane %v2644, %v2680
        %v2682 = vlaneseq
        %v2683 = vshrl.u32 %v2682, 7
        %v2684 = vsub.s32 1, %v2683
        %v2685 = vrot.slane %v2644, %v2684
        %v2688 = vmul.f32 %v2645, %v2681
        %v2689 = vmul.f32 %v2646, %v2685
        %v2690 = vmul.f32 %v2647, %v2681
        %v2691 = vmul.f32 %v2648, %v2685
        %v2692 = vmul.f32 %v2649, %v2681
        %v2693 = vmul.f32 %v2650, %v2685
        %v2694 = vmul.f32 %v2651, %v2681
        %v2695 = vmul.f32 %v2652, %v2685
        %v2696 = vmul.f32 %v2653, %v2681
        %v2697 = vmul.f32 %v2654, %v2685
        %v2698 = vmul.f32 %v2655, %v2681
        %v2699 = vmul.f32 %v2656, %v2685
        %v2700 = vmul.f32 %v2657, %v2681
        %v2701 = vmul.f32 %v2658, %v2685
        %v2702 = vmul.f32 %v2659, %v2681
        %v2703 = vmul.f32 %v2660, %v2685
        %v2704 = vmul.f32 %v2661, %v2681
        %v2705 = vmul.f32 %v2662, %v2685
        %v2706 = vmul.f32 %v2663, %v2681
        %v2707 = vmul.f32 %v2664, %v2685
        %v2708 = vmul.f32 %v2665, %v2681
        %v2709 = vmul.f32 %v2666, %v2685
        %v2710 = vmul.f32 %v2667, %v2681
        %v2711 = vmul.f32 %v2668, %v2685
        %v2712 = vmul.f32 %v2669, %v2681
        %v2713 = vmul.f32 %v2670, %v2685
        %v2714 = vmul.f32 %v2671, %v2681
        %v2715 = vmul.f32 %v2672, %v2685
        %v2716 = vmul.f32 %v2673, %v2681
        %v2717 = vmul.f32 %v2674, %v2685
        %v2718 = vmul.f32 %v2675, %v2681
        %v2719 = vmul.f32 %v2676, %v2685
        %v2752 = vrot.slane %v2688, 2
        %v2753 = vrot.slane %v2690, 2
        %v2754 = vsel %vm540, %v2752, %v2753
        %v2755 = vrot.slane %v2689, 2
        %v2756 = vrot.slane %v2691, 2
        %v2757 = vsel %vm540, %v2755, %v2756
        %v2758 = vrot.slane %v2692, 2
        %v2759 = vrot.slane %v2694, 2
        %v2760 = vsel %vm540, %v2758, %v2759
        %v2761 = vrot.slane %v2693, 2
        %v2762 = vrot.slane %v2695, 2
        %v2763 = vsel %vm540, %v2761, %v2762
        %v2764 = vrot.slane %v2696, 2
        %v2765 = vrot.slane %v2698, 2
        %v2766 = vsel %vm540, %v2764, %v2765
        %v2767 = vrot.slane %v2697, 2
        %v2768 = vrot.slane %v2699, 2
        %v2769 = vsel %vm540, %v2767, %v2768
        %v2770 = vrot.slane %v2700, 2
        %v2771 = vrot.slane %v2702, 2
        %v2772 = vsel %vm540, %v2770, %v2771
        %v2773 = vrot.slane %v2701, 2
        %v2774 = vrot.slane %v2703, 2
        %v2775 = vsel %vm540, %v2773, %v2774
        %v2776 = vrot.slane %v2704, 2
        %v2777 = vrot.slane %v2706, 2
        %v2778 = vsel %vm540, %v2776, %v2777
        %v2779 = vrot.slane %v2705, 2
        %v2780 = vrot.slane %v2707, 2
        %v2781 = vsel %vm540, %v2779, %v2780
        %v2782 = vrot.slane %v2708, 2
        %v2783 = vrot.slane %v2710, 2
        %v2784 = vsel %vm540, %v2782, %v2783
        %v2785 = vrot.slane %v2709, 2
        %v2786 = vrot.slane %v2711, 2
        %v2787 = vsel %vm540, %v2785, %v2786
        %v2788 = vrot.slane %v2712, 2
        %v2789 = vrot.slane %v2714, 2
        %v2790 = vsel %vm540, %v2788, %v2789
        %v2791 = vrot.slane %v2713, 2
        %v2792 = vrot.slane %v2715, 2
        %v2793 = vsel %vm540, %v2791, %v2792
        %v2794 = vrot.slane %v2716, 2
        %v2795 = vrot.slane %v2718, 2
        %v2796 = vsel %vm540, %v2794, %v2795
        %v2797 = vrot.slane %v2717, 2
        %v2798 = vrot.slane %v2719, 2
        %v2799 = vsel %vm540, %v2797, %v2798
        %v2816 = vadd.f32 %v2627, %v2754
        %v2817 = vadd.f32 %v2628, %v2757
        %v2818 = vadd.f32 %v2629, %v2760
        %v2819 = vadd.f32 %v2630, %v2763
        %v2820 = vadd.f32 %v2631, %v2766
        %v2821 = vadd.f32 %v2632, %v2769
        %v2822 = vadd.f32 %v2633, %v2772
        %v2823 = vadd.f32 %v2634, %v2775
        %v2824 = vadd.f32 %v2635, %v2778
        %v2825 = vadd.f32 %v2636, %v2781
        %v2826 = vadd.f32 %v2637, %v2784
        %v2827 = vadd.f32 %v2638, %v2787
        %v2828 = vadd.f32 %v2639, %v2790
        %v2829 = vadd.f32 %v2640, %v2793
        %v2830 = vadd.f32 %v2641, %v2796
        %v2831 = vadd.f32 %v2642, %v2799
        %s2832 = scalar_lea.vmem %s1, 34
        %v2833 = vld [vmem:[%s2832] ss:$8 sm:$0x3]
        %s2834 = sadd.s32 %s173, 2
        %s2835 = smul.u32 %s2834, 40
        %s2836 = smul.addr %s2835, 8
        %s2837 = scalar_lea.vmem %s165, %s2836
        %v2838 = vld [vmem:[%s2837] sm:$0xff]
        %v2839 = vld [vmem:[%s2837 + $0x8] sm:$0xff]
        %v2840 = vld [vmem:[%s2837 + $0x20] sm:$0xff]
        %v2841 = vld [vmem:[%s2837 + $0x28] sm:$0xff]
        %v2842 = vld [vmem:[%s2837 + $0x40] sm:$0xff]
        %v2843 = vld [vmem:[%s2837 + $0x48] sm:$0xff]
        %v2844 = vld [vmem:[%s2837 + $0x60] sm:$0xff]
        %v2845 = vld [vmem:[%s2837 + $0x68] sm:$0xff]
        %v2846 = vld [vmem:[%s2837 + $0x80] sm:$0xff]
        %v2847 = vld [vmem:[%s2837 + $0x88] sm:$0xff]
        %v2848 = vld [vmem:[%s2837 + $0xa0] sm:$0xff]
        %v2849 = vld [vmem:[%s2837 + $0xa8] sm:$0xff]
        %v2850 = vld [vmem:[%s2837 + $0xc0] sm:$0xff]
        %v2851 = vld [vmem:[%s2837 + $0xc8] sm:$0xff]
        %v2852 = vld [vmem:[%s2837 + $0xe0] sm:$0xff]
        %v2853 = vld [vmem:[%s2837 + $0xe8] sm:$0xff]
        %v2855 = vlaneseq
        %v2856 = vshrl.u32 %v2855, 7
        %v2857 = vsub.s32 0, %v2856
        %v2858 = vrot.slane %v2833, %v2857
        %v2859 = vlaneseq
        %v2860 = vshrl.u32 %v2859, 7
        %v2861 = vsub.s32 1, %v2860
        %v2862 = vrot.slane %v2833, %v2861
        %v2865 = vmul.f32 %v2838, %v2858
        %v2866 = vmul.f32 %v2839, %v2862
        %v2867 = vmul.f32 %v2840, %v2858
        %v2868 = vmul.f32 %v2841, %v2862
        %v2869 = vmul.f32 %v2842, %v2858
        %v2870 = vmul.f32 %v2843, %v2862
        %v2871 = vmul.f32 %v2844, %v2858
        %v2872 = vmul.f32 %v2845, %v2862
        %v2873 = vmul.f32 %v2846, %v2858
        %v2874 = vmul.f32 %v2847, %v2862
        %v2875 = vmul.f32 %v2848, %v2858
        %v2876 = vmul.f32 %v2849, %v2862
        %v2877 = vmul.f32 %v2850, %v2858
        %v2878 = vmul.f32 %v2851, %v2862
        %v2879 = vmul.f32 %v2852, %v2858
        %v2880 = vmul.f32 %v2853, %v2862
        %v2881 = vadd.f32 %v2816, %v2865
        %v2882 = vadd.f32 %v2817, %v2866
        %v2883 = vadd.f32 %v2818, %v2867
        %v2884 = vadd.f32 %v2819, %v2868
        %v2885 = vadd.f32 %v2820, %v2869
        %v2886 = vadd.f32 %v2821, %v2870
        %v2887 = vadd.f32 %v2822, %v2871
        %v2888 = vadd.f32 %v2823, %v2872
        %v2889 = vadd.f32 %v2824, %v2873
        %v2890 = vadd.f32 %v2825, %v2874
        %v2891 = vadd.f32 %v2826, %v2875
        %v2892 = vadd.f32 %v2827, %v2876
        %v2893 = vadd.f32 %v2828, %v2877
        %v2894 = vadd.f32 %v2829, %v2878
        %v2895 = vadd.f32 %v2830, %v2879
        %v2896 = vadd.f32 %v2831, %v2880
        %s2897 = scalar_lea.vmem %s1, 35
        %v2898 = vld [vmem:[%s2897] ss:$8 sm:$0x3]
        %v2899 = vld [vmem:[%s2837] sm:$0xfe]
        %v2900 = vld [vmem:[%s2837 + $0x8] sm:$0xfe]
        %v2901 = vld [vmem:[%s2837 + $0x10] sm:$0x1]
        %v2902 = vld [vmem:[%s2837 + $0x18] sm:$0x1]
        %v2903 = vld [vmem:[%s2837 + $0x20] sm:$0xfe]
        %v2904 = vld [vmem:[%s2837 + $0x28] sm:$0xfe]
        %v2905 = vld [vmem:[%s2837 + $0x30] sm:$0x1]
        %v2906 = vld [vmem:[%s2837 + $0x38] sm:$0x1]
        %v2907 = vld [vmem:[%s2837 + $0x40] sm:$0xfe]
        %v2908 = vld [vmem:[%s2837 + $0x48] sm:$0xfe]
        %v2909 = vld [vmem:[%s2837 + $0x50] sm:$0x1]
        %v2910 = vld [vmem:[%s2837 + $0x58] sm:$0x1]
        %v2911 = vld [vmem:[%s2837 + $0x60] sm:$0xfe]
        %v2912 = vld [vmem:[%s2837 + $0x68] sm:$0xfe]
        %v2913 = vld [vmem:[%s2837 + $0x70] sm:$0x1]
        %v2914 = vld [vmem:[%s2837 + $0x78] sm:$0x1]
        %v2915 = vld [vmem:[%s2837 + $0x80] sm:$0xfe]
        %v2916 = vld [vmem:[%s2837 + $0x88] sm:$0xfe]
        %v2917 = vld [vmem:[%s2837 + $0x90] sm:$0x1]
        %v2918 = vld [vmem:[%s2837 + $0x98] sm:$0x1]
        %v2919 = vld [vmem:[%s2837 + $0xa0] sm:$0xfe]
        %v2920 = vld [vmem:[%s2837 + $0xa8] sm:$0xfe]
        %v2921 = vld [vmem:[%s2837 + $0xb0] sm:$0x1]
        %v2922 = vld [vmem:[%s2837 + $0xb8] sm:$0x1]
        %v2923 = vld [vmem:[%s2837 + $0xc0] sm:$0xfe]
        %v2924 = vld [vmem:[%s2837 + $0xc8] sm:$0xfe]
        %v2925 = vld [vmem:[%s2837 + $0xd0] sm:$0x1]
        %v2926 = vld [vmem:[%s2837 + $0xd8] sm:$0x1]
        %v2927 = vld [vmem:[%s2837 + $0xe0] sm:$0xfe]
        %v2928 = vld [vmem:[%s2837 + $0xe8] sm:$0xfe]
        %v2929 = vld [vmem:[%s2837 + $0xf0] sm:$0x1]
        %v2930 = vld [vmem:[%s2837 + $0xf8] sm:$0x1]
        %v2932 = vlaneseq
        %v2933 = vshrl.u32 %v2932, 7
        %v2934 = vsub.s32 0, %v2933
        %v2935 = vrot.slane %v2898, %v2934
        %v2936 = vlaneseq
        %v2937 = vshrl.u32 %v2936, 7
        %v2938 = vsub.s32 1, %v2937
        %v2939 = vrot.slane %v2898, %v2938
        %v2942 = vmul.f32 %v2899, %v2935
        %v2943 = vmul.f32 %v2900, %v2939
        %v2944 = vmul.f32 %v2901, %v2935
        %v2945 = vmul.f32 %v2902, %v2939
        %v2946 = vmul.f32 %v2903, %v2935
        %v2947 = vmul.f32 %v2904, %v2939
        %v2948 = vmul.f32 %v2905, %v2935
        %v2949 = vmul.f32 %v2906, %v2939
        %v2950 = vmul.f32 %v2907, %v2935
        %v2951 = vmul.f32 %v2908, %v2939
        %v2952 = vmul.f32 %v2909, %v2935
        %v2953 = vmul.f32 %v2910, %v2939
        %v2954 = vmul.f32 %v2911, %v2935
        %v2955 = vmul.f32 %v2912, %v2939
        %v2956 = vmul.f32 %v2913, %v2935
        %v2957 = vmul.f32 %v2914, %v2939
        %v2958 = vmul.f32 %v2915, %v2935
        %v2959 = vmul.f32 %v2916, %v2939
        %v2960 = vmul.f32 %v2917, %v2935
        %v2961 = vmul.f32 %v2918, %v2939
        %v2962 = vmul.f32 %v2919, %v2935
        %v2963 = vmul.f32 %v2920, %v2939
        %v2964 = vmul.f32 %v2921, %v2935
        %v2965 = vmul.f32 %v2922, %v2939
        %v2966 = vmul.f32 %v2923, %v2935
        %v2967 = vmul.f32 %v2924, %v2939
        %v2968 = vmul.f32 %v2925, %v2935
        %v2969 = vmul.f32 %v2926, %v2939
        %v2970 = vmul.f32 %v2927, %v2935
        %v2971 = vmul.f32 %v2928, %v2939
        %v2972 = vmul.f32 %v2929, %v2935
        %v2973 = vmul.f32 %v2930, %v2939
        %v3006 = vrot.slane %v2942, 1
        %v3007 = vrot.slane %v2944, 1
        %v3008 = vsel %vm350, %v3006, %v3007
        %v3009 = vrot.slane %v2943, 1
        %v3010 = vrot.slane %v2945, 1
        %v3011 = vsel %vm350, %v3009, %v3010
        %v3012 = vrot.slane %v2946, 1
        %v3013 = vrot.slane %v2948, 1
        %v3014 = vsel %vm350, %v3012, %v3013
        %v3015 = vrot.slane %v2947, 1
        %v3016 = vrot.slane %v2949, 1
        %v3017 = vsel %vm350, %v3015, %v3016
        %v3018 = vrot.slane %v2950, 1
        %v3019 = vrot.slane %v2952, 1
        %v3020 = vsel %vm350, %v3018, %v3019
        %v3021 = vrot.slane %v2951, 1
        %v3022 = vrot.slane %v2953, 1
        %v3023 = vsel %vm350, %v3021, %v3022
        %v3024 = vrot.slane %v2954, 1
        %v3025 = vrot.slane %v2956, 1
        %v3026 = vsel %vm350, %v3024, %v3025
        %v3027 = vrot.slane %v2955, 1
        %v3028 = vrot.slane %v2957, 1
        %v3029 = vsel %vm350, %v3027, %v3028
        %v3030 = vrot.slane %v2958, 1
        %v3031 = vrot.slane %v2960, 1
        %v3032 = vsel %vm350, %v3030, %v3031
        %v3033 = vrot.slane %v2959, 1
        %v3034 = vrot.slane %v2961, 1
        %v3035 = vsel %vm350, %v3033, %v3034
        %v3036 = vrot.slane %v2962, 1
        %v3037 = vrot.slane %v2964, 1
        %v3038 = vsel %vm350, %v3036, %v3037
        %v3039 = vrot.slane %v2963, 1
        %v3040 = vrot.slane %v2965, 1
        %v3041 = vsel %vm350, %v3039, %v3040
        %v3042 = vrot.slane %v2966, 1
        %v3043 = vrot.slane %v2968, 1
        %v3044 = vsel %vm350, %v3042, %v3043
        %v3045 = vrot.slane %v2967, 1
        %v3046 = vrot.slane %v2969, 1
        %v3047 = vsel %vm350, %v3045, %v3046
        %v3048 = vrot.slane %v2970, 1
        %v3049 = vrot.slane %v2972, 1
        %v3050 = vsel %vm350, %v3048, %v3049
        %v3051 = vrot.slane %v2971, 1
        %v3052 = vrot.slane %v2973, 1
        %v3053 = vsel %vm350, %v3051, %v3052
        %v3070 = vadd.f32 %v2881, %v3008
        %v3071 = vadd.f32 %v2882, %v3011
        %v3072 = vadd.f32 %v2883, %v3014
        %v3073 = vadd.f32 %v2884, %v3017
        %v3074 = vadd.f32 %v2885, %v3020
        %v3075 = vadd.f32 %v2886, %v3023
        %v3076 = vadd.f32 %v2887, %v3026
        %v3077 = vadd.f32 %v2888, %v3029
        %v3078 = vadd.f32 %v2889, %v3032
        %v3079 = vadd.f32 %v2890, %v3035
        %v3080 = vadd.f32 %v2891, %v3038
        %v3081 = vadd.f32 %v2892, %v3041
        %v3082 = vadd.f32 %v2893, %v3044
        %v3083 = vadd.f32 %v2894, %v3047
        %v3084 = vadd.f32 %v2895, %v3050
        %v3085 = vadd.f32 %v2896, %v3053
        %s3086 = scalar_lea.vmem %s1, 36
        %v3087 = vld [vmem:[%s3086] ss:$8 sm:$0x3]
        %v3088 = vld [vmem:[%s2837] sm:$0xfc]
        %v3089 = vld [vmem:[%s2837 + $0x8] sm:$0xfc]
        %v3090 = vld [vmem:[%s2837 + $0x10] sm:$0x3]
        %v3091 = vld [vmem:[%s2837 + $0x18] sm:$0x3]
        %v3092 = vld [vmem:[%s2837 + $0x20] sm:$0xfc]
        %v3093 = vld [vmem:[%s2837 + $0x28] sm:$0xfc]
        %v3094 = vld [vmem:[%s2837 + $0x30] sm:$0x3]
        %v3095 = vld [vmem:[%s2837 + $0x38] sm:$0x3]
        %v3096 = vld [vmem:[%s2837 + $0x40] sm:$0xfc]
        %v3097 = vld [vmem:[%s2837 + $0x48] sm:$0xfc]
        %v3098 = vld [vmem:[%s2837 + $0x50] sm:$0x3]
        %v3099 = vld [vmem:[%s2837 + $0x58] sm:$0x3]
        %v3100 = vld [vmem:[%s2837 + $0x60] sm:$0xfc]
        %v3101 = vld [vmem:[%s2837 + $0x68] sm:$0xfc]
        %v3102 = vld [vmem:[%s2837 + $0x70] sm:$0x3]
        %v3103 = vld [vmem:[%s2837 + $0x78] sm:$0x3]
        %v3104 = vld [vmem:[%s2837 + $0x80] sm:$0xfc]
        %v3105 = vld [vmem:[%s2837 + $0x88] sm:$0xfc]
        %v3106 = vld [vmem:[%s2837 + $0x90] sm:$0x3]
        %v3107 = vld [vmem:[%s2837 + $0x98] sm:$0x3]
        %v3108 = vld [vmem:[%s2837 + $0xa0] sm:$0xfc]
        %v3109 = vld [vmem:[%s2837 + $0xa8] sm:$0xfc]
        %v3110 = vld [vmem:[%s2837 + $0xb0] sm:$0x3]
        %v3111 = vld [vmem:[%s2837 + $0xb8] sm:$0x3]
        %v3112 = vld [vmem:[%s2837 + $0xc0] sm:$0xfc]
        %v3113 = vld [vmem:[%s2837 + $0xc8] sm:$0xfc]
        %v3114 = vld [vmem:[%s2837 + $0xd0] sm:$0x3]
        %v3115 = vld [vmem:[%s2837 + $0xd8] sm:$0x3]
        %v3116 = vld [vmem:[%s2837 + $0xe0] sm:$0xfc]
        %v3117 = vld [vmem:[%s2837 + $0xe8] sm:$0xfc]
        %v3118 = vld [vmem:[%s2837 + $0xf0] sm:$0x3]
        %v3119 = vld [vmem:[%s2837 + $0xf8] sm:$0x3]
        %v3121 = vlaneseq
        %v3122 = vshrl.u32 %v3121, 7
        %v3123 = vsub.s32 0, %v3122
        %v3124 = vrot.slane %v3087, %v3123
        %v3125 = vlaneseq
        %v3126 = vshrl.u32 %v3125, 7
        %v3127 = vsub.s32 1, %v3126
        %v3128 = vrot.slane %v3087, %v3127
        %v3131 = vmul.f32 %v3088, %v3124
        %v3132 = vmul.f32 %v3089, %v3128
        %v3133 = vmul.f32 %v3090, %v3124
        %v3134 = vmul.f32 %v3091, %v3128
        %v3135 = vmul.f32 %v3092, %v3124
        %v3136 = vmul.f32 %v3093, %v3128
        %v3137 = vmul.f32 %v3094, %v3124
        %v3138 = vmul.f32 %v3095, %v3128
        %v3139 = vmul.f32 %v3096, %v3124
        %v3140 = vmul.f32 %v3097, %v3128
        %v3141 = vmul.f32 %v3098, %v3124
        %v3142 = vmul.f32 %v3099, %v3128
        %v3143 = vmul.f32 %v3100, %v3124
        %v3144 = vmul.f32 %v3101, %v3128
        %v3145 = vmul.f32 %v3102, %v3124
        %v3146 = vmul.f32 %v3103, %v3128
        %v3147 = vmul.f32 %v3104, %v3124
        %v3148 = vmul.f32 %v3105, %v3128
        %v3149 = vmul.f32 %v3106, %v3124
        %v3150 = vmul.f32 %v3107, %v3128
        %v3151 = vmul.f32 %v3108, %v3124
        %v3152 = vmul.f32 %v3109, %v3128
        %v3153 = vmul.f32 %v3110, %v3124
        %v3154 = vmul.f32 %v3111, %v3128
        %v3155 = vmul.f32 %v3112, %v3124
        %v3156 = vmul.f32 %v3113, %v3128
        %v3157 = vmul.f32 %v3114, %v3124
        %v3158 = vmul.f32 %v3115, %v3128
        %v3159 = vmul.f32 %v3116, %v3124
        %v3160 = vmul.f32 %v3117, %v3128
        %v3161 = vmul.f32 %v3118, %v3124
        %v3162 = vmul.f32 %v3119, %v3128
        %v3195 = vrot.slane %v3131, 2
        %v3196 = vrot.slane %v3133, 2
        %v3197 = vsel %vm540, %v3195, %v3196
        %v3198 = vrot.slane %v3132, 2
        %v3199 = vrot.slane %v3134, 2
        %v3200 = vsel %vm540, %v3198, %v3199
        %v3201 = vrot.slane %v3135, 2
        %v3202 = vrot.slane %v3137, 2
        %v3203 = vsel %vm540, %v3201, %v3202
        %v3204 = vrot.slane %v3136, 2
        %v3205 = vrot.slane %v3138, 2
        %v3206 = vsel %vm540, %v3204, %v3205
        %v3207 = vrot.slane %v3139, 2
        %v3208 = vrot.slane %v3141, 2
        %v3209 = vsel %vm540, %v3207, %v3208
        %v3210 = vrot.slane %v3140, 2
        %v3211 = vrot.slane %v3142, 2
        %v3212 = vsel %vm540, %v3210, %v3211
        %v3213 = vrot.slane %v3143, 2
        %v3214 = vrot.slane %v3145, 2
        %v3215 = vsel %vm540, %v3213, %v3214
        %v3216 = vrot.slane %v3144, 2
        %v3217 = vrot.slane %v3146, 2
        %v3218 = vsel %vm540, %v3216, %v3217
        %v3219 = vrot.slane %v3147, 2
        %v3220 = vrot.slane %v3149, 2
        %v3221 = vsel %vm540, %v3219, %v3220
        %v3222 = vrot.slane %v3148, 2
        %v3223 = vrot.slane %v3150, 2
        %v3224 = vsel %vm540, %v3222, %v3223
        %v3225 = vrot.slane %v3151, 2
        %v3226 = vrot.slane %v3153, 2
        %v3227 = vsel %vm540, %v3225, %v3226
        %v3228 = vrot.slane %v3152, 2
        %v3229 = vrot.slane %v3154, 2
        %v3230 = vsel %vm540, %v3228, %v3229
        %v3231 = vrot.slane %v3155, 2
        %v3232 = vrot.slane %v3157, 2
        %v3233 = vsel %vm540, %v3231, %v3232
        %v3234 = vrot.slane %v3156, 2
        %v3235 = vrot.slane %v3158, 2
        %v3236 = vsel %vm540, %v3234, %v3235
        %v3237 = vrot.slane %v3159, 2
        %v3238 = vrot.slane %v3161, 2
        %v3239 = vsel %vm540, %v3237, %v3238
        %v3240 = vrot.slane %v3160, 2
        %v3241 = vrot.slane %v3162, 2
        %v3242 = vsel %vm540, %v3240, %v3241
        %v3259 = vadd.f32 %v3070, %v3197
        %v3260 = vadd.f32 %v3071, %v3200
        %v3261 = vadd.f32 %v3072, %v3203
        %v3262 = vadd.f32 %v3073, %v3206
        %v3263 = vadd.f32 %v3074, %v3209
        %v3264 = vadd.f32 %v3075, %v3212
        %v3265 = vadd.f32 %v3076, %v3215
        %v3266 = vadd.f32 %v3077, %v3218
        %v3267 = vadd.f32 %v3078, %v3221
        %v3268 = vadd.f32 %v3079, %v3224
        %v3269 = vadd.f32 %v3080, %v3227
        %v3270 = vadd.f32 %v3081, %v3230
        %v3271 = vadd.f32 %v3082, %v3233
        %v3272 = vadd.f32 %v3083, %v3236
        %v3273 = vadd.f32 %v3084, %v3239
        %v3274 = vadd.f32 %v3085, %v3242
        %s3275 = scalar_lea.vmem %s1, 37
        %v3276 = vld [vmem:[%s3275] ss:$8 sm:$0x3]
        %s3277 = sadd.s32 4, %s2835
        %s3278 = smul.addr %s3277, 8
        %s3279 = scalar_lea.vmem %s165, %s3278
        %v3280 = vld [vmem:[%s3279] sm:$0xff]
        %v3281 = vld [vmem:[%s3279 + $0x8] sm:$0xff]
        %v3282 = vld [vmem:[%s3279 + $0x20] sm:$0xff]
        %v3283 = vld [vmem:[%s3279 + $0x28] sm:$0xff]
        %v3284 = vld [vmem:[%s3279 + $0x40] sm:$0xff]
        %v3285 = vld [vmem:[%s3279 + $0x48] sm:$0xff]
        %v3286 = vld [vmem:[%s3279 + $0x60] sm:$0xff]
        %v3287 = vld [vmem:[%s3279 + $0x68] sm:$0xff]
        %v3288 = vld [vmem:[%s3279 + $0x80] sm:$0xff]
        %v3289 = vld [vmem:[%s3279 + $0x88] sm:$0xff]
        %v3290 = vld [vmem:[%s3279 + $0xa0] sm:$0xff]
        %v3291 = vld [vmem:[%s3279 + $0xa8] sm:$0xff]
        %v3292 = vld [vmem:[%s3279 + $0xc0] sm:$0xff]
        %v3293 = vld [vmem:[%s3279 + $0xc8] sm:$0xff]
        %v3294 = vld [vmem:[%s3279 + $0xe0] sm:$0xff]
        %v3295 = vld [vmem:[%s3279 + $0xe8] sm:$0xff]
        %v3297 = vlaneseq
        %v3298 = vshrl.u32 %v3297, 7
        %v3299 = vsub.s32 0, %v3298
        %v3300 = vrot.slane %v3276, %v3299
        %v3301 = vlaneseq
        %v3302 = vshrl.u32 %v3301, 7
        %v3303 = vsub.s32 1, %v3302
        %v3304 = vrot.slane %v3276, %v3303
        %v3307 = vmul.f32 %v3280, %v3300
        %v3308 = vmul.f32 %v3281, %v3304
        %v3309 = vmul.f32 %v3282, %v3300
        %v3310 = vmul.f32 %v3283, %v3304
        %v3311 = vmul.f32 %v3284, %v3300
        %v3312 = vmul.f32 %v3285, %v3304
        %v3313 = vmul.f32 %v3286, %v3300
        %v3314 = vmul.f32 %v3287, %v3304
        %v3315 = vmul.f32 %v3288, %v3300
        %v3316 = vmul.f32 %v3289, %v3304
        %v3317 = vmul.f32 %v3290, %v3300
        %v3318 = vmul.f32 %v3291, %v3304
        %v3319 = vmul.f32 %v3292, %v3300
        %v3320 = vmul.f32 %v3293, %v3304
        %v3321 = vmul.f32 %v3294, %v3300
        %v3322 = vmul.f32 %v3295, %v3304
        %v3323 = vadd.f32 %v3259, %v3307
        %v3324 = vadd.f32 %v3260, %v3308
        %v3325 = vadd.f32 %v3261, %v3309
        %v3326 = vadd.f32 %v3262, %v3310
        %v3327 = vadd.f32 %v3263, %v3311
        %v3328 = vadd.f32 %v3264, %v3312
        %v3329 = vadd.f32 %v3265, %v3313
        %v3330 = vadd.f32 %v3266, %v3314
        %v3331 = vadd.f32 %v3267, %v3315
        %v3332 = vadd.f32 %v3268, %v3316
        %v3333 = vadd.f32 %v3269, %v3317
        %v3334 = vadd.f32 %v3270, %v3318
        %v3335 = vadd.f32 %v3271, %v3319
        %v3336 = vadd.f32 %v3272, %v3320
        %v3337 = vadd.f32 %v3273, %v3321
        %v3338 = vadd.f32 %v3274, %v3322
        %s3339 = scalar_lea.vmem %s1, 38
        %v3340 = vld [vmem:[%s3339] ss:$8 sm:$0x3]
        %v3341 = vld [vmem:[%s3279] sm:$0xfe]
        %v3342 = vld [vmem:[%s3279 + $0x8] sm:$0xfe]
        %v3343 = vld [vmem:[%s3279 + $0x10] sm:$0x1]
        %v3344 = vld [vmem:[%s3279 + $0x18] sm:$0x1]
        %v3345 = vld [vmem:[%s3279 + $0x20] sm:$0xfe]
        %v3346 = vld [vmem:[%s3279 + $0x28] sm:$0xfe]
        %v3347 = vld [vmem:[%s3279 + $0x30] sm:$0x1]
        %v3348 = vld [vmem:[%s3279 + $0x38] sm:$0x1]
        %v3349 = vld [vmem:[%s3279 + $0x40] sm:$0xfe]
        %v3350 = vld [vmem:[%s3279 + $0x48] sm:$0xfe]
        %v3351 = vld [vmem:[%s3279 + $0x50] sm:$0x1]
        %v3352 = vld [vmem:[%s3279 + $0x58] sm:$0x1]
        %v3353 = vld [vmem:[%s3279 + $0x60] sm:$0xfe]
        %v3354 = vld [vmem:[%s3279 + $0x68] sm:$0xfe]
        %v3355 = vld [vmem:[%s3279 + $0x70] sm:$0x1]
        %v3356 = vld [vmem:[%s3279 + $0x78] sm:$0x1]
        %v3357 = vld [vmem:[%s3279 + $0x80] sm:$0xfe]
        %v3358 = vld [vmem:[%s3279 + $0x88] sm:$0xfe]
        %v3359 = vld [vmem:[%s3279 + $0x90] sm:$0x1]
        %v3360 = vld [vmem:[%s3279 + $0x98] sm:$0x1]
        %v3361 = vld [vmem:[%s3279 + $0xa0] sm:$0xfe]
        %v3362 = vld [vmem:[%s3279 + $0xa8] sm:$0xfe]
        %v3363 = vld [vmem:[%s3279 + $0xb0] sm:$0x1]
        %v3364 = vld [vmem:[%s3279 + $0xb8] sm:$0x1]
        %v3365 = vld [vmem:[%s3279 + $0xc0] sm:$0xfe]
        %v3366 = vld [vmem:[%s3279 + $0xc8] sm:$0xfe]
        %v3367 = vld [vmem:[%s3279 + $0xd0] sm:$0x1]
        %v3368 = vld [vmem:[%s3279 + $0xd8] sm:$0x1]
        %v3369 = vld [vmem:[%s3279 + $0xe0] sm:$0xfe]
        %v3370 = vld [vmem:[%s3279 + $0xe8] sm:$0xfe]
        %v3371 = vld [vmem:[%s3279 + $0xf0] sm:$0x1]
        %v3372 = vld [vmem:[%s3279 + $0xf8] sm:$0x1]
        %v3374 = vlaneseq
        %v3375 = vshrl.u32 %v3374, 7
        %v3376 = vsub.s32 0, %v3375
        %v3377 = vrot.slane %v3340, %v3376
        %v3378 = vlaneseq
        %v3379 = vshrl.u32 %v3378, 7
        %v3380 = vsub.s32 1, %v3379
        %v3381 = vrot.slane %v3340, %v3380
        %v3384 = vmul.f32 %v3341, %v3377
        %v3385 = vmul.f32 %v3342, %v3381
        %v3386 = vmul.f32 %v3343, %v3377
        %v3387 = vmul.f32 %v3344, %v3381
        %v3388 = vmul.f32 %v3345, %v3377
        %v3389 = vmul.f32 %v3346, %v3381
        %v3390 = vmul.f32 %v3347, %v3377
        %v3391 = vmul.f32 %v3348, %v3381
        %v3392 = vmul.f32 %v3349, %v3377
        %v3393 = vmul.f32 %v3350, %v3381
        %v3394 = vmul.f32 %v3351, %v3377
        %v3395 = vmul.f32 %v3352, %v3381
        %v3396 = vmul.f32 %v3353, %v3377
        %v3397 = vmul.f32 %v3354, %v3381
        %v3398 = vmul.f32 %v3355, %v3377
        %v3399 = vmul.f32 %v3356, %v3381
        %v3400 = vmul.f32 %v3357, %v3377
        %v3401 = vmul.f32 %v3358, %v3381
        %v3402 = vmul.f32 %v3359, %v3377
        %v3403 = vmul.f32 %v3360, %v3381
        %v3404 = vmul.f32 %v3361, %v3377
        %v3405 = vmul.f32 %v3362, %v3381
        %v3406 = vmul.f32 %v3363, %v3377
        %v3407 = vmul.f32 %v3364, %v3381
        %v3408 = vmul.f32 %v3365, %v3377
        %v3409 = vmul.f32 %v3366, %v3381
        %v3410 = vmul.f32 %v3367, %v3377
        %v3411 = vmul.f32 %v3368, %v3381
        %v3412 = vmul.f32 %v3369, %v3377
        %v3413 = vmul.f32 %v3370, %v3381
        %v3414 = vmul.f32 %v3371, %v3377
        %v3415 = vmul.f32 %v3372, %v3381
        %v3448 = vrot.slane %v3384, 1
        %v3449 = vrot.slane %v3386, 1
        %v3450 = vsel %vm350, %v3448, %v3449
        %v3451 = vrot.slane %v3385, 1
        %v3452 = vrot.slane %v3387, 1
        %v3453 = vsel %vm350, %v3451, %v3452
        %v3454 = vrot.slane %v3388, 1
        %v3455 = vrot.slane %v3390, 1
        %v3456 = vsel %vm350, %v3454, %v3455
        %v3457 = vrot.slane %v3389, 1
        %v3458 = vrot.slane %v3391, 1
        %v3459 = vsel %vm350, %v3457, %v3458
        %v3460 = vrot.slane %v3392, 1
        %v3461 = vrot.slane %v3394, 1
        %v3462 = vsel %vm350, %v3460, %v3461
        %v3463 = vrot.slane %v3393, 1
        %v3464 = vrot.slane %v3395, 1
        %v3465 = vsel %vm350, %v3463, %v3464
        %v3466 = vrot.slane %v3396, 1
        %v3467 = vrot.slane %v3398, 1
        %v3468 = vsel %vm350, %v3466, %v3467
        %v3469 = vrot.slane %v3397, 1
        %v3470 = vrot.slane %v3399, 1
        %v3471 = vsel %vm350, %v3469, %v3470
        %v3472 = vrot.slane %v3400, 1
        %v3473 = vrot.slane %v3402, 1
        %v3474 = vsel %vm350, %v3472, %v3473
        %v3475 = vrot.slane %v3401, 1
        %v3476 = vrot.slane %v3403, 1
        %v3477 = vsel %vm350, %v3475, %v3476
        %v3478 = vrot.slane %v3404, 1
        %v3479 = vrot.slane %v3406, 1
        %v3480 = vsel %vm350, %v3478, %v3479
        %v3481 = vrot.slane %v3405, 1
        %v3482 = vrot.slane %v3407, 1
        %v3483 = vsel %vm350, %v3481, %v3482
        %v3484 = vrot.slane %v3408, 1
        %v3485 = vrot.slane %v3410, 1
        %v3486 = vsel %vm350, %v3484, %v3485
        %v3487 = vrot.slane %v3409, 1
        %v3488 = vrot.slane %v3411, 1
        %v3489 = vsel %vm350, %v3487, %v3488
        %v3490 = vrot.slane %v3412, 1
        %v3491 = vrot.slane %v3414, 1
        %v3492 = vsel %vm350, %v3490, %v3491
        %v3493 = vrot.slane %v3413, 1
        %v3494 = vrot.slane %v3415, 1
        %v3495 = vsel %vm350, %v3493, %v3494
        %v3512 = vadd.f32 %v3323, %v3450
        %v3513 = vadd.f32 %v3324, %v3453
        %v3514 = vadd.f32 %v3325, %v3456
        %v3515 = vadd.f32 %v3326, %v3459
        %v3516 = vadd.f32 %v3327, %v3462
        %v3517 = vadd.f32 %v3328, %v3465
        %v3518 = vadd.f32 %v3329, %v3468
        %v3519 = vadd.f32 %v3330, %v3471
        %v3520 = vadd.f32 %v3331, %v3474
        %v3521 = vadd.f32 %v3332, %v3477
        %v3522 = vadd.f32 %v3333, %v3480
        %v3523 = vadd.f32 %v3334, %v3483
        %v3524 = vadd.f32 %v3335, %v3486
        %v3525 = vadd.f32 %v3336, %v3489
        %v3526 = vadd.f32 %v3337, %v3492
        %v3527 = vadd.f32 %v3338, %v3495
        %s3528 = scalar_lea.vmem %s1, 39
        %v3529 = vld [vmem:[%s3528] ss:$8 sm:$0x3]
        %v3530 = vld [vmem:[%s3279] sm:$0xfc]
        %v3531 = vld [vmem:[%s3279 + $0x8] sm:$0xfc]
        %v3532 = vld [vmem:[%s3279 + $0x10] sm:$0x3]
        %v3533 = vld [vmem:[%s3279 + $0x18] sm:$0x3]
        %v3534 = vld [vmem:[%s3279 + $0x20] sm:$0xfc]
        %v3535 = vld [vmem:[%s3279 + $0x28] sm:$0xfc]
        %v3536 = vld [vmem:[%s3279 + $0x30] sm:$0x3]
        %v3537 = vld [vmem:[%s3279 + $0x38] sm:$0x3]
        %v3538 = vld [vmem:[%s3279 + $0x40] sm:$0xfc]
        %v3539 = vld [vmem:[%s3279 + $0x48] sm:$0xfc]
        %v3540 = vld [vmem:[%s3279 + $0x50] sm:$0x3]
        %v3541 = vld [vmem:[%s3279 + $0x58] sm:$0x3]
        %v3542 = vld [vmem:[%s3279 + $0x60] sm:$0xfc]
        %v3543 = vld [vmem:[%s3279 + $0x68] sm:$0xfc]
        %v3544 = vld [vmem:[%s3279 + $0x70] sm:$0x3]
        %v3545 = vld [vmem:[%s3279 + $0x78] sm:$0x3]
        %v3546 = vld [vmem:[%s3279 + $0x80] sm:$0xfc]
        %v3547 = vld [vmem:[%s3279 + $0x88] sm:$0xfc]
        %v3548 = vld [vmem:[%s3279 + $0x90] sm:$0x3]
        %v3549 = vld [vmem:[%s3279 + $0x98] sm:$0x3]
        %v3550 = vld [vmem:[%s3279 + $0xa0] sm:$0xfc]
        %v3551 = vld [vmem:[%s3279 + $0xa8] sm:$0xfc]
        %v3552 = vld [vmem:[%s3279 + $0xb0] sm:$0x3]
        %v3553 = vld [vmem:[%s3279 + $0xb8] sm:$0x3]
        %v3554 = vld [vmem:[%s3279 + $0xc0] sm:$0xfc]
        %v3555 = vld [vmem:[%s3279 + $0xc8] sm:$0xfc]
        %v3556 = vld [vmem:[%s3279 + $0xd0] sm:$0x3]
        %v3557 = vld [vmem:[%s3279 + $0xd8] sm:$0x3]
        %v3558 = vld [vmem:[%s3279 + $0xe0] sm:$0xfc]
        %v3559 = vld [vmem:[%s3279 + $0xe8] sm:$0xfc]
        %v3560 = vld [vmem:[%s3279 + $0xf0] sm:$0x3]
        %v3561 = vld [vmem:[%s3279 + $0xf8] sm:$0x3]
        %v3563 = vlaneseq
        %v3564 = vshrl.u32 %v3563, 7
        %v3565 = vsub.s32 0, %v3564
        %v3566 = vrot.slane %v3529, %v3565
        %v3567 = vlaneseq
        %v3568 = vshrl.u32 %v3567, 7
        %v3569 = vsub.s32 1, %v3568
        %v3570 = vrot.slane %v3529, %v3569
        %v3573 = vmul.f32 %v3530, %v3566
        %v3574 = vmul.f32 %v3531, %v3570
        %v3575 = vmul.f32 %v3532, %v3566
        %v3576 = vmul.f32 %v3533, %v3570
        %v3577 = vmul.f32 %v3534, %v3566
        %v3578 = vmul.f32 %v3535, %v3570
        %v3579 = vmul.f32 %v3536, %v3566
        %v3580 = vmul.f32 %v3537, %v3570
        %v3581 = vmul.f32 %v3538, %v3566
        %v3582 = vmul.f32 %v3539, %v3570
        %v3583 = vmul.f32 %v3540, %v3566
        %v3584 = vmul.f32 %v3541, %v3570
        %v3585 = vmul.f32 %v3542, %v3566
        %v3586 = vmul.f32 %v3543, %v3570
        %v3587 = vmul.f32 %v3544, %v3566
        %v3588 = vmul.f32 %v3545, %v3570
        %v3589 = vmul.f32 %v3546, %v3566
        %v3590 = vmul.f32 %v3547, %v3570
        %v3591 = vmul.f32 %v3548, %v3566
        %v3592 = vmul.f32 %v3549, %v3570
        %v3593 = vmul.f32 %v3550, %v3566
        %v3594 = vmul.f32 %v3551, %v3570
        %v3595 = vmul.f32 %v3552, %v3566
        %v3596 = vmul.f32 %v3553, %v3570
        %v3597 = vmul.f32 %v3554, %v3566
        %v3598 = vmul.f32 %v3555, %v3570
        %v3599 = vmul.f32 %v3556, %v3566
        %v3600 = vmul.f32 %v3557, %v3570
        %v3601 = vmul.f32 %v3558, %v3566
        %v3602 = vmul.f32 %v3559, %v3570
        %v3603 = vmul.f32 %v3560, %v3566
        %v3604 = vmul.f32 %v3561, %v3570
        %v3637 = vrot.slane %v3573, 2
        %v3638 = vrot.slane %v3575, 2
        %v3639 = vsel %vm540, %v3637, %v3638
        %v3640 = vrot.slane %v3574, 2
        %v3641 = vrot.slane %v3576, 2
        %v3642 = vsel %vm540, %v3640, %v3641
        %v3643 = vrot.slane %v3577, 2
        %v3644 = vrot.slane %v3579, 2
        %v3645 = vsel %vm540, %v3643, %v3644
        %v3646 = vrot.slane %v3578, 2
        %v3647 = vrot.slane %v3580, 2
        %v3648 = vsel %vm540, %v3646, %v3647
        %v3649 = vrot.slane %v3581, 2
        %v3650 = vrot.slane %v3583, 2
        %v3651 = vsel %vm540, %v3649, %v3650
        %v3652 = vrot.slane %v3582, 2
        %v3653 = vrot.slane %v3584, 2
        %v3654 = vsel %vm540, %v3652, %v3653
        %v3655 = vrot.slane %v3585, 2
        %v3656 = vrot.slane %v3587, 2
        %v3657 = vsel %vm540, %v3655, %v3656
        %v3658 = vrot.slane %v3586, 2
        %v3659 = vrot.slane %v3588, 2
        %v3660 = vsel %vm540, %v3658, %v3659
        %v3661 = vrot.slane %v3589, 2
        %v3662 = vrot.slane %v3591, 2
        %v3663 = vsel %vm540, %v3661, %v3662
        %v3664 = vrot.slane %v3590, 2
        %v3665 = vrot.slane %v3592, 2
        %v3666 = vsel %vm540, %v3664, %v3665
        %v3667 = vrot.slane %v3593, 2
        %v3668 = vrot.slane %v3595, 2
        %v3669 = vsel %vm540, %v3667, %v3668
        %v3670 = vrot.slane %v3594, 2
        %v3671 = vrot.slane %v3596, 2
        %v3672 = vsel %vm540, %v3670, %v3671
        %v3673 = vrot.slane %v3597, 2
        %v3674 = vrot.slane %v3599, 2
        %v3675 = vsel %vm540, %v3673, %v3674
        %v3676 = vrot.slane %v3598, 2
        %v3677 = vrot.slane %v3600, 2
        %v3678 = vsel %vm540, %v3676, %v3677
        %v3679 = vrot.slane %v3601, 2
        %v3680 = vrot.slane %v3603, 2
        %v3681 = vsel %vm540, %v3679, %v3680
        %v3682 = vrot.slane %v3602, 2
        %v3683 = vrot.slane %v3604, 2
        %v3684 = vsel %vm540, %v3682, %v3683
        %v3701 = vadd.f32 %v3512, %v3639
        %v3702 = vadd.f32 %v3513, %v3642
        %v3703 = vadd.f32 %v3514, %v3645
        %v3704 = vadd.f32 %v3515, %v3648
        %v3705 = vadd.f32 %v3516, %v3651
        %v3706 = vadd.f32 %v3517, %v3654
        %v3707 = vadd.f32 %v3518, %v3657
        %v3708 = vadd.f32 %v3519, %v3660
        %v3709 = vadd.f32 %v3520, %v3663
        %v3710 = vadd.f32 %v3521, %v3666
        %v3711 = vadd.f32 %v3522, %v3669
        %v3712 = vadd.f32 %v3523, %v3672
        %v3713 = vadd.f32 %v3524, %v3675
        %v3714 = vadd.f32 %v3525, %v3678
        %v3715 = vadd.f32 %v3526, %v3681
        %v3716 = vadd.f32 %v3527, %v3684
        %s3717 = scalar_lea.vmem %s1, 48
        %v3718 = vld [vmem:[%s3717] ss:$8 sm:$0x3]
        %s3719 = sadd.s32 8, %s2835
        %s3720 = smul.addr %s3719, 8
        %s3721 = scalar_lea.vmem %s165, %s3720
        %v3722 = vld [vmem:[%s3721] sm:$0xff]
        %v3723 = vld [vmem:[%s3721 + $0x8] sm:$0xff]
        %v3724 = vld [vmem:[%s3721 + $0x20] sm:$0xff]
        %v3725 = vld [vmem:[%s3721 + $0x28] sm:$0xff]
        %v3726 = vld [vmem:[%s3721 + $0x40] sm:$0xff]
        %v3727 = vld [vmem:[%s3721 + $0x48] sm:$0xff]
        %v3728 = vld [vmem:[%s3721 + $0x60] sm:$0xff]
        %v3729 = vld [vmem:[%s3721 + $0x68] sm:$0xff]
        %v3730 = vld [vmem:[%s3721 + $0x80] sm:$0xff]
        %v3731 = vld [vmem:[%s3721 + $0x88] sm:$0xff]
        %v3732 = vld [vmem:[%s3721 + $0xa0] sm:$0xff]
        %v3733 = vld [vmem:[%s3721 + $0xa8] sm:$0xff]
        %v3734 = vld [vmem:[%s3721 + $0xc0] sm:$0xff]
        %v3735 = vld [vmem:[%s3721 + $0xc8] sm:$0xff]
        %v3736 = vld [vmem:[%s3721 + $0xe0] sm:$0xff]
        %v3737 = vld [vmem:[%s3721 + $0xe8] sm:$0xff]
        %v3739 = vlaneseq
        %v3740 = vshrl.u32 %v3739, 7
        %v3741 = vsub.s32 0, %v3740
        %v3742 = vrot.slane %v3718, %v3741
        %v3743 = vlaneseq
        %v3744 = vshrl.u32 %v3743, 7
        %v3745 = vsub.s32 1, %v3744
        %v3746 = vrot.slane %v3718, %v3745
        %v3749 = vmul.f32 %v3722, %v3742
        %v3750 = vmul.f32 %v3723, %v3746
        %v3751 = vmul.f32 %v3724, %v3742
        %v3752 = vmul.f32 %v3725, %v3746
        %v3753 = vmul.f32 %v3726, %v3742
        %v3754 = vmul.f32 %v3727, %v3746
        %v3755 = vmul.f32 %v3728, %v3742
        %v3756 = vmul.f32 %v3729, %v3746
        %v3757 = vmul.f32 %v3730, %v3742
        %v3758 = vmul.f32 %v3731, %v3746
        %v3759 = vmul.f32 %v3732, %v3742
        %v3760 = vmul.f32 %v3733, %v3746
        %v3761 = vmul.f32 %v3734, %v3742
        %v3762 = vmul.f32 %v3735, %v3746
        %v3763 = vmul.f32 %v3736, %v3742
        %v3764 = vmul.f32 %v3737, %v3746
        %v3765 = vadd.f32 %v3701, %v3749
        %v3766 = vadd.f32 %v3702, %v3750
        %v3767 = vadd.f32 %v3703, %v3751
        %v3768 = vadd.f32 %v3704, %v3752
        %v3769 = vadd.f32 %v3705, %v3753
        %v3770 = vadd.f32 %v3706, %v3754
        %v3771 = vadd.f32 %v3707, %v3755
        %v3772 = vadd.f32 %v3708, %v3756
        %v3773 = vadd.f32 %v3709, %v3757
        %v3774 = vadd.f32 %v3710, %v3758
        %v3775 = vadd.f32 %v3711, %v3759
        %v3776 = vadd.f32 %v3712, %v3760
        %v3777 = vadd.f32 %v3713, %v3761
        %v3778 = vadd.f32 %v3714, %v3762
        %v3779 = vadd.f32 %v3715, %v3763
        %v3780 = vadd.f32 %v3716, %v3764
        %s3781 = scalar_lea.vmem %s1, 49
        %v3782 = vld [vmem:[%s3781] ss:$8 sm:$0x3]
        %v3783 = vld [vmem:[%s3721] sm:$0xfe]
        %v3784 = vld [vmem:[%s3721 + $0x8] sm:$0xfe]
        %v3785 = vld [vmem:[%s3721 + $0x10] sm:$0x1]
        %v3786 = vld [vmem:[%s3721 + $0x18] sm:$0x1]
        %v3787 = vld [vmem:[%s3721 + $0x20] sm:$0xfe]
        %v3788 = vld [vmem:[%s3721 + $0x28] sm:$0xfe]
        %v3789 = vld [vmem:[%s3721 + $0x30] sm:$0x1]
        %v3790 = vld [vmem:[%s3721 + $0x38] sm:$0x1]
        %v3791 = vld [vmem:[%s3721 + $0x40] sm:$0xfe]
        %v3792 = vld [vmem:[%s3721 + $0x48] sm:$0xfe]
        %v3793 = vld [vmem:[%s3721 + $0x50] sm:$0x1]
        %v3794 = vld [vmem:[%s3721 + $0x58] sm:$0x1]
        %v3795 = vld [vmem:[%s3721 + $0x60] sm:$0xfe]
        %v3796 = vld [vmem:[%s3721 + $0x68] sm:$0xfe]
        %v3797 = vld [vmem:[%s3721 + $0x70] sm:$0x1]
        %v3798 = vld [vmem:[%s3721 + $0x78] sm:$0x1]
        %v3799 = vld [vmem:[%s3721 + $0x80] sm:$0xfe]
        %v3800 = vld [vmem:[%s3721 + $0x88] sm:$0xfe]
        %v3801 = vld [vmem:[%s3721 + $0x90] sm:$0x1]
        %v3802 = vld [vmem:[%s3721 + $0x98] sm:$0x1]
        %v3803 = vld [vmem:[%s3721 + $0xa0] sm:$0xfe]
        %v3804 = vld [vmem:[%s3721 + $0xa8] sm:$0xfe]
        %v3805 = vld [vmem:[%s3721 + $0xb0] sm:$0x1]
        %v3806 = vld [vmem:[%s3721 + $0xb8] sm:$0x1]
        %v3807 = vld [vmem:[%s3721 + $0xc0] sm:$0xfe]
        %v3808 = vld [vmem:[%s3721 + $0xc8] sm:$0xfe]
        %v3809 = vld [vmem:[%s3721 + $0xd0] sm:$0x1]
        %v3810 = vld [vmem:[%s3721 + $0xd8] sm:$0x1]
        %v3811 = vld [vmem:[%s3721 + $0xe0] sm:$0xfe]
        %v3812 = vld [vmem:[%s3721 + $0xe8] sm:$0xfe]
        %v3813 = vld [vmem:[%s3721 + $0xf0] sm:$0x1]
        %v3814 = vld [vmem:[%s3721 + $0xf8] sm:$0x1]
        %v3816 = vlaneseq
        %v3817 = vshrl.u32 %v3816, 7
        %v3818 = vsub.s32 0, %v3817
        %v3819 = vrot.slane %v3782, %v3818
        %v3820 = vlaneseq
        %v3821 = vshrl.u32 %v3820, 7
        %v3822 = vsub.s32 1, %v3821
        %v3823 = vrot.slane %v3782, %v3822
        %v3826 = vmul.f32 %v3783, %v3819
        %v3827 = vmul.f32 %v3784, %v3823
        %v3828 = vmul.f32 %v3785, %v3819
        %v3829 = vmul.f32 %v3786, %v3823
        %v3830 = vmul.f32 %v3787, %v3819
        %v3831 = vmul.f32 %v3788, %v3823
        %v3832 = vmul.f32 %v3789, %v3819
        %v3833 = vmul.f32 %v3790, %v3823
        %v3834 = vmul.f32 %v3791, %v3819
        %v3835 = vmul.f32 %v3792, %v3823
        %v3836 = vmul.f32 %v3793, %v3819
        %v3837 = vmul.f32 %v3794, %v3823
        %v3838 = vmul.f32 %v3795, %v3819
        %v3839 = vmul.f32 %v3796, %v3823
        %v3840 = vmul.f32 %v3797, %v3819
        %v3841 = vmul.f32 %v3798, %v3823
        %v3842 = vmul.f32 %v3799, %v3819
        %v3843 = vmul.f32 %v3800, %v3823
        %v3844 = vmul.f32 %v3801, %v3819
        %v3845 = vmul.f32 %v3802, %v3823
        %v3846 = vmul.f32 %v3803, %v3819
        %v3847 = vmul.f32 %v3804, %v3823
        %v3848 = vmul.f32 %v3805, %v3819
        %v3849 = vmul.f32 %v3806, %v3823
        %v3850 = vmul.f32 %v3807, %v3819
        %v3851 = vmul.f32 %v3808, %v3823
        %v3852 = vmul.f32 %v3809, %v3819
        %v3853 = vmul.f32 %v3810, %v3823
        %v3854 = vmul.f32 %v3811, %v3819
        %v3855 = vmul.f32 %v3812, %v3823
        %v3856 = vmul.f32 %v3813, %v3819
        %v3857 = vmul.f32 %v3814, %v3823
        %v3890 = vrot.slane %v3826, 1
        %v3891 = vrot.slane %v3828, 1
        %v3892 = vsel %vm350, %v3890, %v3891
        %v3893 = vrot.slane %v3827, 1
        %v3894 = vrot.slane %v3829, 1
        %v3895 = vsel %vm350, %v3893, %v3894
        %v3896 = vrot.slane %v3830, 1
        %v3897 = vrot.slane %v3832, 1
        %v3898 = vsel %vm350, %v3896, %v3897
        %v3899 = vrot.slane %v3831, 1
        %v3900 = vrot.slane %v3833, 1
        %v3901 = vsel %vm350, %v3899, %v3900
        %v3902 = vrot.slane %v3834, 1
        %v3903 = vrot.slane %v3836, 1
        %v3904 = vsel %vm350, %v3902, %v3903
        %v3905 = vrot.slane %v3835, 1
        %v3906 = vrot.slane %v3837, 1
        %v3907 = vsel %vm350, %v3905, %v3906
        %v3908 = vrot.slane %v3838, 1
        %v3909 = vrot.slane %v3840, 1
        %v3910 = vsel %vm350, %v3908, %v3909
        %v3911 = vrot.slane %v3839, 1
        %v3912 = vrot.slane %v3841, 1
        %v3913 = vsel %vm350, %v3911, %v3912
        %v3914 = vrot.slane %v3842, 1
        %v3915 = vrot.slane %v3844, 1
        %v3916 = vsel %vm350, %v3914, %v3915
        %v3917 = vrot.slane %v3843, 1
        %v3918 = vrot.slane %v3845, 1
        %v3919 = vsel %vm350, %v3917, %v3918
        %v3920 = vrot.slane %v3846, 1
        %v3921 = vrot.slane %v3848, 1
        %v3922 = vsel %vm350, %v3920, %v3921
        %v3923 = vrot.slane %v3847, 1
        %v3924 = vrot.slane %v3849, 1
        %v3925 = vsel %vm350, %v3923, %v3924
        %v3926 = vrot.slane %v3850, 1
        %v3927 = vrot.slane %v3852, 1
        %v3928 = vsel %vm350, %v3926, %v3927
        %v3929 = vrot.slane %v3851, 1
        %v3930 = vrot.slane %v3853, 1
        %v3931 = vsel %vm350, %v3929, %v3930
        %v3932 = vrot.slane %v3854, 1
        %v3933 = vrot.slane %v3856, 1
        %v3934 = vsel %vm350, %v3932, %v3933
        %v3935 = vrot.slane %v3855, 1
        %v3936 = vrot.slane %v3857, 1
        %v3937 = vsel %vm350, %v3935, %v3936
        %v3954 = vadd.f32 %v3765, %v3892
        %v3955 = vadd.f32 %v3766, %v3895
        %v3956 = vadd.f32 %v3767, %v3898
        %v3957 = vadd.f32 %v3768, %v3901
        %v3958 = vadd.f32 %v3769, %v3904
        %v3959 = vadd.f32 %v3770, %v3907
        %v3960 = vadd.f32 %v3771, %v3910
        %v3961 = vadd.f32 %v3772, %v3913
        %v3962 = vadd.f32 %v3773, %v3916
        %v3963 = vadd.f32 %v3774, %v3919
        %v3964 = vadd.f32 %v3775, %v3922
        %v3965 = vadd.f32 %v3776, %v3925
        %v3966 = vadd.f32 %v3777, %v3928
        %v3967 = vadd.f32 %v3778, %v3931
        %v3968 = vadd.f32 %v3779, %v3934
        %v3969 = vadd.f32 %v3780, %v3937
        %s3970 = scalar_lea.vmem %s1, 50
        %v3971 = vld [vmem:[%s3970] ss:$8 sm:$0x3]
        %v3972 = vld [vmem:[%s3721] sm:$0xfc]
        %v3973 = vld [vmem:[%s3721 + $0x8] sm:$0xfc]
        %v3974 = vld [vmem:[%s3721 + $0x10] sm:$0x3]
        %v3975 = vld [vmem:[%s3721 + $0x18] sm:$0x3]
        %v3976 = vld [vmem:[%s3721 + $0x20] sm:$0xfc]
        %v3977 = vld [vmem:[%s3721 + $0x28] sm:$0xfc]
        %v3978 = vld [vmem:[%s3721 + $0x30] sm:$0x3]
        %v3979 = vld [vmem:[%s3721 + $0x38] sm:$0x3]
        %v3980 = vld [vmem:[%s3721 + $0x40] sm:$0xfc]
        %v3981 = vld [vmem:[%s3721 + $0x48] sm:$0xfc]
        %v3982 = vld [vmem:[%s3721 + $0x50] sm:$0x3]
        %v3983 = vld [vmem:[%s3721 + $0x58] sm:$0x3]
        %v3984 = vld [vmem:[%s3721 + $0x60] sm:$0xfc]
        %v3985 = vld [vmem:[%s3721 + $0x68] sm:$0xfc]
        %v3986 = vld [vmem:[%s3721 + $0x70] sm:$0x3]
        %v3987 = vld [vmem:[%s3721 + $0x78] sm:$0x3]
        %v3988 = vld [vmem:[%s3721 + $0x80] sm:$0xfc]
        %v3989 = vld [vmem:[%s3721 + $0x88] sm:$0xfc]
        %v3990 = vld [vmem:[%s3721 + $0x90] sm:$0x3]
        %v3991 = vld [vmem:[%s3721 + $0x98] sm:$0x3]
        %v3992 = vld [vmem:[%s3721 + $0xa0] sm:$0xfc]
        %v3993 = vld [vmem:[%s3721 + $0xa8] sm:$0xfc]
        %v3994 = vld [vmem:[%s3721 + $0xb0] sm:$0x3]
        %v3995 = vld [vmem:[%s3721 + $0xb8] sm:$0x3]
        %v3996 = vld [vmem:[%s3721 + $0xc0] sm:$0xfc]
        %v3997 = vld [vmem:[%s3721 + $0xc8] sm:$0xfc]
        %v3998 = vld [vmem:[%s3721 + $0xd0] sm:$0x3]
        %v3999 = vld [vmem:[%s3721 + $0xd8] sm:$0x3]
        %v4000 = vld [vmem:[%s3721 + $0xe0] sm:$0xfc]
        %v4001 = vld [vmem:[%s3721 + $0xe8] sm:$0xfc]
        %v4002 = vld [vmem:[%s3721 + $0xf0] sm:$0x3]
        %v4003 = vld [vmem:[%s3721 + $0xf8] sm:$0x3]
        %v4005 = vlaneseq
        %v4006 = vshrl.u32 %v4005, 7
        %v4007 = vsub.s32 0, %v4006
        %v4008 = vrot.slane %v3971, %v4007
        %v4009 = vlaneseq
        %v4010 = vshrl.u32 %v4009, 7
        %v4011 = vsub.s32 1, %v4010
        %v4012 = vrot.slane %v3971, %v4011
        %v4015 = vmul.f32 %v3972, %v4008
        %v4016 = vmul.f32 %v3973, %v4012
        %v4017 = vmul.f32 %v3974, %v4008
        %v4018 = vmul.f32 %v3975, %v4012
        %v4019 = vmul.f32 %v3976, %v4008
        %v4020 = vmul.f32 %v3977, %v4012
        %v4021 = vmul.f32 %v3978, %v4008
        %v4022 = vmul.f32 %v3979, %v4012
        %v4023 = vmul.f32 %v3980, %v4008
        %v4024 = vmul.f32 %v3981, %v4012
        %v4025 = vmul.f32 %v3982, %v4008
        %v4026 = vmul.f32 %v3983, %v4012
        %v4027 = vmul.f32 %v3984, %v4008
        %v4028 = vmul.f32 %v3985, %v4012
        %v4029 = vmul.f32 %v3986, %v4008
        %v4030 = vmul.f32 %v3987, %v4012
        %v4031 = vmul.f32 %v3988, %v4008
        %v4032 = vmul.f32 %v3989, %v4012
        %v4033 = vmul.f32 %v3990, %v4008
        %v4034 = vmul.f32 %v3991, %v4012
        %v4035 = vmul.f32 %v3992, %v4008
        %v4036 = vmul.f32 %v3993, %v4012
        %v4037 = vmul.f32 %v3994, %v4008
        %v4038 = vmul.f32 %v3995, %v4012
        %v4039 = vmul.f32 %v3996, %v4008
        %v4040 = vmul.f32 %v3997, %v4012
        %v4041 = vmul.f32 %v3998, %v4008
        %v4042 = vmul.f32 %v3999, %v4012
        %v4043 = vmul.f32 %v4000, %v4008
        %v4044 = vmul.f32 %v4001, %v4012
        %v4045 = vmul.f32 %v4002, %v4008
        %v4046 = vmul.f32 %v4003, %v4012
        %v4079 = vrot.slane %v4015, 2
        %v4080 = vrot.slane %v4017, 2
        %v4081 = vsel %vm540, %v4079, %v4080
        %v4082 = vrot.slane %v4016, 2
        %v4083 = vrot.slane %v4018, 2
        %v4084 = vsel %vm540, %v4082, %v4083
        %v4085 = vrot.slane %v4019, 2
        %v4086 = vrot.slane %v4021, 2
        %v4087 = vsel %vm540, %v4085, %v4086
        %v4088 = vrot.slane %v4020, 2
        %v4089 = vrot.slane %v4022, 2
        %v4090 = vsel %vm540, %v4088, %v4089
        %v4091 = vrot.slane %v4023, 2
        %v4092 = vrot.slane %v4025, 2
        %v4093 = vsel %vm540, %v4091, %v4092
        %v4094 = vrot.slane %v4024, 2
        %v4095 = vrot.slane %v4026, 2
        %v4096 = vsel %vm540, %v4094, %v4095
        %v4097 = vrot.slane %v4027, 2
        %v4098 = vrot.slane %v4029, 2
        %v4099 = vsel %vm540, %v4097, %v4098
        %v4100 = vrot.slane %v4028, 2
        %v4101 = vrot.slane %v4030, 2
        %v4102 = vsel %vm540, %v4100, %v4101
        %v4103 = vrot.slane %v4031, 2
        %v4104 = vrot.slane %v4033, 2
        %v4105 = vsel %vm540, %v4103, %v4104
        %v4106 = vrot.slane %v4032, 2
        %v4107 = vrot.slane %v4034, 2
        %v4108 = vsel %vm540, %v4106, %v4107
        %v4109 = vrot.slane %v4035, 2
        %v4110 = vrot.slane %v4037, 2
        %v4111 = vsel %vm540, %v4109, %v4110
        %v4112 = vrot.slane %v4036, 2
        %v4113 = vrot.slane %v4038, 2
        %v4114 = vsel %vm540, %v4112, %v4113
        %v4115 = vrot.slane %v4039, 2
        %v4116 = vrot.slane %v4041, 2
        %v4117 = vsel %vm540, %v4115, %v4116
        %v4118 = vrot.slane %v4040, 2
        %v4119 = vrot.slane %v4042, 2
        %v4120 = vsel %vm540, %v4118, %v4119
        %v4121 = vrot.slane %v4043, 2
        %v4122 = vrot.slane %v4045, 2
        %v4123 = vsel %vm540, %v4121, %v4122
        %v4124 = vrot.slane %v4044, 2
        %v4125 = vrot.slane %v4046, 2
        %v4126 = vsel %vm540, %v4124, %v4125
        %v4143 = vadd.f32 %v3954, %v4081
        %v4144 = vadd.f32 %v3955, %v4084
        %v4145 = vadd.f32 %v3956, %v4087
        %v4146 = vadd.f32 %v3957, %v4090
        %v4147 = vadd.f32 %v3958, %v4093
        %v4148 = vadd.f32 %v3959, %v4096
        %v4149 = vadd.f32 %v3960, %v4099
        %v4150 = vadd.f32 %v3961, %v4102
        %v4151 = vadd.f32 %v3962, %v4105
        %v4152 = vadd.f32 %v3963, %v4108
        %v4153 = vadd.f32 %v3964, %v4111
        %v4154 = vadd.f32 %v3965, %v4114
        %v4155 = vadd.f32 %v3966, %v4117
        %v4156 = vadd.f32 %v3967, %v4120
        %v4157 = vadd.f32 %v3968, %v4123
        %v4158 = vadd.f32 %v3969, %v4126
        %v4175 = vrot.slane %v4143, 7
        %v4176 = vrot.slane %v4144, 7
        %v4177 = vrot.slane %v4145, 7
        %v4178 = vrot.slane %v4146, 7
        %v4179 = vrot.slane %v4147, 7
        %v4180 = vrot.slane %v4148, 7
        %v4181 = vrot.slane %v4149, 7
        %v4182 = vrot.slane %v4150, 7
        %v4183 = vrot.slane %v4151, 7
        %v4184 = vrot.slane %v4152, 7
        %v4185 = vrot.slane %v4153, 7
        %v4186 = vrot.slane %v4154, 7
        %v4187 = vrot.slane %v4155, 7
        %v4188 = vrot.slane %v4156, 7
        %v4189 = vrot.slane %v4157, 7
        %v4190 = vrot.slane %v4158, 7
        %v4207 = vadd.f32 %v2014, %v4175
        %v4208 = vadd.f32 %v2015, %v4176
        %v4209 = vadd.f32 %v2016, %v4175
        %v4210 = vadd.f32 %v2017, %v4176
        %v4211 = vadd.f32 %v2018, %v4177
        %v4212 = vadd.f32 %v2019, %v4178
        %v4213 = vadd.f32 %v2020, %v4177
        %v4214 = vadd.f32 %v2021, %v4178
        %v4215 = vadd.f32 %v2022, %v4179
        %v4216 = vadd.f32 %v2023, %v4180
        %v4217 = vadd.f32 %v2024, %v4179
        %v4218 = vadd.f32 %v2025, %v4180
        %v4219 = vadd.f32 %v2026, %v4181
        %v4220 = vadd.f32 %v2027, %v4182
        %v4221 = vadd.f32 %v2028, %v4181
        %v4222 = vadd.f32 %v2029, %v4182
        %v4223 = vadd.f32 %v2030, %v4183
        %v4224 = vadd.f32 %v2031, %v4184
        %v4225 = vadd.f32 %v2032, %v4183
        %v4226 = vadd.f32 %v2033, %v4184
        %v4227 = vadd.f32 %v2034, %v4185
        %v4228 = vadd.f32 %v2035, %v4186
        %v4229 = vadd.f32 %v2036, %v4185
        %v4230 = vadd.f32 %v2037, %v4186
        %v4231 = vadd.f32 %v2038, %v4187
        %v4232 = vadd.f32 %v2039, %v4188
        %v4233 = vadd.f32 %v2040, %v4187
        %v4234 = vadd.f32 %v2041, %v4188
        %v4235 = vadd.f32 %v2042, %v4189
        %v4236 = vadd.f32 %v2043, %v4190
        %v4237 = vadd.f32 %v2044, %v4189
        %v4238 = vadd.f32 %v2045, %v4190
        %v4240 = vlaneseq
        %v4241 = vshrl.u32 %v4240, 7
        %v4242 = vsub.s32 0, %v4241
        %v4243 = vrot.slane %v171, %v4242
        %v4244 = vlaneseq
        %v4245 = vshrl.u32 %v4244, 7
        %v4246 = vsub.s32 1, %v4245
        %v4247 = vrot.slane %v171, %v4246
        %v4250 = vadd.f32 %v4207, %v4243
        %v4251 = vadd.f32 %v4208, %v4247
        %v4252 = vadd.f32 %v4209, %v4243
        %v4253 = vadd.f32 %v4210, %v4247
        %v4254 = vadd.f32 %v4211, %v4243
        %v4255 = vadd.f32 %v4212, %v4247
        %v4256 = vadd.f32 %v4213, %v4243
        %v4257 = vadd.f32 %v4214, %v4247
        %v4258 = vadd.f32 %v4215, %v4243
        %v4259 = vadd.f32 %v4216, %v4247
        %v4260 = vadd.f32 %v4217, %v4243
        %v4261 = vadd.f32 %v4218, %v4247
        %v4262 = vadd.f32 %v4219, %v4243
        %v4263 = vadd.f32 %v4220, %v4247
        %v4264 = vadd.f32 %v4221, %v4243
        %v4265 = vadd.f32 %v4222, %v4247
        %v4266 = vadd.f32 %v4223, %v4243
        %v4267 = vadd.f32 %v4224, %v4247
        %v4268 = vadd.f32 %v4225, %v4243
        %v4269 = vadd.f32 %v4226, %v4247
        %v4270 = vadd.f32 %v4227, %v4243
        %v4271 = vadd.f32 %v4228, %v4247
        %v4272 = vadd.f32 %v4229, %v4243
        %v4273 = vadd.f32 %v4230, %v4247
        %v4274 = vadd.f32 %v4231, %v4243
        %v4275 = vadd.f32 %v4232, %v4247
        %v4276 = vadd.f32 %v4233, %v4243
        %v4277 = vadd.f32 %v4234, %v4247
        %v4278 = vadd.f32 %v4235, %v4243
        %v4279 = vadd.f32 %v4236, %v4247
        %v4280 = vadd.f32 %v4237, %v4243
        %v4281 = vadd.f32 %v4238, %v4247
        %v4282 = vmul.f32 %v4250, 0.5
        %v4283 = vmul.f32 %v4251, 0.5
        %v4284 = vmul.f32 %v4252, 0.5
        %v4285 = vmul.f32 %v4253, 0.5
        %v4286 = vmul.f32 %v4254, 0.5
        %v4287 = vmul.f32 %v4255, 0.5
        %v4288 = vmul.f32 %v4256, 0.5
        %v4289 = vmul.f32 %v4257, 0.5
        %v4290 = vmul.f32 %v4258, 0.5
        %v4291 = vmul.f32 %v4259, 0.5
        %v4292 = vmul.f32 %v4260, 0.5
        %v4293 = vmul.f32 %v4261, 0.5
        %v4294 = vmul.f32 %v4262, 0.5
        %v4295 = vmul.f32 %v4263, 0.5
        %v4296 = vmul.f32 %v4264, 0.5
        %v4297 = vmul.f32 %v4265, 0.5
        %v4298 = vmul.f32 %v4266, 0.5
        %v4299 = vmul.f32 %v4267, 0.5
        %v4300 = vmul.f32 %v4268, 0.5
        %v4301 = vmul.f32 %v4269, 0.5
        %v4302 = vmul.f32 %v4270, 0.5
        %v4303 = vmul.f32 %v4271, 0.5
        %v4304 = vmul.f32 %v4272, 0.5
        %v4305 = vmul.f32 %v4273, 0.5
        %v4306 = vmul.f32 %v4274, 0.5
        %v4307 = vmul.f32 %v4275, 0.5
        %v4308 = vmul.f32 %v4276, 0.5
        %v4309 = vmul.f32 %v4277, 0.5
        %v4310 = vmul.f32 %v4278, 0.5
        %v4311 = vmul.f32 %v4279, 0.5
        %v4312 = vmul.f32 %v4280, 0.5
        %v4313 = vmul.f32 %v4281, 0.5
        %v4314 = vmul.f32 %v4250, 0.70710677
        %v4315 = vmul.f32 %v4251, 0.70710677
        %v4316 = vmul.f32 %v4252, 0.70710677
        %v4317 = vmul.f32 %v4253, 0.70710677
        %v4318 = vmul.f32 %v4254, 0.70710677
        %v4319 = vmul.f32 %v4255, 0.70710677
        %v4320 = vmul.f32 %v4256, 0.70710677
        %v4321 = vmul.f32 %v4257, 0.70710677
        %v4322 = vmul.f32 %v4258, 0.70710677
        %v4323 = vmul.f32 %v4259, 0.70710677
        %v4324 = vmul.f32 %v4260, 0.70710677
        %v4325 = vmul.f32 %v4261, 0.70710677
        %v4326 = vmul.f32 %v4262, 0.70710677
        %v4327 = vmul.f32 %v4263, 0.70710677
        %v4328 = vmul.f32 %v4264, 0.70710677
        %v4329 = vmul.f32 %v4265, 0.70710677
        %v4330 = vmul.f32 %v4266, 0.70710677
        %v4331 = vmul.f32 %v4267, 0.70710677
        %v4332 = vmul.f32 %v4268, 0.70710677
        %v4333 = vmul.f32 %v4269, 0.70710677
        %v4334 = vmul.f32 %v4270, 0.70710677
        %v4335 = vmul.f32 %v4271, 0.70710677
        %v4336 = vmul.f32 %v4272, 0.70710677
        %v4337 = vmul.f32 %v4273, 0.70710677
        %v4338 = vmul.f32 %v4274, 0.70710677
        %v4339 = vmul.f32 %v4275, 0.70710677
        %v4340 = vmul.f32 %v4276, 0.70710677
        %v4341 = vmul.f32 %v4277, 0.70710677
        %v4342 = vmul.f32 %v4278, 0.70710677
        %v4343 = vmul.f32 %v4279, 0.70710677
        %v4344 = vmul.f32 %v4280, 0.70710677
        %v4345 = vmul.f32 %v4281, 0.70710677
        %v4346 = verf.f32.pop %v4314
        %v4347 = verf.f32.pop %v4315
        %v4348 = verf.f32.pop %v4316
        %v4349 = verf.f32.pop %v4317
        %v4350 = verf.f32.pop %v4318
        %v4351 = verf.f32.pop %v4319
        %v4352 = verf.f32.pop %v4320
        %v4353 = verf.f32.pop %v4321
        %v4354 = verf.f32.pop %v4322
        %v4355 = verf.f32.pop %v4323
        %v4356 = verf.f32.pop %v4324
        %v4357 = verf.f32.pop %v4325
        %v4358 = verf.f32.pop %v4326
        %v4359 = verf.f32.pop %v4327
        %v4360 = verf.f32.pop %v4328
        %v4361 = verf.f32.pop %v4329
        %v4362 = verf.f32.pop %v4330
        %v4363 = verf.f32.pop %v4331
        %v4364 = verf.f32.pop %v4332
        %v4365 = verf.f32.pop %v4333
        %v4366 = verf.f32.pop %v4334
        %v4367 = verf.f32.pop %v4335
        %v4368 = verf.f32.pop %v4336
        %v4369 = verf.f32.pop %v4337
        %v4370 = verf.f32.pop %v4338
        %v4371 = verf.f32.pop %v4339
        %v4372 = verf.f32.pop %v4340
        %v4373 = verf.f32.pop %v4341
        %v4374 = verf.f32.pop %v4342
        %v4375 = verf.f32.pop %v4343
        %v4376 = verf.f32.pop %v4344
        %v4377 = verf.f32.pop %v4345
        %v4378 = vadd.f32 %v4346, 1.0
        %v4379 = vadd.f32 %v4347, 1.0
        %v4380 = vadd.f32 %v4348, 1.0
        %v4381 = vadd.f32 %v4349, 1.0
        %v4382 = vadd.f32 %v4350, 1.0
        %v4383 = vadd.f32 %v4351, 1.0
        %v4384 = vadd.f32 %v4352, 1.0
        %v4385 = vadd.f32 %v4353, 1.0
        %v4386 = vadd.f32 %v4354, 1.0
        %v4387 = vadd.f32 %v4355, 1.0
        %v4388 = vadd.f32 %v4356, 1.0
        %v4389 = vadd.f32 %v4357, 1.0
        %v4390 = vadd.f32 %v4358, 1.0
        %v4391 = vadd.f32 %v4359, 1.0
        %v4392 = vadd.f32 %v4360, 1.0
        %v4393 = vadd.f32 %v4361, 1.0
        %v4394 = vadd.f32 %v4362, 1.0
        %v4395 = vadd.f32 %v4363, 1.0
        %v4396 = vadd.f32 %v4364, 1.0
        %v4397 = vadd.f32 %v4365, 1.0
        %v4398 = vadd.f32 %v4366, 1.0
        %v4399 = vadd.f32 %v4367, 1.0
        %v4400 = vadd.f32 %v4368, 1.0
        %v4401 = vadd.f32 %v4369, 1.0
        %v4402 = vadd.f32 %v4370, 1.0
        %v4403 = vadd.f32 %v4371, 1.0
        %v4404 = vadd.f32 %v4372, 1.0
        %v4405 = vadd.f32 %v4373, 1.0
        %v4406 = vadd.f32 %v4374, 1.0
        %v4407 = vadd.f32 %v4375, 1.0
        %v4408 = vadd.f32 %v4376, 1.0
        %v4409 = vadd.f32 %v4377, 1.0
        %v4410 = vmul.f32 %v4282, %v4378
        %v4411 = vmul.f32 %v4283, %v4379
        %v4412 = vmul.f32 %v4284, %v4380
        %v4413 = vmul.f32 %v4285, %v4381
        %v4414 = vmul.f32 %v4286, %v4382
        %v4415 = vmul.f32 %v4287, %v4383
        %v4416 = vmul.f32 %v4288, %v4384
        %v4417 = vmul.f32 %v4289, %v4385
        %v4418 = vmul.f32 %v4290, %v4386
        %v4419 = vmul.f32 %v4291, %v4387
        %v4420 = vmul.f32 %v4292, %v4388
        %v4421 = vmul.f32 %v4293, %v4389
        %v4422 = vmul.f32 %v4294, %v4390
        %v4423 = vmul.f32 %v4295, %v4391
        %v4424 = vmul.f32 %v4296, %v4392
        %v4425 = vmul.f32 %v4297, %v4393
        %v4426 = vmul.f32 %v4298, %v4394
        %v4427 = vmul.f32 %v4299, %v4395
        %v4428 = vmul.f32 %v4300, %v4396
        %v4429 = vmul.f32 %v4301, %v4397
        %v4430 = vmul.f32 %v4302, %v4398
        %v4431 = vmul.f32 %v4303, %v4399
        %v4432 = vmul.f32 %v4304, %v4400
        %v4433 = vmul.f32 %v4305, %v4401
        %v4434 = vmul.f32 %v4306, %v4402
        %v4435 = vmul.f32 %v4307, %v4403
        %v4436 = vmul.f32 %v4308, %v4404
        %v4437 = vmul.f32 %v4309, %v4405
        %v4438 = vmul.f32 %v4310, %v4406
        %v4439 = vmul.f32 %v4311, %v4407
        %v4440 = vmul.f32 %v4312, %v4408
        %v4441 = vmul.f32 %v4313, %v4409
        %v4474 = vrot.slane %v4410, 1
        %v4475 = vrot.slane %v4412, 1
        %v4476 = vsel %vm350, %v4474, %v4475
        %v4477 = vrot.slane %v4411, 1
        %v4478 = vrot.slane %v4413, 1
        %v4479 = vsel %vm350, %v4477, %v4478
        %v4480 = vrot.slane %v4414, 1
        %v4481 = vrot.slane %v4416, 1
        %v4482 = vsel %vm350, %v4480, %v4481
        %v4483 = vrot.slane %v4415, 1
        %v4484 = vrot.slane %v4417, 1
        %v4485 = vsel %vm350, %v4483, %v4484
        %v4486 = vrot.slane %v4418, 1
        %v4487 = vrot.slane %v4420, 1
        %v4488 = vsel %vm350, %v4486, %v4487
        %v4489 = vrot.slane %v4419, 1
        %v4490 = vrot.slane %v4421, 1
        %v4491 = vsel %vm350, %v4489, %v4490
        %v4492 = vrot.slane %v4422, 1
        %v4493 = vrot.slane %v4424, 1
        %v4494 = vsel %vm350, %v4492, %v4493
        %v4495 = vrot.slane %v4423, 1
        %v4496 = vrot.slane %v4425, 1
        %v4497 = vsel %vm350, %v4495, %v4496
        %v4498 = vrot.slane %v4426, 1
        %v4499 = vrot.slane %v4428, 1
        %v4500 = vsel %vm350, %v4498, %v4499
        %v4501 = vrot.slane %v4427, 1
        %v4502 = vrot.slane %v4429, 1
        %v4503 = vsel %vm350, %v4501, %v4502
        %v4504 = vrot.slane %v4430, 1
        %v4505 = vrot.slane %v4432, 1
        %v4506 = vsel %vm350, %v4504, %v4505
        %v4507 = vrot.slane %v4431, 1
        %v4508 = vrot.slane %v4433, 1
        %v4509 = vsel %vm350, %v4507, %v4508
        %v4510 = vrot.slane %v4434, 1
        %v4511 = vrot.slane %v4436, 1
        %v4512 = vsel %vm350, %v4510, %v4511
        %v4513 = vrot.slane %v4435, 1
        %v4514 = vrot.slane %v4437, 1
        %v4515 = vsel %vm350, %v4513, %v4514
        %v4516 = vrot.slane %v4438, 1
        %v4517 = vrot.slane %v4440, 1
        %v4518 = vsel %vm350, %v4516, %v4517
        %v4519 = vrot.slane %v4439, 1
        %v4520 = vrot.slane %v4441, 1
        %v4521 = vsel %vm350, %v4519, %v4520
        %s4538 = smul.u32 %s173, 16
        %s4539 = smul.addr %s4538, 8
        %s4540 = scalar_lea.vmem %s170, %s4539
        %4541 = vst [vmem:[%s4540] sm:$0xff] %v4476
        %4542 = vst [vmem:[%s4540 + $0x8] sm:$0xff] %v4479
        %4543 = vst [vmem:[%s4540 + $0x10] sm:$0xff] %v4482
        %4544 = vst [vmem:[%s4540 + $0x18] sm:$0xff] %v4485
        %4545 = vst [vmem:[%s4540 + $0x20] sm:$0xff] %v4488
        %4546 = vst [vmem:[%s4540 + $0x28] sm:$0xff] %v4491
        %4547 = vst [vmem:[%s4540 + $0x30] sm:$0xff] %v4494
        %4548 = vst [vmem:[%s4540 + $0x38] sm:$0xff] %v4497
        %4549 = vst [vmem:[%s4540 + $0x40] sm:$0xff] %v4500
        %4550 = vst [vmem:[%s4540 + $0x48] sm:$0xff] %v4503
        %4551 = vst [vmem:[%s4540 + $0x50] sm:$0xff] %v4506
        %4552 = vst [vmem:[%s4540 + $0x58] sm:$0xff] %v4509
        %4553 = vst [vmem:[%s4540 + $0x60] sm:$0xff] %v4512
        %4554 = vst [vmem:[%s4540 + $0x68] sm:$0xff] %v4515
        %4555 = vst [vmem:[%s4540 + $0x70] sm:$0xff] %v4518
        %4556 = vst [vmem:[%s4540 + $0x78] sm:$0xff] %v4521
      $region37: #{mlp_forward.4} parent=31 // loop_footer
        %s177 = sadd.s32 1, %s173
      $region38: #{mlp_forward.4} parent=31 // loop_footer_branch
        %172 = sbr.rel target = $region34
      $region39: #{mlp_forward.4} parent=31 // loop_exit
        _
      %p4557 = scmp.lt.s32.totalorder %s14, 1
      %s4558 = scalar_select %p4557, %s14, 1
      %s4559 = smul.addr %s4558, 128
      %s4560 = smul.addr %s4559, 8
      %s4561 = scalar_lea.vmem %s3, %s4560
      // Predicated region
      $region40: #{mlp_forward.4} parent=31 // pred_check
        %p4562 = pneg %p100
      $region41: #{mlp_forward.4} parent=31 // pred_check_branch
        %4564 = sbr.rel (%p4562) target = $region43
      $region42: #{mlp_forward.4} parent=31 // pred_region
        _
      $region43: #{mlp_forward.4} parent=31 // pred_fallthru
        _
    $region32: #{mlp_forward.4} parent=5 // pred_fallthru
      _
    %p4565 = scmp.le.s32.totalorder 2, %s9
    // Predicated region
    $region44: #{mlp_forward.4} parent=5 // pred_check
      %p4566 = pneg %p4565
    $region45: #{mlp_forward.4} parent=5 // pred_check_branch
      %4568 = sbr.rel (%p4566) target = $region47
    $region46: #{mlp_forward.4} parent=5 // pred_region
      %s4569 = ssub.s32 %s9, 2
      // Predicated region
      $region48: #{mlp_forward.4} parent=46 // pred_check
        %p4570 = pneg %p106
      $region49: #{mlp_forward.4} parent=46 // pred_check_branch
        %4572 = sbr.rel (%p4570) target = $region51
      $region50: #{mlp_forward.4} parent=46 // pred_region
        %p4573 = scmp.lt.s32.totalorder %s15, 1
        %s4574 = scalar_select %p4573, %s15, 1
        %s4575 = smul.addr %s4574, 128
        %s4576 = smul.addr %s4575, 8
        %s4577 = scalar_lea.vmem %s3, %s4576
      $region51: #{mlp_forward.4} parent=46 // pred_fallthru
        _
    $region47: #{mlp_forward.4} parent=5 // pred_fallthru
      _
  $region6: #{mlp_forward.4} parent=0 // loop_footer
    %s13 = sadd.s32 1, %s9
  $region7: #{mlp_forward.4} parent=0 // loop_footer_branch
    %8 = sbr.rel target = $region3
  $region8: #{mlp_forward.4} parent=0 // loop_exit
    _

</llo_original>
